<compile_context>
chip_gen: v6e
topology: v6e:2x2x1
jax: 0.10.0
libtpu: 0.0.40
codegen_flags: <defaults>
</compile_context>

<pallas_src>
import functools

import jax
import jax.numpy as jnp
import numpy as np
from jax.experimental import pallas as pl
from jax.experimental.pallas import tpu as pltpu


_MOSAIC_PARAMS = pltpu.CompilerParams(
    dimension_semantics=("parallel",),
    vmem_limit_bytes=48 * 1024 * 1024,
)


# ---------------------------------------------------------------------------
# JAX glue shared by the Pallas path and the reference path
# ---------------------------------------------------------------------------
def pool2x(x):
    """F.avg_pool2d(x, 3, stride=2, padding=1) with count_include_pad=True (NHWC)."""
    xp = jnp.pad(x, ((0, 0), (1, 1), (1, 1), (0, 0)))
    s = jax.lax.reduce_window(xp, 0.0, jax.lax.add, (1, 3, 3, 1), (1, 2, 2, 1), "VALID")
    return s / 9.0


def bilinear_resize_align_corners(x, h_out, w_out):
    """F.interpolate(x, (h_out, w_out), mode='bilinear', align_corners=True) (NHWC)."""
    n, h_in, w_in, c = x.shape
    x = x.astype(jnp.float32)

    def grid(n_out, n_in):
        if n_out == 1:
            return jnp.zeros((n_out,), jnp.float32)
        return jnp.arange(n_out, dtype=jnp.float32) * ((n_in - 1) / (n_out - 1))

    ys = grid(h_out, h_in)
    xs = grid(w_out, w_in)
    y0 = jnp.clip(jnp.floor(ys).astype(jnp.int32), 0, h_in - 1)
    y1 = jnp.minimum(y0 + 1, h_in - 1)
    wy = (ys - y0.astype(jnp.float32))[None, :, None, None]
    x0 = jnp.clip(jnp.floor(xs).astype(jnp.int32), 0, w_in - 1)
    x1 = jnp.minimum(x0 + 1, w_in - 1)
    wx = (xs - x0.astype(jnp.float32))[None, None, :, None]

    r0 = x[:, y0, :, :]
    r1 = x[:, y1, :, :]
    a = r0[:, :, x0, :]
    b = r0[:, :, x1, :]
    c_ = r1[:, :, x0, :]
    d = r1[:, :, x1, :]
    top = a * (1.0 - wx) + b * wx
    bot = c_ * (1.0 - wx) + d * wx
    return top * (1.0 - wy) + bot * wy


def interp_to(x, dest):
    return bilinear_resize_align_corners(x, dest.shape[1], dest.shape[2])


# ---------------------------------------------------------------------------
# Fused BasicMotionEncoder_2 kernel (one pallas_call for the whole encoder)
# ---------------------------------------------------------------------------
def _encoder_kernel(xcat_ref, dpat_ref, cpat_ref, dflat_ref, dmflat_ref,
                    w1_ref, b1_ref, wd1_ref, bd1_ref,
                    wc2_ref, bc2_ref, wd2_ref, bd2_ref,
                    wfc_ref, wfd_ref, wfp_ref, bfin_ref,
                    o_ref,
                    c1_buf, d1_buf, c2_buf, d2_buf, *, H, W):
    f32 = jnp.float32
    bf16 = jnp.bfloat16
    HW = H * W

    # zero the halo'ed scratch buffers (safe under megacore "parallel" sharding)
    for buf in (c1_buf, d1_buf, c2_buf, d2_buf):
        buf[...] = jnp.zeros_like(buf)

    # -- stage 1: fused 1x1 convs (convc1 | convc1_mono), block-diagonal weight ------
    acc1 = jnp.broadcast_to(b1_ref[...], (HW, 128)).astype(f32)
    acc1 = acc1 + jnp.dot(xcat_ref[0], w1_ref[...], preferred_element_type=f32)
    c1_buf[1:1 + H, 1:1 + W, :] = jnp.maximum(acc1, 0.0).reshape(H, W, 128)

    # -- stage 2: fused 7x7 Cin=1 convs as a single im2col matmul ---------------------
    accd1 = jnp.broadcast_to(bd1_ref[...], (HW, 128)).astype(f32)
    accd1 = accd1 + jnp.dot(dpat_ref[0], wd1_ref[...], preferred_element_type=f32)
    d1_buf[1:1 + H, 1:1 + W, :] = jnp.maximum(accd1, 0.0).reshape(H, W, 128)

    # -- stage 3: paired 3x3 convs (convc2|convc2_mono) and (convd2|convd2_mono) ------
    accc2 = jnp.broadcast_to(bc2_ref[...], (HW, 128)).astype(f32)
    accd2 = jnp.broadcast_to(bd2_ref[...], (HW, 128)).astype(f32)
    for ky in range(3):
        for kx in range(3):
            k = ky * 3 + kx
            pc = c1_buf[ky:ky + H, kx:kx + W, :].reshape(HW, 128).astype(bf16)
            pd = d1_buf[ky:ky + H, kx:kx + W, :].reshape(HW, 128).astype(bf16)
            accc2 = accc2 + jnp.dot(pc, wc2_ref[k], preferred_element_type=f32)
            accd2 = accd2 + jnp.dot(pd, wd2_ref[k], preferred_element_type=f32)
    c2_buf[1:1 + H, 1:1 + W, :] = jnp.maximum(accc2, 0.0).reshape(H, W, 128)
    d2_buf[1:1 + H, 1:1 + W, :] = jnp.maximum(accd2, 0.0).reshape(H, W, 128)

    # -- stage 4: paired final 3x3 convs (conv | conv_mono) + rank-1 confidence -------
    accf = jnp.broadcast_to(bfin_ref[...], (HW, 128)).astype(f32)
    cpat = cpat_ref[0]                                      # (HW, 9) bf16
    for ky in range(3):
        for kx in range(3):
            k = ky * 3 + kx
            pc = c2_buf[ky:ky + H, kx:kx + W, :].reshape(HW, 128).astype(bf16)
            pd = d2_buf[ky:ky + H, kx:kx + W, :].reshape(HW, 128).astype(bf16)
            accf = accf + jnp.dot(pc, wfc_ref[k], preferred_element_type=f32)
            accf = accf + jnp.dot(pd, wfd_ref[k], preferred_element_type=f32)
            accf = accf + cpat[:, k:k + 1].astype(f32) * wfp_ref[k].astype(f32)
    outf = jnp.maximum(accf, 0.0)          # lanes 63 and 127 are exactly zero here

    # -- stage 5: inject raw disp / disp_mono into lanes 63 / 127 (lane-dense store) --
    lane = jax.lax.broadcasted_iota(jnp.int32, (HW, 128), 1)
    outf = jnp.where(lane == 63, dflat_ref[0], outf)
    outf = jnp.where(lane == 127, dmflat_ref[0], outf)
    o_ref[0] = outf


def _prep_encoder_weights(p):
    f32 = jnp.float32
    bf16 = jnp.bfloat16
    wc1, bc1 = p["convc1"];       wc1m, bc1m = p["convc1_mono"]
    wc2, bc2 = p["convc2"];       wc2m, bc2m = p["convc2_mono"]
    wd1, bd1 = p["convd1"];       wd1m, bd1m = p["convd1_mono"]
    wd2, bd2 = p["convd2"];       wd2m, bd2m = p["convd2_mono"]
    wfv, bfv = p["conv"];         wfm, bfmv = p["conv_mono"]

    cs = wc1.shape[2]             # cor_planes + 1
    cm = wc1m.shape[2]            # cor_planes

    w1 = jnp.zeros((cs + cm, 128), f32)
    w1 = w1.at[:cs, :64].set(wc1.reshape(cs, 64))
    w1 = w1.at[cs:, 64:].set(wc1m.reshape(cm, 64))
    b1 = jnp.concatenate([bc1, bc1m]).reshape(1, 128)

    wd1c = jnp.zeros((98, 128), f32)
    wd1c = wd1c.at[:49, :64].set(wd1.reshape(49, 64))
    wd1c = wd1c.at[49:, 64:].set(wd1m.reshape(49, 64))
    bd1c = jnp.concatenate([bd1, bd1m]).reshape(1, 128)

    def blockdiag_3x3(wa, wb):
        w = jnp.zeros((9, 128, 128), f32)
        w = w.at[:, :64, :64].set(wa.reshape(9, 64, 64))
        w = w.at[:, 64:, 64:].set(wb.reshape(9, 64, 64))
        return w

    wc2c = blockdiag_3x3(wc2, wc2m)
    bc2c = jnp.concatenate([bc2, bc2m]).reshape(1, 128)
    wd2c = blockdiag_3x3(wd2, wd2m)
    bd2c = jnp.concatenate([bd2, bd2m]).reshape(1, 128)

    wf9 = wfv.reshape(9, 129, 63)
    wfm9 = wfm.reshape(9, 128, 63)
    wfc = jnp.zeros((9, 128, 128), f32)
    wfc = wfc.at[:, :64, :63].set(wf9[:, :64, :])
    wfc = wfc.at[:, 64:, 64:127].set(wfm9[:, :64, :])
    wfd = jnp.zeros((9, 128, 128), f32)
    wfd = wfd.at[:, :64, :63].set(wf9[:, 64:128, :])
    wfd = wfd.at[:, 64:, 64:127].set(wfm9[:, 64:128, :])
    wfp = jnp.zeros((9, 1, 128), f32).at[:, 0, :63].set(wf9[:, 128, :])
    bff = jnp.zeros((1, 128), f32).at[0, :63].set(bfv).at[0, 64:127].set(bfmv)

    cast = lambda a: a.astype(bf16)
    return dict(w1=cast(w1), b1=b1, wd1=cast(wd1c), bd1=bd1c,
                wc2=cast(wc2c), bc2=bc2c, wd2=cast(wd2c), bd2=bd2c,
                wfc=cast(wfc), wfd=cast(wfd), wfp=cast(wfp), bf=bff)


def motion_encoder_pallas(p, disp, corr, flaw_stereo, disp_mono, corr_mono,
                          flaw_mono, confidence):
    f32 = jnp.float32
    bf16 = jnp.bfloat16
    N, H, W, _ = disp.shape
    HW = H * W

    w = _prep_encoder_weights(p)

    xcat = jnp.concatenate(
        [corr, flaw_stereo, confidence, corr_mono, flaw_mono], axis=-1
    ).astype(bf16).reshape(N, HW, -1)
    Cxc = xcat.shape[-1]

    def im2col_1ch(x, k):
        pad = k // 2
        xp = jnp.pad(x, ((0, 0), (pad, pad), (pad, pad), (0, 0)))
        cols = [xp[:, ky:ky + H, kx:kx + W, 0] for ky in range(k) for kx in range(k)]
        return jnp.stack(cols, axis=-1).reshape(N, HW, k * k)

    dpat = jnp.concatenate([im2col_1ch(disp.astype(bf16), 7),
                            im2col_1ch(disp_mono.astype(bf16), 7)], axis=-1)
    cpat = im2col_1ch(confidence.astype(bf16), 3)
    dflat = disp.reshape(N, HW, 1)
    dmflat = disp_mono.reshape(N, HW, 1)

    kernel = functools.partial(_encoder_kernel, H=H, W=W)
    out = pl.pallas_call(
        kernel,
        out_shape=jax.ShapeDtypeStruct((N, HW, 128), f32),
        grid_spec=pltpu.PrefetchScalarGridSpec(
            num_scalar_prefetch=0,
            grid=(N,),
            in_specs=[
                pl.BlockSpec((1, HW, Cxc), lambda n: (n, 0, 0)),
                pl.BlockSpec((1, HW, 98), lambda n: (n, 0, 0)),
                pl.BlockSpec((1, HW, 9), lambda n: (n, 0, 0)),
                pl.BlockSpec((1, HW, 1), lambda n: (n, 0, 0)),
                pl.BlockSpec((1, HW, 1), lambda n: (n, 0, 0)),
                pl.BlockSpec(w["w1"].shape, lambda n: (0, 0)),
                pl.BlockSpec((1, 128), lambda n: (0, 0)),
                pl.BlockSpec((98, 128), lambda n: (0, 0)),
                pl.BlockSpec((1, 128), lambda n: (0, 0)),
                pl.BlockSpec((9, 128, 128), lambda n: (0, 0, 0)),
                pl.BlockSpec((1, 128), lambda n: (0, 0)),
                pl.BlockSpec((9, 128, 128), lambda n: (0, 0, 0)),
                pl.BlockSpec((1, 128), lambda n: (0, 0)),
                pl.BlockSpec((9, 128, 128), lambda n: (0, 0, 0)),
                pl.BlockSpec((9, 128, 128), lambda n: (0, 0, 0)),
                pl.BlockSpec((9, 1, 128), lambda n: (0, 0, 0)),
                pl.BlockSpec((1, 128), lambda n: (0, 0)),
            ],
            out_specs=pl.BlockSpec((1, HW, 128), lambda n: (n, 0, 0)),
            scratch_shapes=[pltpu.VMEM((H + 2, W + 2, 128), f32) for _ in range(4)],
        ),
        compiler_params=_MOSAIC_PARAMS,
    )(xcat, dpat, cpat, dflat, dmflat,
      w["w1"], w["b1"], w["wd1"], w["bd1"],
      w["wc2"], w["bc2"], w["wd2"], w["bd2"],
      w["wfc"], w["wfd"], w["wfp"], w["bf"])
    return out.reshape(N, H, W, 128)


# ---------------------------------------------------------------------------
# Fused ConvGRU kernel (convz+convr fused, convq, gating — one pallas_call)
# ---------------------------------------------------------------------------
def _gru_kernel(h_ref, x_ref, cz_ref, cr_ref, cq_ref,
                wzr_ref, bzr_ref, wq_ref, bq_ref,
                o_ref, hx_buf, *, H, W, Ch, Cx):
    f32 = jnp.float32
    HW = H * W
    Chx = Ch + Cx

    hx_buf[...] = jnp.zeros_like(hx_buf)
    hx_buf[1:1 + H, 1:1 + W, 0:Ch] = h_ref[0]
    hx_buf[1:1 + H, 1:1 + W, Ch:Chx] = x_ref[0]

    acc = jnp.broadcast_to(bzr_ref[...], (HW, 2 * Ch)).astype(f32)
    for ky in range(3):
        for kx in range(3):
            k = ky * 3 + kx
            patch = hx_buf[ky:ky + H, kx:kx + W, :].reshape(HW, Chx)
            acc = acc + jnp.dot(patch, wzr_ref[k], preferred_element_type=f32)

    h_flat = h_ref[0].reshape(HW, Ch)
    z = jax.nn.sigmoid(acc[:, 0:Ch] + cz_ref[0].reshape(HW, Ch))
    r = jax.nn.sigmoid(acc[:, Ch:2 * Ch] + cr_ref[0].reshape(HW, Ch))

    # reuse hx_buf: overwrite the hidden slice with r*h for the q-path conv
    hx_buf[1:1 + H, 1:1 + W, 0:Ch] = (r * h_flat).reshape(H, W, Ch)

    accq = jnp.broadcast_to(bq_ref[...], (HW, Ch)).astype(f32)
    for ky in range(3):
        for kx in range(3):
            k = ky * 3 + kx
            patch = hx_buf[ky:ky + H, kx:kx + W, :].reshape(HW, Chx)
            accq = accq + jnp.dot(patch, wq_ref[k], preferred_element_type=f32)
    q = jnp.tanh(accq + cq_ref[0].reshape(HW, Ch))

    h_new = (1.0 - z) * h_flat + z * q
    o_ref[0] = h_new.reshape(H, W, Ch)


def conv_gru_pallas(p, h, cz, cr, cq, x):
    N, H, W, Ch = h.shape
    Cx = x.shape[-1]
    Chx = Ch + Cx
    wz, bz = p["convz"]
    wr, br = p["convr"]
    wq, bq = p["convq"]
    wzr = jnp.concatenate([wz, wr], axis=-1).reshape(9, Chx, 2 * Ch)
    bzr = jnp.concatenate([bz, br]).reshape(1, 2 * Ch)
    wq9 = wq.reshape(9, Chx, Ch)
    bq1 = bq.reshape(1, Ch)

    kernel = functools.partial(_gru_kernel, H=H, W=W, Ch=Ch, Cx=Cx)
    return pl.pallas_call(
        kernel,
        out_shape=jax.ShapeDtypeStruct((N, H, W, Ch), jnp.float32),
        grid_spec=pltpu.PrefetchScalarGridSpec(
            num_scalar_prefetch=0,
            grid=(N,),
            in_specs=[
                pl.BlockSpec((1, H, W, Ch), lambda n: (n, 0, 0, 0)),
                pl.BlockSpec((1, H, W, Cx), lambda n: (n, 0, 0, 0)),
                pl.BlockSpec((1, H, W, Ch), lambda n: (n, 0, 0, 0)),
                pl.BlockSpec((1, H, W, Ch), lambda n: (n, 0, 0, 0)),
                pl.BlockSpec((1, H, W, Ch), lambda n: (n, 0, 0, 0)),
                pl.BlockSpec((9, Chx, 2 * Ch), lambda n: (0, 0, 0)),
                pl.BlockSpec((1, 2 * Ch), lambda n: (0, 0)),
                pl.BlockSpec((9, Chx, Ch), lambda n: (0, 0, 0)),
                pl.BlockSpec((1, Ch), lambda n: (0, 0)),
            ],
            out_specs=pl.BlockSpec((1, H, W, Ch), lambda n: (n, 0, 0, 0)),
            scratch_shapes=[pltpu.VMEM((H + 2, W + 2, Chx), jnp.float32)],
        ),
        compiler_params=_MOSAIC_PARAMS,
    )(h, x, cz, cr, cq, wzr, bzr, wq9, bq1)


# ---------------------------------------------------------------------------
# Fused DispHead + mask_feat_4 kernel (one pallas_call for both heads)
# ---------------------------------------------------------------------------
def _head_kernel(x_ref, w1_ref, b1_ref, w2_ref, b2_ref, wm_ref, bm_ref,
                 mask_ref, dd_ref, t_buf, *, H, W, C):
    f32 = jnp.float32
    HW = H * W

    t_buf[...] = jnp.zeros_like(t_buf)
    x = x_ref[0]                                    # (H+2, W+2, C)

    acc1 = jnp.broadcast_to(b1_ref[...], (HW, 256)).astype(f32)
    accm = jnp.broadcast_to(bm_ref[...], (HW, 32)).astype(f32)
    for ky in range(3):
        for kx in range(3):
            k = ky * 3 + kx
            patch = x[ky:ky + H, kx:kx + W, :].reshape(HW, C)
            acc1 = acc1 + jnp.dot(patch, w1_ref[k], preferred_element_type=f32)
            accm = accm + jnp.dot(patch, wm_ref[k], preferred_element_type=f32)
    mask_ref[0] = jnp.maximum(accm, 0.0).reshape(H, W, 32)
    t_buf[1:1 + H, 1:1 + W, :] = jnp.maximum(acc1, 0.0).reshape(H, W, 256)

    acc2 = jnp.broadcast_to(b2_ref[...], (HW, 64)).astype(f32)
    for ky in range(3):
        for kx in range(3):
            k = ky * 3 + kx
            patch = t_buf[ky:ky + H, kx:kx + W, :].reshape(HW, 256)
            acc2 = acc2 + jnp.dot(patch, w2_ref[k], preferred_element_type=f32)
    dd_ref[0] = acc2[:, 0:1].reshape(H, W, 1)


def head_pallas(p, net0):
    N, H, W, C = net0.shape
    w1, b1 = p["dh_conv1"]
    w2, b2 = p["dh_conv2"]
    wm, bm = p["mask_conv"]
    w1r = w1.reshape(9, C, 256)
    b1r = b1.reshape(1, 256)
    w2p = jnp.zeros((9, 256, 64), jnp.float32).at[:, :, 0:1].set(w2.reshape(9, 256, 1))
    b2p = jnp.zeros((1, 64), jnp.float32).at[0, 0].set(b2[0])
    wmr = wm.reshape(9, C, 32)
    bmr = bm.reshape(1, 32)
    x_p = jnp.pad(net0, ((0, 0), (1, 1), (1, 1), (0, 0)))

    kernel = functools.partial(_head_kernel, H=H, W=W, C=C)
    mask, dd = pl.pallas_call(
        kernel,
        out_shape=(jax.ShapeDtypeStruct((N, H, W, 32), jnp.float32),
                   jax.ShapeDtypeStruct((N, H, W, 1), jnp.float32)),
        grid_spec=pltpu.PrefetchScalarGridSpec(
            num_scalar_prefetch=0,
            grid=(N,),
            in_specs=[
                pl.BlockSpec((1, H + 2, W + 2, C), lambda n: (n, 0, 0, 0)),
                pl.BlockSpec((9, C, 256), lambda n: (0, 0, 0)),
                pl.BlockSpec((1, 256), lambda n: (0, 0)),
                pl.BlockSpec((9, 256, 64), lambda n: (0, 0, 0)),
                pl.BlockSpec((1, 64), lambda n: (0, 0)),
                pl.BlockSpec((9, C, 32), lambda n: (0, 0, 0)),
                pl.BlockSpec((1, 32), lambda n: (0, 0)),
            ],
            out_specs=[pl.BlockSpec((1, H, W, 32), lambda n: (n, 0, 0, 0)),
                       pl.BlockSpec((1, H, W, 1), lambda n: (n, 0, 0, 0))],
            scratch_shapes=[pltpu.VMEM((H + 2, W + 2, 256), jnp.float32)],
        ),
        compiler_params=_MOSAIC_PARAMS,
    )(x_p, w1r, b1r, w2p, b2p, wmr, bmr)
    return mask, dd


# ---------------------------------------------------------------------------
# XLA reference implementations (for correctness checking)
# ---------------------------------------------------------------------------
def conv2d_ref(x, w, b, padding, *, relu, bf16_inputs=False):
    if bf16_inputs:
        x = x.astype(jnp.bfloat16)
        w = w.astype(jnp.bfloat16)
    y = jax.lax.conv_general_dilated(
        x, w, window_strides=(1, 1),
        padding=[(padding, padding), (padding, padding)],
        dimension_numbers=("NHWC", "HWIO", "NHWC"),
        preferred_element_type=jnp.float32,
        precision=jax.lax.Precision.HIGHEST)
    y = y + b
    return jnp.maximum(y, 0.0) if relu else y


def motion_encoder_ref(p, disp, corr, flaw_stereo, disp_mono, corr_mono,
                       flaw_mono, confidence):
    x_s = jnp.concatenate([corr, flaw_stereo, confidence], axis=-1)
    x_m = jnp.concatenate([corr_mono, flaw_mono], axis=-1)
    cor = conv2d_ref(x_s, *p["convc1"], 0, relu=True, bf16_inputs=True)
    cor = conv2d_ref(cor, *p["convc2"], 1, relu=True, bf16_inputs=True)
    corm = conv2d_ref(x_m, *p["convc1_mono"], 0, relu=True, bf16_inputs=True)
    corm = conv2d_ref(corm, *p["convc2_mono"], 1, relu=True, bf16_inputs=True)
    d_ = conv2d_ref(disp, *p["convd1"], 3, relu=True, bf16_inputs=True)
    d_ = conv2d_ref(d_, *p["convd2"], 1, relu=True, bf16_inputs=True)
    dm_ = conv2d_ref(disp_mono, *p["convd1_mono"], 3, relu=True, bf16_inputs=True)
    dm_ = conv2d_ref(dm_, *p["convd2_mono"], 1, relu=True, bf16_inputs=True)
    cd = jnp.concatenate([cor, d_, confidence], axis=-1)
    cdm = jnp.concatenate([corm, dm_], axis=-1)
    out = conv2d_ref(cd, *p["conv"], 1, relu=True, bf16_inputs=True)
    outm = conv2d_ref(cdm, *p["conv_mono"], 1, relu=True, bf16_inputs=True)
    return jnp.concatenate([out, disp, outm, disp_mono], axis=-1)


def conv_gru_ref(p, h, cz, cr, cq, x):
    hx = jnp.concatenate([h, x], axis=-1)
    z = jax.nn.sigmoid(conv2d_ref(hx, *p["convz"], 1, relu=False) + cz)
    r = jax.nn.sigmoid(conv2d_ref(hx, *p["convr"], 1, relu=False) + cr)
    q = jnp.tanh(conv2d_ref(jnp.concatenate([r * h, x], axis=-1),
                            *p["convq"], 1, relu=False) + cq)
    return (1.0 - z) * h + z * q


def head_ref(p, net0):
    t = conv2d_ref(net0, *p["dh_conv1"], 1, relu=True)
    dd = conv2d_ref(t, *p["dh_conv2"], 1, relu=False)
    mf = conv2d_ref(net0, *p["mask_conv"], 1, relu=True)
    return mf, dd


# ---------------------------------------------------------------------------
# BasicMultiUpdateBlock_2 forward (n_gru_layers = 3, update = True)
# ---------------------------------------------------------------------------
def update_block_forward(params, net, inp, disp, corr, flaw_stereo, confidence,
                         flaw_mono, disp_mono, corr_mono,
                         *, encoder_fn, gru_fn, head_fn):
    net = list(net)

    # iter16
    x16 = pool2x(net[1])
    net[2] = gru_fn(params["gru16"], net[2], *inp[2], x16)

    # iter08  (n_gru_layers == 3)
    x08 = jnp.concatenate([pool2x(net[0]), interp_to(net[2], net[1])], axis=-1)
    net[1] = gru_fn(params["gru08"], net[1], *inp[1], x08)

    # iter04  (n_gru_layers > 1)
    motion = encoder_fn(params["encoder"], disp, corr, flaw_stereo,
                        disp_mono, corr_mono, flaw_mono, confidence)
    x04 = jnp.concatenate([motion, interp_to(net[1], net[0])], axis=-1)
    net[0] = gru_fn(params["gru04"], net[0], *inp[0], x04)

    # update
    mask_feat_4, delta_disp = head_fn(params["head"], net[0])
    return net, mask_feat_4, delta_disp


# ---------------------------------------------------------------------------
# Deterministic synthetic parameters / inputs
# ---------------------------------------------------------------------------
def init_conv(key, kh, kw, cin, cout):
    kw_, kb_ = jax.random.split(key)
    w = jax.random.normal(kw_, (kh, kw, cin, cout), jnp.float32) / np.sqrt(kh * kw * cin)
    b = 0.01 * jax.random.normal(kb_, (cout,), jnp.float32)
    return w, b


if __name__ == "__main__":
    B = 2
    H4 = W4 = 16
    H8, W8 = H4 // 2, W4 // 2
    H16, W16 = H4 // 4, W4 // 4
    hidden = 128
    corr_levels, corr_radius = 1, 1
    cor_planes = 96 + corr_levels * (2 * corr_radius + 1) * (8 + 1)   # 123

    keys = list(jax.random.split(jax.random.PRNGKey(0), 64))
    kit = iter(keys)
    nk = lambda: next(kit)

    params = {
        "encoder": {
            "convc1":      init_conv(nk(), 1, 1, cor_planes + 1, 64),
            "convc2":      init_conv(nk(), 3, 3, 64, 64),
            "convc1_mono": init_conv(nk(), 1, 1, cor_planes, 64),
            "convc2_mono": init_conv(nk(), 3, 3, 64, 64),
            "convd1":      init_conv(nk(), 7, 7, 1, 64),
            "convd2":      init_conv(nk(), 3, 3, 64, 64),
            "convd1_mono": init_conv(nk(), 7, 7, 1, 64),
            "convd2_mono": init_conv(nk(), 3, 3, 64, 64),
            "conv":        init_conv(nk(), 3, 3, 129, 63),
            "conv_mono":   init_conv(nk(), 3, 3, 128, 63),
        },
        "gru16": {"convz": init_conv(nk(), 3, 3, 2 * hidden, hidden),
                  "convr": init_conv(nk(), 3, 3, 2 * hidden, hidden),
                  "convq": init_conv(nk(), 3, 3, 2 * hidden, hidden)},
        "gru08": {"convz": init_conv(nk(), 3, 3, 3 * hidden, hidden),
                  "convr": init_conv(nk(), 3, 3, 3 * hidden, hidden),
                  "convq": init_conv(nk(), 3, 3, 3 * hidden, hidden)},
        "gru04": {"convz": init_conv(nk(), 3, 3, 3 * hidden, hidden),
                  "convr": init_conv(nk(), 3, 3, 3 * hidden, hidden),
                  "convq": init_conv(nk(), 3, 3, 3 * hidden, hidden)},
        "head": {"dh_conv1":  init_conv(nk(), 3, 3, hidden, 256),
                 "dh_conv2":  init_conv(nk(), 3, 3, 256, 1),
                 "mask_conv": init_conv(nk(), 3, 3, hidden, 32)},
    }

    net = [jax.random.normal(nk(), (B, H4, W4, hidden), jnp.float32),
           jax.random.normal(nk(), (B, H8, W8, hidden), jnp.float32),
           jax.random.normal(nk(), (B, H16, W16, hidden), jnp.float32)]
    inp = [tuple(jax.random.normal(nk(), (B, h_, w_, hidden), jnp.float32)
                 for _ in range(3))
           for (h_, w_) in ((H4, W4), (H8, W8), (H16, W16))]

    disp        = jax.random.normal(nk(), (B, H4, W4, 1), jnp.float32)
    corr        = jax.random.normal(nk(), (B, H4, W4, cor_planes - 1), jnp.float32)
    flaw_stereo = jax.random.normal(nk(), (B, H4, W4, 1), jnp.float32)
    confidence  = jax.random.normal(nk(), (B, H4, W4, 1), jnp.float32)
    flaw_mono   = jax.random.normal(nk(), (B, H4, W4, 1), jnp.float32)
    disp_mono   = jax.random.normal(nk(), (B, H4, W4, 1), jnp.float32)
    corr_mono   = jax.random.normal(nk(), (B, H4, W4, cor_planes - 1), jnp.float32)

    args = (disp, corr, flaw_stereo, confidence, flaw_mono, disp_mono, corr_mono)

    net_p, mask_p, dd_p = update_block_forward(
        params, net, inp, *args,
        encoder_fn=motion_encoder_pallas, gru_fn=conv_gru_pallas, head_fn=head_pallas)
    jax.block_until_ready((net_p, mask_p, dd_p))

    net_r, mask_r, dd_r = update_block_forward(
        params, net, inp, *args,
        encoder_fn=motion_encoder_ref, gru_fn=conv_gru_ref, head_fn=head_ref)
    jax.block_until_ready((net_r, mask_r, dd_r))

    assert net_p[0].shape == (B, H4, W4, hidden)
    assert net_p[1].shape == (B, H8, W8, hidden)
    assert net_p[2].shape == (B, H16, W16, hidden)
    assert mask_p.shape == (B, H4, W4, 32)
    assert dd_p.shape == (B, H4, W4, 1)

    checks = [("net_1/16", net_p[2], net_r[2]),
              ("net_1/8", net_p[1], net_r[1]),
              ("net_1/4", net_p[0], net_r[0]),
              ("mask_feat_4", mask_p, mask_r),
              ("delta_disp", dd_p, dd_r)]
    for name, a, b in checks:
        np.testing.assert_allclose(np.asarray(a), np.asarray(b),
                                   rtol=1e-2, atol=1e-2, err_msg=name)

    print("KERNEL_OK")
</pallas_src>

<mosaic_0001>
module attributes {stable_mosaic.version = 11 : i64} {
  func.func @_gru_kernel(%arg0: i32, %arg1: memref<1x4x4x128xf32, #tpu.memory_space<vmem>>, %arg2: memref<1x4x4x128xf32, #tpu.memory_space<vmem>>, %arg3: memref<1x4x4x128xf32, #tpu.memory_space<vmem>>, %arg4: memref<1x4x4x128xf32, #tpu.memory_space<vmem>>, %arg5: memref<1x4x4x128xf32, #tpu.memory_space<vmem>>, %arg6: memref<9x256x256xf32, #tpu.memory_space<vmem>>, %arg7: memref<1x256xf32, #tpu.memory_space<vmem>>, %arg8: memref<9x256x128xf32, #tpu.memory_space<vmem>>, %arg9: memref<1x128xf32, #tpu.memory_space<vmem>>, %arg10: memref<1x4x4x128xf32, #tpu.memory_space<vmem>>, %arg11: memref<6x6x256xf32, #tpu.memory_space<vmem>>) attributes {dimension_semantics = [#tpu.dimension_semantics<parallel>], iteration_bounds = array<i64: 2>, scalar_prefetch = 0 : i64, scratch_operands = 1 : i64, tpu.core_type = #tpu.core_type<tc>, window_params = [{transform_indices = @transform_0, window_bounds = array<i64: 1, 4, 4, 128>}, {transform_indices = @transform_1, window_bounds = array<i64: 1, 4, 4, 128>}, {transform_indices = @transform_2, window_bounds = array<i64: 1, 4, 4, 128>}, {transform_indices = @transform_3, window_bounds = array<i64: 1, 4, 4, 128>}, {transform_indices = @transform_4, window_bounds = array<i64: 1, 4, 4, 128>}, {pipeline_mode = #tpu.pipeline_mode<synchronous>, transform_indices = @transform_5, window_bounds = array<i64: 9, 256, 256>}, {pipeline_mode = #tpu.pipeline_mode<synchronous>, transform_indices = @transform_6, window_bounds = array<i64: 1, 256>}, {pipeline_mode = #tpu.pipeline_mode<synchronous>, transform_indices = @transform_7, window_bounds = array<i64: 9, 256, 128>}, {pipeline_mode = #tpu.pipeline_mode<synchronous>, transform_indices = @transform_8, window_bounds = array<i64: 1, 128>}, {transform_indices = @transform_9, window_bounds = array<i64: 1, 4, 4, 128>}]} {
    %cst = arith.constant 0.000000e+00 : f32
    %0 = vector.broadcast %cst : f32 to vector<6x6x256xf32>
    %c0 = arith.constant 0 : index
    %c0_0 = arith.constant 0 : index
    %c0_1 = arith.constant 0 : index
    %1 = vector.load %arg11[%c0, %c0_0, %c0_1] : memref<6x6x256xf32, #tpu.memory_space<vmem>>, vector<6x6x256xf32>
    tpu.vector_store %arg11[%c0, %c0_0, %c0_1], %0 {strides = array<i32>} : memref<6x6x256xf32, #tpu.memory_space<vmem>>, vector<6x6x256xf32>,
    %c0_2 = arith.constant 0 : index
    %c0_3 = arith.constant 0 : index
    %c0_4 = arith.constant 0 : index
    %c0_5 = arith.constant 0 : index
    %2 = vector.load %arg1[%c0_2, %c0_3, %c0_4, %c0_5] : memref<1x4x4x128xf32, #tpu.memory_space<vmem>>, vector<1x4x4x128xf32>
    %3 = vector.shape_cast %2 : vector<1x4x4x128xf32> to vector<4x4x128xf32>
    %c1 = arith.constant 1 : index
    %c1_6 = arith.constant 1 : index
    %c0_7 = arith.constant 0 : index
    %4 = vector.load %arg11[%c1, %c1_6, %c0_7] : memref<6x6x256xf32, #tpu.memory_space<vmem>>, vector<4x4x128xf32>
    tpu.vector_store %arg11[%c1, %c1_6, %c0_7], %3 {strides = array<i32>} : memref<6x6x256xf32, #tpu.memory_space<vmem>>, vector<4x4x128xf32>,
    %c0_8 = arith.constant 0 : index
    %c0_9 = arith.constant 0 : index
    %c0_10 = arith.constant 0 : index
    %c0_11 = arith.constant 0 : index
    %5 = vector.load %arg2[%c0_8, %c0_9, %c0_10, %c0_11] : memref<1x4x4x128xf32, #tpu.memory_space<vmem>>, vector<1x4x4x128xf32>
    %6 = vector.shape_cast %5 : vector<1x4x4x128xf32> to vector<4x4x128xf32>
    %c1_12 = arith.constant 1 : index
    %c1_13 = arith.constant 1 : index
    %c128 = arith.constant 128 : index
    %7 = vector.load %arg11[%c1_12, %c1_13, %c128] : memref<6x6x256xf32, #tpu.memory_space<vmem>>, vector<4x4x128xf32>
    tpu.vector_store %arg11[%c1_12, %c1_13, %c128], %6 {strides = array<i32>} : memref<6x6x256xf32, #tpu.memory_space<vmem>>, vector<4x4x128xf32>,
    %c0_14 = arith.constant 0 : index
    %c0_15 = arith.constant 0 : index
    %8 = vector.load %arg7[%c0_14, %c0_15] : memref<1x256xf32, #tpu.memory_space<vmem>>, vector<1x256xf32>
    %9 = vector.shape_cast %8 : vector<1x256xf32> to vector<1x256xf32>
    %10 = vector.broadcast %9 : vector<1x256xf32> to vector<16x256xf32>
    %c0_16 = arith.constant 0 : index
    %c0_17 = arith.constant 0 : index
    %c0_18 = arith.constant 0 : index
    %11 = vector.load %arg11[%c0_16, %c0_17, %c0_18] : memref<6x6x256xf32, #tpu.memory_space<vmem>>, vector<4x4x256xf32>
    %12 = vector.shape_cast %11 : vector<4x4x256xf32> to vector<16x256xf32>
    %c0_19 = arith.constant 0 : index
    %c0_20 = arith.constant 0 : index
    %c0_21 = arith.constant 0 : index
    %13 = vector.load %arg6[%c0_19, %c0_20, %c0_21] : memref<9x256x256xf32, #tpu.memory_space<vmem>>, vector<1x256x256xf32>
    %14 = vector.shape_cast %13 : vector<1x256x256xf32> to vector<256x256xf32>
    %cst_22 = arith.constant dense<0.000000e+00> : vector<16x256xf32>
    %15 = tpu.matmul %12, %14, %cst_22 {dimension_numbers = #tpu.dot_dimension_numbers<[1], [0], [0], [1], [0, 0, 1, 1], [], []>} : vector<16x256xf32>, vector<256x256xf32>, vector<16x256xf32> -> vector<16x256xf32>
    %16 = arith.addf %10, %15 : vector<16x256xf32>
    %c0_23 = arith.constant 0 : index
    %c1_24 = arith.constant 1 : index
    %c0_25 = arith.constant 0 : index
    %17 = vector.load %arg11[%c0_23, %c1_24, %c0_25] : memref<6x6x256xf32, #tpu.memory_space<vmem>>, vector<4x4x256xf32>
    %18 = vector.shape_cast %17 : vector<4x4x256xf32> to vector<16x256xf32>
    %c1_26 = arith.constant 1 : index
    %c0_27 = arith.constant 0 : index
    %c0_28 = arith.constant 0 : index
    %19 = vector.load %arg6[%c1_26, %c0_27, %c0_28] : memref<9x256x256xf32, #tpu.memory_space<vmem>>, vector<1x256x256xf32>
    %20 = vector.shape_cast %19 : vector<1x256x256xf32> to vector<256x256xf32>
    %cst_29 = arith.constant dense<0.000000e+00> : vector<16x256xf32>
    %21 = tpu.matmul %18, %20, %cst_29 {dimension_numbers = #tpu.dot_dimension_numbers<[1], [0], [0], [1], [0, 0, 1, 1], [], []>} : vector<16x256xf32>, vector<256x256xf32>, vector<16x256xf32> -> vector<16x256xf32>
    %22 = arith.addf %16, %21 : vector<16x256xf32>
    %c0_30 = arith.constant 0 : index
    %c2 = arith.constant 2 : index
    %c0_31 = arith.constant 0 : index
    %23 = vector.load %arg11[%c0_30, %c2, %c0_31] : memref<6x6x256xf32, #tpu.memory_space<vmem>>, vector<4x4x256xf32>
    %24 = vector.shape_cast %23 : vector<4x4x256xf32> to vector<16x256xf32>
    %c2_32 = arith.constant 2 : index
    %c0_33 = arith.constant 0 : index
    %c0_34 = arith.constant 0 : index
    %25 = vector.load %arg6[%c2_32, %c0_33, %c0_34] : memref<9x256x256xf32, #tpu.memory_space<vmem>>, vector<1x256x256xf32>
    %26 = vector.shape_cast %25 : vector<1x256x256xf32> to vector<256x256xf32>
    %cst_35 = arith.constant dense<0.000000e+00> : vector<16x256xf32>
    %27 = tpu.matmul %24, %26, %cst_35 {dimension_numbers = #tpu.dot_dimension_numbers<[1], [0], [0], [1], [0, 0, 1, 1], [], []>} : vector<16x256xf32>, vector<256x256xf32>, vector<16x256xf32> -> vector<16x256xf32>
    %28 = arith.addf %22, %27 : vector<16x256xf32>
    %c1_36 = arith.constant 1 : index
    %c0_37 = arith.constant 0 : index
    %c0_38 = arith.constant 0 : index
    %29 = vector.load %arg11[%c1_36, %c0_37, %c0_38] : memref<6x6x256xf32, #tpu.memory_space<vmem>>, vector<4x4x256xf32>
    %30 = vector.shape_cast %29 : vector<4x4x256xf32> to vector<16x256xf32>
    %c3 = arith.constant 3 : index
    %c0_39 = arith.constant 0 : index
    %c0_40 = arith.constant 0 : index
    %31 = vector.load %arg6[%c3, %c0_39, %c0_40] : memref<9x256x256xf32, #tpu.memory_space<vmem>>, vector<1x256x256xf32>
    %32 = vector.shape_cast %31 : vector<1x256x256xf32> to vector<256x256xf32>
    %cst_41 = arith.constant dense<0.000000e+00> : vector<16x256xf32>
    %33 = tpu.matmul %30, %32, %cst_41 {dimension_numbers = #tpu.dot_dimension_numbers<[1], [0], [0], [1], [0, 0, 1, 1], [], []>} : vector<16x256xf32>, vector<256x256xf32>, vector<16x256xf32> -> vector<16x256xf32>
    %34 = arith.addf %28, %33 : vector<16x256xf32>
    %c1_42 = arith.constant 1 : index
    %c1_43 = arith.constant 1 : index
    %c0_44 = arith.constant 0 : index
    %35 = vector.load %arg11[%c1_42, %c1_43, %c0_44] : memref<6x6x256xf32, #tpu.memory_space<vmem>>, vector<4x4x256xf32>
    %36 = vector.shape_cast %35 : vector<4x4x256xf32> to vector<16x256xf32>
    %c4 = arith.constant 4 : index
    %c0_45 = arith.constant 0 : index
    %c0_46 = arith.constant 0 : index
    %37 = vector.load %arg6[%c4, %c0_45, %c0_46] : memref<9x256x256xf32, #tpu.memory_space<vmem>>, vector<1x256x256xf32>
    %38 = vector.shape_cast %37 : vector<1x256x256xf32> to vector<256x256xf32>
    %cst_47 = arith.constant dense<0.000000e+00> : vector<16x256xf32>
    %39 = tpu.matmul %36, %38, %cst_47 {dimension_numbers = #tpu.dot_dimension_numbers<[1], [0], [0], [1], [0, 0, 1, 1], [], []>} : vector<16x256xf32>, vector<256x256xf32>, vector<16x256xf32> -> vector<16x256xf32>
    %40 = arith.addf %34, %39 : vector<16x256xf32>
    %c1_48 = arith.constant 1 : index
    %c2_49 = arith.constant 2 : index
    %c0_50 = arith.constant 0 : index
    %41 = vector.load %arg11[%c1_48, %c2_49, %c0_50] : memref<6x6x256xf32, #tpu.memory_space<vmem>>, vector<4x4x256xf32>
    %42 = vector.shape_cast %41 : vector<4x4x256xf32> to vector<16x256xf32>
    %c5 = arith.constant 5 : index
    %c0_51 = arith.constant 0 : index
    %c0_52 = arith.constant 0 : index
    %43 = vector.load %arg6[%c5, %c0_51, %c0_52] : memref<9x256x256xf32, #tpu.memory_space<vmem>>, vector<1x256x256xf32>
    %44 = vector.shape_cast %43 : vector<1x256x256xf32> to vector<256x256xf32>
    %cst_53 = arith.constant dense<0.000000e+00> : vector<16x256xf32>
    %45 = tpu.matmul %42, %44, %cst_53 {dimension_numbers = #tpu.dot_dimension_numbers<[1], [0], [0], [1], [0, 0, 1, 1], [], []>} : vector<16x256xf32>, vector<256x256xf32>, vector<16x256xf32> -> vector<16x256xf32>
    %46 = arith.addf %40, %45 : vector<16x256xf32>
    %c2_54 = arith.constant 2 : index
    %c0_55 = arith.constant 0 : index
    %c0_56 = arith.constant 0 : index
    %47 = vector.load %arg11[%c2_54, %c0_55, %c0_56] : memref<6x6x256xf32, #tpu.memory_space<vmem>>, vector<4x4x256xf32>
    %48 = vector.shape_cast %47 : vector<4x4x256xf32> to vector<16x256xf32>
    %c6 = arith.constant 6 : index
    %c0_57 = arith.constant 0 : index
    %c0_58 = arith.constant 0 : index
    %49 = vector.load %arg6[%c6, %c0_57, %c0_58] : memref<9x256x256xf32, #tpu.memory_space<vmem>>, vector<1x256x256xf32>
    %50 = vector.shape_cast %49 : vector<1x256x256xf32> to vector<256x256xf32>
    %cst_59 = arith.constant dense<0.000000e+00> : vector<16x256xf32>
    %51 = tpu.matmul %48, %50, %cst_59 {dimension_numbers = #tpu.dot_dimension_numbers<[1], [0], [0], [1], [0, 0, 1, 1], [], []>} : vector<16x256xf32>, vector<256x256xf32>, vector<16x256xf32> -> vector<16x256xf32>
    %52 = arith.addf %46, %51 : vector<16x256xf32>
    %c2_60 = arith.constant 2 : index
    %c1_61 = arith.constant 1 : index
    %c0_62 = arith.constant 0 : index
    %53 = vector.load %arg11[%c2_60, %c1_61, %c0_62] : memref<6x6x256xf32, #tpu.memory_space<vmem>>, vector<4x4x256xf32>
    %54 = vector.shape_cast %53 : vector<4x4x256xf32> to vector<16x256xf32>
    %c7 = arith.constant 7 : index
    %c0_63 = arith.constant 0 : index
    %c0_64 = arith.constant 0 : index
    %55 = vector.load %arg6[%c7, %c0_63, %c0_64] : memref<9x256x256xf32, #tpu.memory_space<vmem>>, vector<1x256x256xf32>
    %56 = vector.shape_cast %55 : vector<1x256x256xf32> to vector<256x256xf32>
    %cst_65 = arith.constant dense<0.000000e+00> : vector<16x256xf32>
    %57 = tpu.matmul %54, %56, %cst_65 {dimension_numbers = #tpu.dot_dimension_numbers<[1], [0], [0], [1], [0, 0, 1, 1], [], []>} : vector<16x256xf32>, vector<256x256xf32>, vector<16x256xf32> -> vector<16x256xf32>
    %58 = arith.addf %52, %57 : vector<16x256xf32>
    %c2_66 = arith.constant 2 : index
    %c2_67 = arith.constant 2 : index
    %c0_68 = arith.constant 0 : index
    %59 = vector.load %arg11[%c2_66, %c2_67, %c0_68] : memref<6x6x256xf32, #tpu.memory_space<vmem>>, vector<4x4x256xf32>
    %60 = vector.shape_cast %59 : vector<4x4x256xf32> to vector<16x256xf32>
    %c8 = arith.constant 8 : index
    %c0_69 = arith.constant 0 : index
    %c0_70 = arith.constant 0 : index
    %61 = vector.load %arg6[%c8, %c0_69, %c0_70] : memref<9x256x256xf32, #tpu.memory_space<vmem>>, vector<1x256x256xf32>
    %62 = vector.shape_cast %61 : vector<1x256x256xf32> to vector<256x256xf32>
    %cst_71 = arith.constant dense<0.000000e+00> : vector<16x256xf32>
    %63 = tpu.matmul %60, %62, %cst_71 {dimension_numbers = #tpu.dot_dimension_numbers<[1], [0], [0], [1], [0, 0, 1, 1], [], []>} : vector<16x256xf32>, vector<256x256xf32>, vector<16x256xf32> -> vector<16x256xf32>
    %64 = arith.addf %58, %63 : vector<16x256xf32>
    %c0_72 = arith.constant 0 : index
    %c0_73 = arith.constant 0 : index
    %c0_74 = arith.constant 0 : index
    %c0_75 = arith.constant 0 : index
    %65 = vector.load %arg1[%c0_72, %c0_73, %c0_74, %c0_75] : memref<1x4x4x128xf32, #tpu.memory_space<vmem>>, vector<1x4x4x128xf32>
    %66 = vector.shape_cast %65 : vector<1x4x4x128xf32> to vector<4x4x128xf32>
    %67 = vector.shape_cast %66 : vector<4x4x128xf32> to vector<16x128xf32>
    %68 = vector.extract_strided_slice %64 {offsets = [0, 0], sizes = [16, 128], strides = [1, 1]} : vector<16x256xf32> to vector<16x128xf32>
    %c0_76 = arith.constant 0 : index
    %c0_77 = arith.constant 0 : index
    %c0_78 = arith.constant 0 : index
    %c0_79 = arith.constant 0 : index
    %69 = vector.load %arg3[%c0_76, %c0_77, %c0_78, %c0_79] : memref<1x4x4x128xf32, #tpu.memory_space<vmem>>, vector<1x4x4x128xf32>
    %70 = vector.shape_cast %69 : vector<1x4x4x128xf32> to vector<4x4x128xf32>
    %71 = vector.shape_cast %70 : vector<4x4x128xf32> to vector<16x128xf32>
    %72 = arith.addf %68, %71 : vector<16x128xf32>
    %73 = arith.negf %72 : vector<16x128xf32>
    %74 = math.exp %73 : vector<16x128xf32>
    %cst_80 = arith.constant 1.000000e+00 : f32
    %75 = vector.broadcast %cst_80 : f32 to vector<16x128xf32>
    %76 = arith.addf %75, %74 : vector<16x128xf32>
    %77 = arith.divf %75, %76 : vector<16x128xf32>
    %78 = vector.extract_strided_slice %64 {offsets = [0, 128], sizes = [16, 128], strides = [1, 1]} : vector<16x256xf32> to vector<16x128xf32>
    %c0_81 = arith.constant 0 : index
    %c0_82 = arith.constant 0 : index
    %c0_83 = arith.constant 0 : index
    %c0_84 = arith.constant 0 : index
    %79 = vector.load %arg4[%c0_81, %c0_82, %c0_83, %c0_84] : memref<1x4x4x128xf32, #tpu.memory_space<vmem>>, vector<1x4x4x128xf32>
    %80 = vector.shape_cast %79 : vector<1x4x4x128xf32> to vector<4x4x128xf32>
    %81 = vector.shape_cast %80 : vector<4x4x128xf32> to vector<16x128xf32>
    %82 = arith.addf %78, %81 : vector<16x128xf32>
    %83 = arith.negf %82 : vector<16x128xf32>
    %84 = math.exp %83 : vector<16x128xf32>
    %cst_85 = arith.constant 1.000000e+00 : f32
    %85 = vector.broadcast %cst_85 : f32 to vector<16x128xf32>
    %86 = arith.addf %85, %84 : vector<16x128xf32>
    %87 = arith.divf %85, %86 : vector<16x128xf32>
    %88 = arith.mulf %87, %67 : vector<16x128xf32>
    %89 = vector.shape_cast %88 : vector<16x128xf32> to vector<4x4x128xf32>
    %c1_86 = arith.constant 1 : index
    %c1_87 = arith.constant 1 : index
    %c0_88 = arith.constant 0 : index
    %90 = vector.load %arg11[%c1_86, %c1_87, %c0_88] : memref<6x6x256xf32, #tpu.memory_space<vmem>>, vector<4x4x128xf32>
    tpu.vector_store %arg11[%c1_86, %c1_87, %c0_88], %89 {strides = array<i32>} : memref<6x6x256xf32, #tpu.memory_space<vmem>>, vector<4x4x128xf32>,
    %c0_89 = arith.constant 0 : index
    %c0_90 = arith.constant 0 : index
    %91 = vector.load %arg9[%c0_89, %c0_90] : memref<1x128xf32, #tpu.memory_space<vmem>>, vector<1x128xf32>
    %92 = vector.shape_cast %91 : vector<1x128xf32> to vector<1x128xf32>
    %93 = vector.broadcast %92 : vector<1x128xf32> to vector<16x128xf32>
    %c0_91 = arith.constant 0 : index
    %c0_92 = arith.constant 0 : index
    %c0_93 = arith.constant 0 : index
    %94 = vector.load %arg11[%c0_91, %c0_92, %c0_93] : memref<6x6x256xf32, #tpu.memory_space<vmem>>, vector<4x4x256xf32>
    %95 = vector.shape_cast %94 : vector<4x4x256xf32> to vector<16x256xf32>
    %c0_94 = arith.constant 0 : index
    %c0_95 = arith.constant 0 : index
    %c0_96 = arith.constant 0 : index
    %96 = vector.load %arg8[%c0_94, %c0_95, %c0_96] : memref<9x256x128xf32, #tpu.memory_space<vmem>>, vector<1x256x128xf32>
    %97 = vector.shape_cast %96 : vector<1x256x128xf32> to vector<256x128xf32>
    %cst_97 = arith.constant dense<0.000000e+00> : vector<16x128xf32>
    %98 = tpu.matmul %95, %97, %cst_97 {dimension_numbers = #tpu.dot_dimension_numbers<[1], [0], [0], [1], [0, 0, 1, 1], [], []>} : vector<16x256xf32>, vector<256x128xf32>, vector<16x128xf32> -> vector<16x128xf32>
    %99 = arith.addf %93, %98 : vector<16x128xf32>
    %c0_98 = arith.constant 0 : index
    %c1_99 = arith.constant 1 : index
    %c0_100 = arith.constant 0 : index
    %100 = vector.load %arg11[%c0_98, %c1_99, %c0_100] : memref<6x6x256xf32, #tpu.memory_space<vmem>>, vector<4x4x256xf32>
    %101 = vector.shape_cast %100 : vector<4x4x256xf32> to vector<16x256xf32>
    %c1_101 = arith.constant 1 : index
    %c0_102 = arith.constant 0 : index
    %c0_103 = arith.constant 0 : index
    %102 = vector.load %arg8[%c1_101, %c0_102, %c0_103] : memref<9x256x128xf32, #tpu.memory_space<vmem>>, vector<1x256x128xf32>
    %103 = vector.shape_cast %102 : vector<1x256x128xf32> to vector<256x128xf32>
    %cst_104 = arith.constant dense<0.000000e+00> : vector<16x128xf32>
    %104 = tpu.matmul %101, %103, %cst_104 {dimension_numbers = #tpu.dot_dimension_numbers<[1], [0], [0], [1], [0, 0, 1, 1], [], []>} : vector<16x256xf32>, vector<256x128xf32>, vector<16x128xf32> -> vector<16x128xf32>
    %105 = arith.addf %99, %104 : vector<16x128xf32>
    %c0_105 = arith.constant 0 : index
    %c2_106 = arith.constant 2 : index
    %c0_107 = arith.constant 0 : index
    %106 = vector.load %arg11[%c0_105, %c2_106, %c0_107] : memref<6x6x256xf32, #tpu.memory_space<vmem>>, vector<4x4x256xf32>
    %107 = vector.shape_cast %106 : vector<4x4x256xf32> to vector<16x256xf32>
    %c2_108 = arith.constant 2 : index
    %c0_109 = arith.constant 0 : index
    %c0_110 = arith.constant 0 : index
    %108 = vector.load %arg8[%c2_108, %c0_109, %c0_110] : memref<9x256x128xf32, #tpu.memory_space<vmem>>, vector<1x256x128xf32>
    %109 = vector.shape_cast %108 : vector<1x256x128xf32> to vector<256x128xf32>
    %cst_111 = arith.constant dense<0.000000e+00> : vector<16x128xf32>
    %110 = tpu.matmul %107, %109, %cst_111 {dimension_numbers = #tpu.dot_dimension_numbers<[1], [0], [0], [1], [0, 0, 1, 1], [], []>} : vector<16x256xf32>, vector<256x128xf32>, vector<16x128xf32> -> vector<16x128xf32>
    %111 = arith.addf %105, %110 : vector<16x128xf32>
    %c1_112 = arith.constant 1 : index
    %c0_113 = arith.constant 0 : index
    %c0_114 = arith.constant 0 : index
    %112 = vector.load %arg11[%c1_112, %c0_113, %c0_114] : memref<6x6x256xf32, #tpu.memory_space<vmem>>, vector<4x4x256xf32>
    %113 = vector.shape_cast %112 : vector<4x4x256xf32> to vector<16x256xf32>
    %c3_115 = arith.constant 3 : index
    %c0_116 = arith.constant 0 : index
    %c0_117 = arith.constant 0 : index
    %114 = vector.load %arg8[%c3_115, %c0_116, %c0_117] : memref<9x256x128xf32, #tpu.memory_space<vmem>>, vector<1x256x128xf32>
    %115 = vector.shape_cast %114 : vector<1x256x128xf32> to vector<256x128xf32>
    %cst_118 = arith.constant dense<0.000000e+00> : vector<16x128xf32>
    %116 = tpu.matmul %113, %115, %cst_118 {dimension_numbers = #tpu.dot_dimension_numbers<[1], [0], [0], [1], [0, 0, 1, 1], [], []>} : vector<16x256xf32>, vector<256x128xf32>, vector<16x128xf32> -> vector<16x128xf32>
    %117 = arith.addf %111, %116 : vector<16x128xf32>
    %c1_119 = arith.constant 1 : index
    %c1_120 = arith.constant 1 : index
    %c0_121 = arith.constant 0 : index
    %118 = vector.load %arg11[%c1_119, %c1_120, %c0_121] : memref<6x6x256xf32, #tpu.memory_space<vmem>>, vector<4x4x256xf32>
    %119 = vector.shape_cast %118 : vector<4x4x256xf32> to vector<16x256xf32>
    %c4_122 = arith.constant 4 : index
    %c0_123 = arith.constant 0 : index
    %c0_124 = arith.constant 0 : index
    %120 = vector.load %arg8[%c4_122, %c0_123, %c0_124] : memref<9x256x128xf32, #tpu.memory_space<vmem>>, vector<1x256x128xf32>
    %121 = vector.shape_cast %120 : vector<1x256x128xf32> to vector<256x128xf32>
    %cst_125 = arith.constant dense<0.000000e+00> : vector<16x128xf32>
    %122 = tpu.matmul %119, %121, %cst_125 {dimension_numbers = #tpu.dot_dimension_numbers<[1], [0], [0], [1], [0, 0, 1, 1], [], []>} : vector<16x256xf32>, vector<256x128xf32>, vector<16x128xf32> -> vector<16x128xf32>
    %123 = arith.addf %117, %122 : vector<16x128xf32>
    %c1_126 = arith.constant 1 : index
    %c2_127 = arith.constant 2 : index
    %c0_128 = arith.constant 0 : index
    %124 = vector.load %arg11[%c1_126, %c2_127, %c0_128] : memref<6x6x256xf32, #tpu.memory_space<vmem>>, vector<4x4x256xf32>
    %125 = vector.shape_cast %124 : vector<4x4x256xf32> to vector<16x256xf32>
    %c5_129 = arith.constant 5 : index
    %c0_130 = arith.constant 0 : index
    %c0_131 = arith.constant 0 : index
    %126 = vector.load %arg8[%c5_129, %c0_130, %c0_131] : memref<9x256x128xf32, #tpu.memory_space<vmem>>, vector<1x256x128xf32>
    %127 = vector.shape_cast %126 : vector<1x256x128xf32> to vector<256x128xf32>
    %cst_132 = arith.constant dense<0.000000e+00> : vector<16x128xf32>
    %128 = tpu.matmul %125, %127, %cst_132 {dimension_numbers = #tpu.dot_dimension_numbers<[1], [0], [0], [1], [0, 0, 1, 1], [], []>} : vector<16x256xf32>, vector<256x128xf32>, vector<16x128xf32> -> vector<16x128xf32>
    %129 = arith.addf %123, %128 : vector<16x128xf32>
    %c2_133 = arith.constant 2 : index
    %c0_134 = arith.constant 0 : index
    %c0_135 = arith.constant 0 : index
    %130 = vector.load %arg11[%c2_133, %c0_134, %c0_135] : memref<6x6x256xf32, #tpu.memory_space<vmem>>, vector<4x4x256xf32>
    %131 = vector.shape_cast %130 : vector<4x4x256xf32> to vector<16x256xf32>
    %c6_136 = arith.constant 6 : index
    %c0_137 = arith.constant 0 : index
    %c0_138 = arith.constant 0 : index
    %132 = vector.load %arg8[%c6_136, %c0_137, %c0_138] : memref<9x256x128xf32, #tpu.memory_space<vmem>>, vector<1x256x128xf32>
    %133 = vector.shape_cast %132 : vector<1x256x128xf32> to vector<256x128xf32>
    %cst_139 = arith.constant dense<0.000000e+00> : vector<16x128xf32>
    %134 = tpu.matmul %131, %133, %cst_139 {dimension_numbers = #tpu.dot_dimension_numbers<[1], [0], [0], [1], [0, 0, 1, 1], [], []>} : vector<16x256xf32>, vector<256x128xf32>, vector<16x128xf32> -> vector<16x128xf32>
    %135 = arith.addf %129, %134 : vector<16x128xf32>
    %c2_140 = arith.constant 2 : index
    %c1_141 = arith.constant 1 : index
    %c0_142 = arith.constant 0 : index
    %136 = vector.load %arg11[%c2_140, %c1_141, %c0_142] : memref<6x6x256xf32, #tpu.memory_space<vmem>>, vector<4x4x256xf32>
    %137 = vector.shape_cast %136 : vector<4x4x256xf32> to vector<16x256xf32>
    %c7_143 = arith.constant 7 : index
    %c0_144 = arith.constant 0 : index
    %c0_145 = arith.constant 0 : index
    %138 = vector.load %arg8[%c7_143, %c0_144, %c0_145] : memref<9x256x128xf32, #tpu.memory_space<vmem>>, vector<1x256x128xf32>
    %139 = vector.shape_cast %138 : vector<1x256x128xf32> to vector<256x128xf32>
    %cst_146 = arith.constant dense<0.000000e+00> : vector<16x128xf32>
    %140 = tpu.matmul %137, %139, %cst_146 {dimension_numbers = #tpu.dot_dimension_numbers<[1], [0], [0], [1], [0, 0, 1, 1], [], []>} : vector<16x256xf32>, vector<256x128xf32>, vector<16x128xf32> -> vector<16x128xf32>
    %141 = arith.addf %135, %140 : vector<16x128xf32>
    %c2_147 = arith.constant 2 : index
    %c2_148 = arith.constant 2 : index
    %c0_149 = arith.constant 0 : index
    %142 = vector.load %arg11[%c2_147, %c2_148, %c0_149] : memref<6x6x256xf32, #tpu.memory_space<vmem>>, vector<4x4x256xf32>
    %143 = vector.shape_cast %142 : vector<4x4x256xf32> to vector<16x256xf32>
    %c8_150 = arith.constant 8 : index
    %c0_151 = arith.constant 0 : index
    %c0_152 = arith.constant 0 : index
    %144 = vector.load %arg8[%c8_150, %c0_151, %c0_152] : memref<9x256x128xf32, #tpu.memory_space<vmem>>, vector<1x256x128xf32>
    %145 = vector.shape_cast %144 : vector<1x256x128xf32> to vector<256x128xf32>
    %cst_153 = arith.constant dense<0.000000e+00> : vector<16x128xf32>
    %146 = tpu.matmul %143, %145, %cst_153 {dimension_numbers = #tpu.dot_dimension_numbers<[1], [0], [0], [1], [0, 0, 1, 1], [], []>} : vector<16x256xf32>, vector<256x128xf32>, vector<16x128xf32> -> vector<16x128xf32>
    %147 = arith.addf %141, %146 : vector<16x128xf32>
    %c0_154 = arith.constant 0 : index
    %c0_155 = arith.constant 0 : index
    %c0_156 = arith.constant 0 : index
    %c0_157 = arith.constant 0 : index
    %148 = vector.load %arg5[%c0_154, %c0_155, %c0_156, %c0_157] : memref<1x4x4x128xf32, #tpu.memory_space<vmem>>, vector<1x4x4x128xf32>
    %149 = vector.shape_cast %148 : vector<1x4x4x128xf32> to vector<4x4x128xf32>
    %150 = vector.shape_cast %149 : vector<4x4x128xf32> to vector<16x128xf32>
    %151 = arith.addf %147, %150 : vector<16x128xf32>
    %152 = math.tanh %151 : vector<16x128xf32>
    %cst_158 = arith.constant 1.000000e+00 : f32
    %153 = vector.broadcast %cst_158 : f32 to vector<16x128xf32>
    %154 = arith.subf %153, %77 : vector<16x128xf32>
    %155 = arith.mulf %154, %67 : vector<16x128xf32>
    %156 = arith.mulf %77, %152 : vector<16x128xf32>
    %157 = arith.addf %155, %156 : vector<16x128xf32>
    %158 = vector.shape_cast %157 : vector<16x128xf32> to vector<4x4x128xf32>
    %c0_159 = arith.constant 0 : index
    %c0_160 = arith.constant 0 : index
    %c0_161 = arith.constant 0 : index
    %c0_162 = arith.constant 0 : index
    %159 = vector.load %arg10[%c0_159, %c0_160, %c0_161, %c0_162] : memref<1x4x4x128xf32, #tpu.memory_space<vmem>>, vector<1x4x4x128xf32>
    %160 = vector.shape_cast %159 : vector<1x4x4x128xf32> to vector<4x4x128xf32>
    %161 = vector.shape_cast %158 : vector<4x4x128xf32> to vector<1x4x4x128xf32>
    tpu.vector_store %arg10[%c0_159, %c0_160, %c0_161, %c0_162], %161 {strides = array<i32>} : memref<1x4x4x128xf32, #tpu.memory_space<vmem>>, vector<1x4x4x128xf32>,
    return
  }
  func.func @transform_0(%arg0: i32) -> (i32, i32, i32, i32) {
    %c0_i32 = arith.constant 0 : i32
    %c0_i32_0 = arith.constant 0 : i32
    %c0_i32_1 = arith.constant 0 : i32
    %c0_i32_2 = arith.constant 0 : i32
    return %arg0, %c0_i32, %c0_i32_0, %c0_i32_1 : i32, i32, i32, i32
  }
  func.func @transform_1(%arg0: i32) -> (i32, i32, i32, i32) {
    %c0_i32 = arith.constant 0 : i32
    %c0_i32_0 = arith.constant 0 : i32
    %c0_i32_1 = arith.constant 0 : i32
    %c0_i32_2 = arith.constant 0 : i32
    return %arg0, %c0_i32, %c0_i32_0, %c0_i32_1 : i32, i32, i32, i32
  }
  func.func @transform_2(%arg0: i32) -> (i32, i32, i32, i32) {
    %c0_i32 = arith.constant 0 : i32
    %c0_i32_0 = arith.constant 0 : i32
    %c0_i32_1 = arith.constant 0 : i32
    %c0_i32_2 = arith.constant 0 : i32
    return %arg0, %c0_i32, %c0_i32_0, %c0_i32_1 : i32, i32, i32, i32
  }
  func.func @transform_3(%arg0: i32) -> (i32, i32, i32, i32) {
    %c0_i32 = arith.constant 0 : i32
    %c0_i32_0 = arith.constant 0 : i32
    %c0_i32_1 = arith.constant 0 : i32
    %c0_i32_2 = arith.constant 0 : i32
    return %arg0, %c0_i32, %c0_i32_0, %c0_i32_1 : i32, i32, i32, i32
  }
  func.func @transform_4(%arg0: i32) -> (i32, i32, i32, i32) {
    %c0_i32 = arith.constant 0 : i32
    %c0_i32_0 = arith.constant 0 : i32
    %c0_i32_1 = arith.constant 0 : i32
    %c0_i32_2 = arith.constant 0 : i32
    return %arg0, %c0_i32, %c0_i32_0, %c0_i32_1 : i32, i32, i32, i32
  }
  func.func @transform_5(%arg0: i32) -> (i32, i32, i32) {
    %c0_i32 = arith.constant 0 : i32
    %c0_i32_0 = arith.constant 0 : i32
    %c0_i32_1 = arith.constant 0 : i32
    %c0_i32_2 = arith.constant 0 : i32
    return %c0_i32, %c0_i32_0, %c0_i32_1 : i32, i32, i32
  }
  func.func @transform_6(%arg0: i32) -> (i32, i32) {
    %c0_i32 = arith.constant 0 : i32
    %c0_i32_0 = arith.constant 0 : i32
    %c0_i32_1 = arith.constant 0 : i32
    return %c0_i32, %c0_i32_0 : i32, i32
  }
  func.func @transform_7(%arg0: i32) -> (i32, i32, i32) {
    %c0_i32 = arith.constant 0 : i32
    %c0_i32_0 = arith.constant 0 : i32
    %c0_i32_1 = arith.constant 0 : i32
    %c0_i32_2 = arith.constant 0 : i32
    return %c0_i32, %c0_i32_0, %c0_i32_1 : i32, i32, i32
  }
  func.func @transform_8(%arg0: i32) -> (i32, i32) {
    %c0_i32 = arith.constant 0 : i32
    %c0_i32_0 = arith.constant 0 : i32
    %c0_i32_1 = arith.constant 0 : i32
    return %c0_i32, %c0_i32_0 : i32, i32
  }
  func.func @transform_9(%arg0: i32) -> (i32, i32, i32, i32) {
    %c0_i32 = arith.constant 0 : i32
    %c0_i32_0 = arith.constant 0 : i32
    %c0_i32_1 = arith.constant 0 : i32
    %c0_i32_2 = arith.constant 0 : i32
    return %arg0, %c0_i32, %c0_i32_0, %c0_i32_1 : i32, i32, i32, i32
  }
}

</mosaic_0001>

<llo_original>
// kernel: tpu_custom_call.1
$region0: #{tpu_custom_call.1}
  #allocation0 [shape = 'u32[]', space=smem, size = 0x4, offset = 0x4, fixed_abs, tag = 'smem constant byte address 0x4 - core index']
  #allocation1 [shape = 'u32[144,128]{1,0:T(1,128)}', space=vmem, size = 0x12000, scoped, tag = 'internal scratch']
  #allocation2 [shape = 'f32[6,6,256]{2,1,0:T(8,128)}', space=vmem, size = 0xc000, scoped, tag = 'scratch operand']
  %s0 = inlined_call_operand.hbm [shape: f32[2,4,4,128], index: 0, kind: input, shape index: {}]
  %s1 = inlined_call_operand.hbm [shape: f32[2,4,4,128], index: 1, kind: input, shape index: {}]
  %s2 = inlined_call_operand.hbm [shape: f32[2,4,4,128], index: 2, kind: input, shape index: {}]
  %s3 = inlined_call_operand.hbm [shape: f32[2,4,4,128], index: 3, kind: input, shape index: {}]
  %s4 = inlined_call_operand.hbm [shape: f32[2,4,4,128], index: 4, kind: input, shape index: {}]
  %s5 = inlined_call_operand.hbm [shape: f32[9,256,256], index: 5, kind: input, shape index: {}]
  %s6 = inlined_call_operand.hbm [shape: f32[1,256], index: 6, kind: input, shape index: {}]
  %s7 = inlined_call_operand.hbm [shape: f32[9,256,128], index: 7, kind: input, shape index: {}]
  %s8 = inlined_call_operand.hbm [shape: f32[1,128], index: 8, kind: input, shape index: {}]
  %s9 = inlined_call_operand.hbm [shape: f32[2,4,4,128], index: 9, kind: output, shape index: {}]
  %s10 = sld [smem:[#allocation0]]
  $region105: #{tpu_custom_call.1} parent=0
    _
  %s12 = ssub.s32 1, %s10
  %s13 = scalar_select 0, %s12, %s10
  $region1: #{tpu_custom_call.1} parent=0
    #allocation3 [shape = 'u8[16384]{0}', space=vmem, size = 0x4000, scoped, tag = 'input window, operand 0']
    #allocation4 [shape = 's32[2]{0}', space=sflag, size = 0x8, scoped, tag = 'scoped memory for tpu_custom_call.1']
    #allocation5 [shape = 's32[2]{0}', space=sflag, size = 0x8, scoped, tag = 'scoped memory for tpu_custom_call.1']
    #allocation6 [shape = 'u8[16384]{0}', space=vmem, size = 0x4000, scoped, tag = 'input window, operand 1']
    #allocation7 [shape = 's32[2]{0}', space=sflag, size = 0x8, scoped, tag = 'scoped memory for tpu_custom_call.1']
    #allocation8 [shape = 'u8[16384]{0}', space=vmem, size = 0x4000, scoped, tag = 'input window, operand 2']
    #allocation9 [shape = 'u8[16384]{0}', space=vmem, size = 0x4000, scoped, tag = 'input window, operand 3']
    #allocation10 [shape = 's32[2]{0}', space=sflag, size = 0x8, scoped, tag = 'scoped memory for tpu_custom_call.1']
    #allocation11 [shape = 'u8[16384]{0}', space=vmem, size = 0x4000, scoped, tag = 'input window, operand 4']
    #allocation12 [shape = 'u8[2359296]{0}', space=vmem, size = 0x240000, scoped, tag = 'input window, operand 5, single buffered']
    #allocation13 [shape = 's32[1]{0}', space=sflag, size = 0x4, scoped, tag = 'scoped memory for tpu_custom_call.1']
    #allocation14 [shape = 'u8[1024]{0}', space=vmem, size = 0x400, scoped, tag = 'input window, operand 6, single buffered']
    #allocation15 [shape = 'u8[1179648]{0}', space=vmem, size = 0x120000, scoped, tag = 'input window, operand 7, single buffered']
    #allocation16 [shape = 's32[1]{0}', space=sflag, size = 0x4, scoped, tag = 'scoped memory for tpu_custom_call.1']
    #allocation17 [shape = 'u8[512]{0}', space=vmem, size = 0x400, scoped, tag = 'input window, operand 8, single buffered']
    #allocation18 [shape = 'u8[16384]{0}', space=vmem, size = 0x4000, scoped, tag = 'output window, operand 0']
    %14 = vsyncpa [#allocation4], 0
    %s15 = scalar_lea.sflag [#allocation4], 1
    %16 = vsyncpa %s15, 0
    %17 = vsyncpa [#allocation7], 0
    %s18 = scalar_lea.sflag [#allocation7], 1
    %19 = vsyncpa %s18, 0
    %20 = vsyncpa [#allocation10], 0
    %s21 = scalar_lea.sflag [#allocation10], 1
    %22 = vsyncpa %s21, 0
    %23 = vsyncpa [#allocation13], 0
    %24 = vsyncpa [#allocation16], 0
    %25 = vsyncpa [#allocation5], 0
    %s26 = scalar_lea.sflag [#allocation5], 1
    %27 = vsyncpa %s26, 0
    loop: start=0, step=1, limit=4
    $region2: #{tpu_custom_call.1} parent=1 // loop_pre_header
      _
    $region3: #{tpu_custom_call.1} parent=1 // loop_header
      %s29 = sphi 0, %s33
      %p30 = scmp.ge.s32.totalorder %s29, 4
      %s39 = sphi 0, %s41
      %s42 = sphi 0, %s39
      %s43 = sphi 0, %s42
      %s59 = sphi 0, %s43
      %s65 = sphi 0, %s67
      %s68 = sphi 0, %s65
      %s69 = sphi 0, %s68
      %s85 = sphi 0, %s69
      %s91 = sphi 0, %s93
      %s94 = sphi 0, %s91
      %s95 = sphi 0, %s94
      %s111 = sphi 0, %s95
      %s117 = sphi 0, %s119
      %s120 = sphi 0, %s117
      %s121 = sphi 0, %s120
      %s137 = sphi 0, %s121
      %s143 = sphi 0, %s145
      %s146 = sphi 0, %s143
      %s147 = sphi 0, %s146
      %s163 = sphi 0, %s147
      %s167 = sphi 0, %s167
      %s169 = sphi 0, %s167
      %s170 = sphi 0, %s169
      %s184 = sphi 0, %s170
      %s188 = sphi 0, %s188
      %s190 = sphi 0, %s188
      %s191 = sphi 0, %s190
      %s205 = sphi 0, %s191
      %s209 = sphi 0, %s209
      %s211 = sphi 0, %s209
      %s212 = sphi 0, %s211
      %s226 = sphi 0, %s212
      %s230 = sphi 0, %s230
      %s232 = sphi 0, %s230
      %s233 = sphi 0, %s232
      %s247 = sphi 0, %s233
      %s253 = sphi 0, %s255
      %s256 = sphi 0, %s253
      %s257 = sphi 0, %s256
      %s273 = sphi 0, %s257
    $region4: #{tpu_custom_call.1} parent=1 // loop_header_branch
      %32 = sbr.rel (%p30) target = $region8
    $region5: #{tpu_custom_call.1} parent=1 // loop_body
      %s34 = ssub.s32 %s29, 1
      %s35 = ssub.s32 %s29, 2
      %s36 = sadd.s32 %s29, 1
      %s37 = ssub.s32 %s29, %s36
      %p38 = scmp.eq.s32.totalorder %s37, 0
      %s40 = sadd.s32 %s39, 1
      %s41 = scalar_select %p38, %s39, %s40
      %p44 = pneg %p38
      %p45 = scmp.eq.s32.totalorder %s29, 1
      %p46 = por %p44, %p45
      %p47 = scmp.ne.s32.totalorder %s39, %s42
      %p48 = scmp.eq.s32.totalorder %s29, 0
      %p49 = por %p47, %p48
      %p50 = scmp.ne.s32.totalorder %s39, %s42
      %p51 = scmp.eq.s32.totalorder %s34, 1
      %p52 = por %p50, %p51
      %p53 = scmp.ne.s32.totalorder %s42, %s43
      %p54 = scmp.eq.s32.totalorder %s34, 0
      %p55 = por %p53, %p54
      %p56 = scmp.ne.s32.totalorder %s42, %s43
      %p57 = scmp.eq.s32.totalorder %s35, 1
      %p58 = por %p56, %p57
      %p60 = scmp.ne.s32.totalorder %s43, %s59
      %p61 = scmp.eq.s32.totalorder %s35, 0
      %p62 = por %p60, %p61
      %s63 = ssub.s32 %s29, %s36
      %p64 = scmp.eq.s32.totalorder %s63, 0
      %s66 = sadd.s32 %s65, 1
      %s67 = scalar_select %p64, %s65, %s66
      %p70 = pneg %p64
      %p71 = scmp.eq.s32.totalorder %s29, 1
      %p72 = por %p70, %p71
      %p73 = scmp.ne.s32.totalorder %s65, %s68
      %p74 = scmp.eq.s32.totalorder %s29, 0
      %p75 = por %p73, %p74
      %p76 = scmp.ne.s32.totalorder %s65, %s68
      %p77 = scmp.eq.s32.totalorder %s34, 1
      %p78 = por %p76, %p77
      %p79 = scmp.ne.s32.totalorder %s68, %s69
      %p80 = scmp.eq.s32.totalorder %s34, 0
      %p81 = por %p79, %p80
      %p82 = scmp.ne.s32.totalorder %s68, %s69
      %p83 = scmp.eq.s32.totalorder %s35, 1
      %p84 = por %p82, %p83
      %p86 = scmp.ne.s32.totalorder %s69, %s85
      %p87 = scmp.eq.s32.totalorder %s35, 0
      %p88 = por %p86, %p87
      %s89 = ssub.s32 %s29, %s36
      %p90 = scmp.eq.s32.totalorder %s89, 0
      %s92 = sadd.s32 %s91, 1
      %s93 = scalar_select %p90, %s91, %s92
      %p96 = pneg %p90
      %p97 = scmp.eq.s32.totalorder %s29, 1
      %p98 = por %p96, %p97
      %p99 = scmp.ne.s32.totalorder %s91, %s94
      %p100 = scmp.eq.s32.totalorder %s29, 0
      %p101 = por %p99, %p100
      %p102 = scmp.ne.s32.totalorder %s91, %s94
      %p103 = scmp.eq.s32.totalorder %s34, 1
      %p104 = por %p102, %p103
      %p105 = scmp.ne.s32.totalorder %s94, %s95
      %p106 = scmp.eq.s32.totalorder %s34, 0
      %p107 = por %p105, %p106
      %p108 = scmp.ne.s32.totalorder %s94, %s95
      %p109 = scmp.eq.s32.totalorder %s35, 1
      %p110 = por %p108, %p109
      %p112 = scmp.ne.s32.totalorder %s95, %s111
      %p113 = scmp.eq.s32.totalorder %s35, 0
      %p114 = por %p112, %p113
      %s115 = ssub.s32 %s29, %s36
      %p116 = scmp.eq.s32.totalorder %s115, 0
      %s118 = sadd.s32 %s117, 1
      %s119 = scalar_select %p116, %s117, %s118
      %p122 = pneg %p116
      %p123 = scmp.eq.s32.totalorder %s29, 1
      %p124 = por %p122, %p123
      %p125 = scmp.ne.s32.totalorder %s117, %s120
      %p126 = scmp.eq.s32.totalorder %s29, 0
      %p127 = por %p125, %p126
      %p128 = scmp.ne.s32.totalorder %s117, %s120
      %p129 = scmp.eq.s32.totalorder %s34, 1
      %p130 = por %p128, %p129
      %p131 = scmp.ne.s32.totalorder %s120, %s121
      %p132 = scmp.eq.s32.totalorder %s34, 0
      %p133 = por %p131, %p132
      %p134 = scmp.ne.s32.totalorder %s120, %s121
      %p135 = scmp.eq.s32.totalorder %s35, 1
      %p136 = por %p134, %p135
      %p138 = scmp.ne.s32.totalorder %s121, %s137
      %p139 = scmp.eq.s32.totalorder %s35, 0
      %p140 = por %p138, %p139
      %s141 = ssub.s32 %s29, %s36
      %p142 = scmp.eq.s32.totalorder %s141, 0
      %s144 = sadd.s32 %s143, 1
      %s145 = scalar_select %p142, %s143, %s144
      %p148 = pneg %p142
      %p149 = scmp.eq.s32.totalorder %s29, 1
      %p150 = por %p148, %p149
      %p151 = scmp.ne.s32.totalorder %s143, %s146
      %p152 = scmp.eq.s32.totalorder %s29, 0
      %p153 = por %p151, %p152
      %p154 = scmp.ne.s32.totalorder %s143, %s146
      %p155 = scmp.eq.s32.totalorder %s34, 1
      %p156 = por %p154, %p155
      %p157 = scmp.ne.s32.totalorder %s146, %s147
      %p158 = scmp.eq.s32.totalorder %s34, 0
      %p159 = por %p157, %p158
      %p160 = scmp.ne.s32.totalorder %s146, %s147
      %p161 = scmp.eq.s32.totalorder %s35, 1
      %p162 = por %p160, %p161
      %p164 = scmp.ne.s32.totalorder %s147, %s163
      %p165 = scmp.eq.s32.totalorder %s35, 0
      %p166 = por %p164, %p165
      %s168 = sadd.s32 %s167, 1
      %p171 = scmp.eq.s32.totalorder %s29, 1
      %p172 = scmp.ne.s32.totalorder %s167, %s169
      %p173 = scmp.eq.s32.totalorder %s29, 0
      %p174 = por %p172, %p173
      %p175 = scmp.ne.s32.totalorder %s167, %s169
      %p176 = scmp.eq.s32.totalorder %s34, 1
      %p177 = por %p175, %p176
      %p178 = scmp.ne.s32.totalorder %s169, %s170
      %p179 = scmp.eq.s32.totalorder %s34, 0
      %p180 = por %p178, %p179
      %p181 = scmp.ne.s32.totalorder %s169, %s170
      %p182 = scmp.eq.s32.totalorder %s35, 1
      %p183 = por %p181, %p182
      %p185 = scmp.ne.s32.totalorder %s170, %s184
      %p186 = scmp.eq.s32.totalorder %s35, 0
      %p187 = por %p185, %p186
      %s189 = sadd.s32 %s188, 1
      %p192 = scmp.eq.s32.totalorder %s29, 1
      %p193 = scmp.ne.s32.totalorder %s188, %s190
      %p194 = scmp.eq.s32.totalorder %s29, 0
      %p195 = por %p193, %p194
      %p196 = scmp.ne.s32.totalorder %s188, %s190
      %p197 = scmp.eq.s32.totalorder %s34, 1
      %p198 = por %p196, %p197
      %p199 = scmp.ne.s32.totalorder %s190, %s191
      %p200 = scmp.eq.s32.totalorder %s34, 0
      %p201 = por %p199, %p200
      %p202 = scmp.ne.s32.totalorder %s190, %s191
      %p203 = scmp.eq.s32.totalorder %s35, 1
      %p204 = por %p202, %p203
      %p206 = scmp.ne.s32.totalorder %s191, %s205
      %p207 = scmp.eq.s32.totalorder %s35, 0
      %p208 = por %p206, %p207
      %s210 = sadd.s32 %s209, 1
      %p213 = scmp.eq.s32.totalorder %s29, 1
      %p214 = scmp.ne.s32.totalorder %s209, %s211
      %p215 = scmp.eq.s32.totalorder %s29, 0
      %p216 = por %p214, %p215
      %p217 = scmp.ne.s32.totalorder %s209, %s211
      %p218 = scmp.eq.s32.totalorder %s34, 1
      %p219 = por %p217, %p218
      %p220 = scmp.ne.s32.totalorder %s211, %s212
      %p221 = scmp.eq.s32.totalorder %s34, 0
      %p222 = por %p220, %p221
      %p223 = scmp.ne.s32.totalorder %s211, %s212
      %p224 = scmp.eq.s32.totalorder %s35, 1
      %p225 = por %p223, %p224
      %p227 = scmp.ne.s32.totalorder %s212, %s226
      %p228 = scmp.eq.s32.totalorder %s35, 0
      %p229 = por %p227, %p228
      %s231 = sadd.s32 %s230, 1
      %p234 = scmp.eq.s32.totalorder %s29, 1
      %p235 = scmp.ne.s32.totalorder %s230, %s232
      %p236 = scmp.eq.s32.totalorder %s29, 0
      %p237 = por %p235, %p236
      %p238 = scmp.ne.s32.totalorder %s230, %s232
      %p239 = scmp.eq.s32.totalorder %s34, 1
      %p240 = por %p238, %p239
      %p241 = scmp.ne.s32.totalorder %s232, %s233
      %p242 = scmp.eq.s32.totalorder %s34, 0
      %p243 = por %p241, %p242
      %p244 = scmp.ne.s32.totalorder %s232, %s233
      %p245 = scmp.eq.s32.totalorder %s35, 1
      %p246 = por %p244, %p245
      %p248 = scmp.ne.s32.totalorder %s233, %s247
      %p249 = scmp.eq.s32.totalorder %s35, 0
      %p250 = por %p248, %p249
      %s251 = ssub.s32 %s29, %s36
      %p252 = scmp.eq.s32.totalorder %s251, 0
      %s254 = sadd.s32 %s253, 1
      %s255 = scalar_select %p252, %s253, %s254
      %p258 = pneg %p252
      %p259 = scmp.eq.s32.totalorder %s29, 1
      %p260 = por %p258, %p259
      %p261 = scmp.ne.s32.totalorder %s253, %s256
      %p262 = scmp.eq.s32.totalorder %s29, 0
      %p263 = por %p261, %p262
      %p264 = scmp.ne.s32.totalorder %s253, %s256
      %p265 = scmp.eq.s32.totalorder %s34, 1
      %p266 = por %p264, %p265
      %p267 = scmp.ne.s32.totalorder %s256, %s257
      %p268 = scmp.eq.s32.totalorder %s34, 0
      %p269 = por %p267, %p268
      %p270 = scmp.ne.s32.totalorder %s256, %s257
      %p271 = scmp.eq.s32.totalorder %s35, 1
      %p272 = por %p270, %p271
      %p274 = scmp.ne.s32.totalorder %s257, %s273
      %p275 = scmp.eq.s32.totalorder %s35, 0
      %p276 = por %p274, %p275
      %p277 = scmp.le.s32.totalorder 1, %s29
      %p278 = scmp.lt.s32.totalorder %s29, 3
      %p279 = pnand %p277, %p278
      %p280 = pneg %p279
      // Predicated region
      $region9: #{tpu_custom_call.1} parent=5 // pred_check
        _
      $region10: #{tpu_custom_call.1} parent=5 // pred_check_branch
        %282 = sbr.rel (%p279) target = $region12
      $region11: #{tpu_custom_call.1} parent=5 // pred_region
        %s283 = ssub.s32 %s29, 1
        // Predicated region
        $region13: #{tpu_custom_call.1} parent=11 // pred_check
          %p284 = pneg %p180
        $region14: #{tpu_custom_call.1} parent=11 // pred_check_branch
          %286 = sbr.rel (%p284) target = $region16
        $region15: #{tpu_custom_call.1} parent=11 // pred_region
          %s288 = ssub.s32 73728, 73728
          %289 = vsyncadd [#allocation13], %s288
          %s290 = sshll.u32 [#allocation12], 4
          %s291 = int_to_ptr.vmem [resolvable:$true] %s290
          %296 = dma.hbm_to_vmem [thread:$0]  %s5, 73728, %s291, [#allocation13], 256, 256, 16
        $region16: #{tpu_custom_call.1} parent=11 // pred_fallthru
          _
        // Predicated region
        $region17: #{tpu_custom_call.1} parent=11 // pred_check
          %p297 = pneg %p201
        $region18: #{tpu_custom_call.1} parent=11 // pred_check_branch
          %299 = sbr.rel (%p297) target = $region20
        $region19: #{tpu_custom_call.1} parent=11 // pred_region
          %s301 = ssub.s32 32, 32
          %302 = vsyncadd [#allocation13], %s301
          %s304 = sshll.u32 [#allocation14], 4
          %s305 = int_to_ptr.vmem [resolvable:$true] %s304
          %307 = dma.hbm_to_vmem [thread:$0]  %s6, 32, %s305, [#allocation13]
        $region20: #{tpu_custom_call.1} parent=11 // pred_fallthru
          _
        // Predicated region
        $region21: #{tpu_custom_call.1} parent=11 // pred_check
          %p308 = pneg %p222
        $region22: #{tpu_custom_call.1} parent=11 // pred_check_branch
          %310 = sbr.rel (%p308) target = $region24
        $region23: #{tpu_custom_call.1} parent=11 // pred_region
          %s312 = ssub.s32 36864, 36864
          %313 = vsyncadd [#allocation16], %s312
          %s314 = sshll.u32 [#allocation15], 4
          %s315 = int_to_ptr.vmem [resolvable:$true] %s314
          %320 = dma.hbm_to_vmem [thread:$0]  %s7, 36864, %s315, [#allocation16], 128, 128, 8
        $region24: #{tpu_custom_call.1} parent=11 // pred_fallthru
          _
        // Predicated region
        $region25: #{tpu_custom_call.1} parent=11 // pred_check
          %p321 = pneg %p243
        $region26: #{tpu_custom_call.1} parent=11 // pred_check_branch
          %323 = sbr.rel (%p321) target = $region28
        $region27: #{tpu_custom_call.1} parent=11 // pred_region
          %s325 = ssub.s32 16, 16
          %326 = vsyncadd [#allocation16], %s325
          %s328 = sshll.u32 [#allocation17], 4
          %s329 = int_to_ptr.vmem [resolvable:$true] %s328
          %331 = dma.hbm_to_vmem [thread:$0]  %s8, 16, %s329, [#allocation16]
        $region28: #{tpu_custom_call.1} parent=11 // pred_fallthru
          _
      $region12: #{tpu_custom_call.1} parent=5 // pred_fallthru
        _
      %p332 = scmp.lt.s32.totalorder %s29, 2
      // Predicated region
      $region29: #{tpu_custom_call.1} parent=5 // pred_check
        %p333 = pneg %p332
      $region30: #{tpu_custom_call.1} parent=5 // pred_check_branch
        %335 = sbr.rel (%p333) target = $region32
      $region31: #{tpu_custom_call.1} parent=5 // pred_region
        // Predicated region
        $region33: #{tpu_custom_call.1} parent=31 // pred_check
          %p336 = pneg %p49
        $region34: #{tpu_custom_call.1} parent=31 // pred_check_branch
          %338 = sbr.rel (%p336) target = $region36
        $region35: #{tpu_custom_call.1} parent=31 // pred_region
          %s339 = sand.u32 %s39, 1
          %s340 = scalar_lea.sflag [#allocation4], %s339
          %s341 = sand.u32 %s39, 1
          %s342 = smul.addr %s341, 16
          %s343 = scalar_lea.vmem [#allocation3], %s342
          %s345 = ssub.s32 256, 256
          %346 = vsyncadd %s340, %s345
          %s347 = smul.addr %s29, 4
          %s348 = smul.addr %s347, 64
          %s349 = scalar_lea.hbm %s0, %s348
          %s350 = sshll.u32 %s343, 4
          %s351 = int_to_ptr.vmem [resolvable:$true] %s350
          %356 = dma.hbm_to_vmem [thread:$0]  %s349, 256, %s351, %s340, 64, 64, 4
        $region36: #{tpu_custom_call.1} parent=31 // pred_fallthru
          _
        // Predicated region
        $region37: #{tpu_custom_call.1} parent=31 // pred_check
          %p357 = pneg %p75
        $region38: #{tpu_custom_call.1} parent=31 // pred_check_branch
          %359 = sbr.rel (%p357) target = $region40
        $region39: #{tpu_custom_call.1} parent=31 // pred_region
          %s360 = sand.u32 %s29, 1
          %s361 = scalar_lea.sflag [#allocation7], %s360
          %s362 = sand.u32 %s65, 1
          %s363 = smul.addr %s362, 16
          %s364 = scalar_lea.vmem [#allocation6], %s363
          %s366 = ssub.s32 256, 256
          %367 = vsyncadd %s361, %s366
          %s368 = smul.addr %s29, 4
          %s369 = smul.addr %s368, 64
          %s370 = scalar_lea.hbm %s1, %s369
          %s371 = sshll.u32 %s364, 4
          %s372 = int_to_ptr.vmem [resolvable:$true] %s371
          %377 = dma.hbm_to_vmem [thread:$0]  %s370, 256, %s372, %s361, 64, 64, 4
        $region40: #{tpu_custom_call.1} parent=31 // pred_fallthru
          _
        // Predicated region
        $region41: #{tpu_custom_call.1} parent=31 // pred_check
          %p378 = pneg %p101
        $region42: #{tpu_custom_call.1} parent=31 // pred_check_branch
          %380 = sbr.rel (%p378) target = $region44
        $region43: #{tpu_custom_call.1} parent=31 // pred_region
          %s381 = sand.u32 %s29, 1
          %s382 = scalar_lea.sflag [#allocation7], %s381
          %s383 = sand.u32 %s91, 1
          %s384 = smul.addr %s383, 16
          %s385 = scalar_lea.vmem [#allocation8], %s384
          %s387 = ssub.s32 256, 256
          %388 = vsyncadd %s382, %s387
          %s389 = smul.addr %s29, 4
          %s390 = smul.addr %s389, 64
          %s391 = scalar_lea.hbm %s2, %s390
          %s392 = sshll.u32 %s385, 4
          %s393 = int_to_ptr.vmem [resolvable:$true] %s392
          %398 = dma.hbm_to_vmem [thread:$0]  %s391, 256, %s393, %s382, 64, 64, 4
        $region44: #{tpu_custom_call.1} parent=31 // pred_fallthru
          _
        // Predicated region
        $region45: #{tpu_custom_call.1} parent=31 // pred_check
          %p399 = pneg %p127
        $region46: #{tpu_custom_call.1} parent=31 // pred_check_branch
          %401 = sbr.rel (%p399) target = $region48
        $region47: #{tpu_custom_call.1} parent=31 // pred_region
          %s402 = sand.u32 %s29, 1
          %s403 = scalar_lea.sflag [#allocation10], %s402
          %s404 = sand.u32 %s117, 1
          %s405 = smul.addr %s404, 16
          %s406 = scalar_lea.vmem [#allocation9], %s405
          %s408 = ssub.s32 256, 256
          %409 = vsyncadd %s403, %s408
          %s410 = smul.addr %s29, 4
          %s411 = smul.addr %s410, 64
          %s412 = scalar_lea.hbm %s3, %s411
          %s413 = sshll.u32 %s406, 4
          %s414 = int_to_ptr.vmem [resolvable:$true] %s413
          %419 = dma.hbm_to_vmem [thread:$0]  %s412, 256, %s414, %s403, 64, 64, 4
        $region48: #{tpu_custom_call.1} parent=31 // pred_fallthru
          _
        // Predicated region
        $region49: #{tpu_custom_call.1} parent=31 // pred_check
          %p420 = pneg %p153
        $region50: #{tpu_custom_call.1} parent=31 // pred_check_branch
          %422 = sbr.rel (%p420) target = $region52
        $region51: #{tpu_custom_call.1} parent=31 // pred_region
          %s423 = sand.u32 %s29, 1
          %s424 = scalar_lea.sflag [#allocation10], %s423
          %s425 = sand.u32 %s143, 1
          %s426 = smul.addr %s425, 16
          %s427 = scalar_lea.vmem [#allocation11], %s426
          %s429 = ssub.s32 256, 256
          %430 = vsyncadd %s424, %s429
          %s431 = smul.addr %s29, 4
          %s432 = smul.addr %s431, 64
          %s433 = scalar_lea.hbm %s4, %s432
          %s434 = sshll.u32 %s427, 4
          %s435 = int_to_ptr.vmem [resolvable:$true] %s434
          %440 = dma.hbm_to_vmem [thread:$0]  %s433, 256, %s435, %s424, 64, 64, 4
        $region52: #{tpu_custom_call.1} parent=31 // pred_fallthru
          _
      $region32: #{tpu_custom_call.1} parent=5 // pred_fallthru
        _
      %p441 = scmp.le.s32.totalorder 1, %s29
      %p442 = scmp.lt.s32.totalorder %s29, 3
      %p443 = pnand %p441, %p442
      %p444 = pneg %p443
      // Predicated region
      $region53: #{tpu_custom_call.1} parent=5 // pred_check
        _
      $region54: #{tpu_custom_call.1} parent=5 // pred_check_branch
        %446 = sbr.rel (%p443) target = $region56
      $region55: #{tpu_custom_call.1} parent=5 // pred_region
        %s447 = ssub.s32 %s29, 1
        %s448 = sand.u32 %s42, 1
        %s449 = scalar_lea.sflag [#allocation4], %s448
        %s450 = sand.u32 %s42, 1
        %s451 = smul.addr %s450, 16
        %s452 = scalar_lea.vmem [#allocation3], %s451
        // Predicated region
        $region57: #{tpu_custom_call.1} parent=55 // pred_check
          %p453 = pneg %p55
        $region58: #{tpu_custom_call.1} parent=55 // pred_check_branch
          %455 = sbr.rel (%p453) target = $region60
        $region59: #{tpu_custom_call.1} parent=55 // pred_region
          %456 = dma.done %s449, 256
        $region60: #{tpu_custom_call.1} parent=55 // pred_fallthru
          _
        %s457 = sand.u32 %s34, 1
        %s458 = scalar_lea.sflag [#allocation7], %s457
        %s459 = sand.u32 %s68, 1
        %s460 = smul.addr %s459, 16
        %s461 = scalar_lea.vmem [#allocation6], %s460
        // Predicated region
        $region61: #{tpu_custom_call.1} parent=55 // pred_check
          %p462 = pneg %p81
        $region62: #{tpu_custom_call.1} parent=55 // pred_check_branch
          %464 = sbr.rel (%p462) target = $region64
        $region63: #{tpu_custom_call.1} parent=55 // pred_region
          %465 = dma.done %s458, 256
        $region64: #{tpu_custom_call.1} parent=55 // pred_fallthru
          _
        %s466 = sand.u32 %s34, 1
        %s467 = scalar_lea.sflag [#allocation7], %s466
        %s468 = sand.u32 %s94, 1
        %s469 = smul.addr %s468, 16
        %s470 = scalar_lea.vmem [#allocation8], %s469
        // Predicated region
        $region65: #{tpu_custom_call.1} parent=55 // pred_check
          %p471 = pneg %p107
        $region66: #{tpu_custom_call.1} parent=55 // pred_check_branch
          %473 = sbr.rel (%p471) target = $region68
        $region67: #{tpu_custom_call.1} parent=55 // pred_region
          %474 = dma.done %s467, 256
        $region68: #{tpu_custom_call.1} parent=55 // pred_fallthru
          _
        %s475 = sand.u32 %s34, 1
        %s476 = scalar_lea.sflag [#allocation10], %s475
        %s477 = sand.u32 %s120, 1
        %s478 = smul.addr %s477, 16
        %s479 = scalar_lea.vmem [#allocation9], %s478
        // Predicated region
        $region69: #{tpu_custom_call.1} parent=55 // pred_check
          %p480 = pneg %p133
        $region70: #{tpu_custom_call.1} parent=55 // pred_check_branch
          %482 = sbr.rel (%p480) target = $region72
        $region71: #{tpu_custom_call.1} parent=55 // pred_region
          %483 = dma.done %s476, 256
        $region72: #{tpu_custom_call.1} parent=55 // pred_fallthru
          _
        %s484 = sand.u32 %s34, 1
        %s485 = scalar_lea.sflag [#allocation10], %s484
        %s486 = sand.u32 %s146, 1
        %s487 = smul.addr %s486, 16
        %s488 = scalar_lea.vmem [#allocation11], %s487
        // Predicated region
        $region73: #{tpu_custom_call.1} parent=55 // pred_check
          %p489 = pneg %p159
        $region74: #{tpu_custom_call.1} parent=55 // pred_check_branch
          %491 = sbr.rel (%p489) target = $region76
        $region75: #{tpu_custom_call.1} parent=55 // pred_region
          %492 = dma.done %s485, 256
        $region76: #{tpu_custom_call.1} parent=55 // pred_fallthru
          _
        // Predicated region
        $region77: #{tpu_custom_call.1} parent=55 // pred_check
          %p493 = pneg %p180
        $region78: #{tpu_custom_call.1} parent=55 // pred_check_branch
          %495 = sbr.rel (%p493) target = $region80
        $region79: #{tpu_custom_call.1} parent=55 // pred_region
          %496 = dma.done [#allocation13], 73728
        $region80: #{tpu_custom_call.1} parent=55 // pred_fallthru
          _
        // Predicated region
        $region81: #{tpu_custom_call.1} parent=55 // pred_check
          %p497 = pneg %p201
        $region82: #{tpu_custom_call.1} parent=55 // pred_check_branch
          %499 = sbr.rel (%p497) target = $region84
        $region83: #{tpu_custom_call.1} parent=55 // pred_region
          %500 = dma.done [#allocation13], 32
        $region84: #{tpu_custom_call.1} parent=55 // pred_fallthru
          _
        // Predicated region
        $region85: #{tpu_custom_call.1} parent=55 // pred_check
          %p501 = pneg %p222
        $region86: #{tpu_custom_call.1} parent=55 // pred_check_branch
          %503 = sbr.rel (%p501) target = $region88
        $region87: #{tpu_custom_call.1} parent=55 // pred_region
          %504 = dma.done [#allocation16], 36864
        $region88: #{tpu_custom_call.1} parent=55 // pred_fallthru
          _
        // Predicated region
        $region89: #{tpu_custom_call.1} parent=55 // pred_check
          %p505 = pneg %p243
        $region90: #{tpu_custom_call.1} parent=55 // pred_check_branch
          %507 = sbr.rel (%p505) target = $region92
        $region91: #{tpu_custom_call.1} parent=55 // pred_region
          %508 = dma.done [#allocation16], 16
        $region92: #{tpu_custom_call.1} parent=55 // pred_fallthru
          _
        %s509 = sand.u32 %s42, 1
        %s510 = scalar_lea.sflag [#allocation4], %s509
        %s511 = sand.u32 %s42, 1
        %s512 = smul.addr %s511, 16
        %s513 = scalar_lea.vmem [#allocation3], %s512
        %p514 = pneg %p55
        %p515 = pneg %p52
        %s516 = sand.u32 %s34, 1
        %s517 = scalar_lea.sflag [#allocation7], %s516
        %s518 = sand.u32 %s68, 1
        %s519 = smul.addr %s518, 16
        %s520 = scalar_lea.vmem [#allocation6], %s519
        %p521 = pneg %p81
        %p522 = pneg %p78
        %s523 = sand.u32 %s34, 1
        %s524 = scalar_lea.sflag [#allocation7], %s523
        %s525 = sand.u32 %s94, 1
        %s526 = smul.addr %s525, 16
        %s527 = scalar_lea.vmem [#allocation8], %s526
        %p528 = pneg %p107
        %p529 = pneg %p104
        %s530 = sand.u32 %s34, 1
        %s531 = scalar_lea.sflag [#allocation10], %s530
        %s532 = sand.u32 %s120, 1
        %s533 = smul.addr %s532, 16
        %s534 = scalar_lea.vmem [#allocation9], %s533
        %p535 = pneg %p133
        %p536 = pneg %p130
        %s537 = sand.u32 %s34, 1
        %s538 = scalar_lea.sflag [#allocation10], %s537
        %s539 = sand.u32 %s146, 1
        %s540 = smul.addr %s539, 16
        %s541 = scalar_lea.vmem [#allocation11], %s540
        %p542 = pneg %p159
        %p543 = pneg %p156
        %p544 = pneg %p180
        %p545 = pneg %p177
        %p546 = pneg %p201
        %p547 = pneg %p198
        %p548 = pneg %p222
        %p549 = pneg %p219
        %p550 = pneg %p243
        %p551 = pneg %p240
        %p552 = pneg %p269
        %p553 = pneg %p266
        %s554 = sand.u32 %s256, 1
        %s555 = scalar_lea.sflag [#allocation5], %s554
        %s556 = sand.u32 %s256, 1
        %s557 = smul.addr %s556, 16
        %s558 = scalar_lea.vmem [#allocation18], %s557
        %559 = vst [vmem:[#allocation2] sm:$0x3f] 0.0
        %560 = vst [vmem:[#allocation2 + $0x8] sm:$0x3f] 0.0
        %561 = vst [vmem:[#allocation2 + $0x10] sm:$0x3f] 0.0
        %562 = vst [vmem:[#allocation2 + $0x18] sm:$0x3f] 0.0
        %563 = vst [vmem:[#allocation2 + $0x20] sm:$0x3f] 0.0
        %564 = vst [vmem:[#allocation2 + $0x28] sm:$0x3f] 0.0
        %565 = vst [vmem:[#allocation2 + $0x30] sm:$0x3f] 0.0
        %566 = vst [vmem:[#allocation2 + $0x38] sm:$0x3f] 0.0
        %567 = vst [vmem:[#allocation2 + $0x40] sm:$0x3f] 0.0
        %568 = vst [vmem:[#allocation2 + $0x48] sm:$0x3f] 0.0
        %569 = vst [vmem:[#allocation2 + $0x50] sm:$0x3f] 0.0
        %570 = vst [vmem:[#allocation2 + $0x58] sm:$0x3f] 0.0
        %v571 = vld [vmem:[%s452] sm:$0xf]
        %v572 = vld [vmem:[%s452 + $0x4] sm:$0xf]
        %v573 = vld [vmem:[%s452 + $0x8] sm:$0xf]
        %v574 = vld [vmem:[%s452 + $0xc] sm:$0xf]
        %v579 = vrot.slane %v571, 7
        %v580 = vrot.slane %v572, 7
        %v581 = vrot.slane %v573, 7
        %v582 = vrot.slane %v574, 7
        %s587 = scalar_lea.vmem [#allocation2], 16
        %588 = vst [vmem:[%s587] sm:$0x1e] %v579
        %589 = vst [vmem:[%s587 + $0x10] sm:$0x1e] %v580
        %590 = vst [vmem:[%s587 + $0x20] sm:$0x1e] %v581
        %591 = vst [vmem:[%s587 + $0x30] sm:$0x1e] %v582
        %v592 = vld [vmem:[%s461] sm:$0xf]
        %v593 = vld [vmem:[%s461 + $0x4] sm:$0xf]
        %v594 = vld [vmem:[%s461 + $0x8] sm:$0xf]
        %v595 = vld [vmem:[%s461 + $0xc] sm:$0xf]
        %v600 = vrot.slane %v592, 7
        %v601 = vrot.slane %v593, 7
        %v602 = vrot.slane %v594, 7
        %v603 = vrot.slane %v595, 7
        %608 = vst [vmem:[%s587 + $0x8] sm:$0x1e] %v600
        %609 = vst [vmem:[%s587 + $0x18] sm:$0x1e] %v601
        %610 = vst [vmem:[%s587 + $0x28] sm:$0x1e] %v602
        %611 = vst [vmem:[%s587 + $0x38] sm:$0x1e] %v603
        %v612 = vld [vmem:[#allocation14] sm:$0x3]
        %v614 = vlaneseq
        %v615 = vshrl.u32 %v614, 7
        %v616 = vsub.s32 0, %v615
        %v617 = vrot.slane %v612, %v616
        %v618 = vlaneseq
        %v619 = vshrl.u32 %v618, 7
        %v620 = vsub.s32 1, %v619
        %v621 = vrot.slane %v612, %v620
        %v624 = vld [vmem:[#allocation2] sm:$0xf]
        %v625 = vld [vmem:[#allocation2 + $0x8] sm:$0xf]
        %v626 = vld [vmem:[#allocation2 + $0x10] sm:$0xf]
        %v627 = vld [vmem:[#allocation2 + $0x18] sm:$0xf]
        %v628 = vld [vmem:[#allocation2 + $0x20] sm:$0xf]
        %v629 = vld [vmem:[#allocation2 + $0x28] sm:$0xf]
        %v630 = vld [vmem:[#allocation2 + $0x30] sm:$0xf]
        %v631 = vld [vmem:[#allocation2 + $0x38] sm:$0xf]
        %v640 = vcombine.low %v624, %v625
        %v641 = vcombine.low %v626, %v627
        %v642 = vcombine.low %v628, %v629
        %v643 = vcombine.low %v630, %v631
        %v644 = vld [vmem:[#allocation12] sm:$0xff]
        %v645 = vld [vmem:[#allocation12 + $0x8] sm:$0xff]
        %v646 = vld [vmem:[#allocation12 + $0x10] sm:$0xff]
        %v647 = vld [vmem:[#allocation12 + $0x18] sm:$0xff]
        %v648 = vld [vmem:[#allocation12 + $0x20] sm:$0xff]
        %v649 = vld [vmem:[#allocation12 + $0x28] sm:$0xff]
        %v650 = vld [vmem:[#allocation12 + $0x30] sm:$0xff]
        %v651 = vld [vmem:[#allocation12 + $0x38] sm:$0xff]
        %v652 = vld [vmem:[#allocation12 + $0x40] sm:$0xff]
        %v653 = vld [vmem:[#allocation12 + $0x48] sm:$0xff]
        %v654 = vld [vmem:[#allocation12 + $0x50] sm:$0xff]
        %v655 = vld [vmem:[#allocation12 + $0x58] sm:$0xff]
        %v656 = vld [vmem:[#allocation12 + $0x60] sm:$0xff]
        %v657 = vld [vmem:[#allocation12 + $0x68] sm:$0xff]
        %v658 = vld [vmem:[#allocation12 + $0x70] sm:$0xff]
        %v659 = vld [vmem:[#allocation12 + $0x78] sm:$0xff]
        %v660 = vld [vmem:[#allocation12 + $0x80] sm:$0xff]
        %v661 = vld [vmem:[#allocation12 + $0x88] sm:$0xff]
        %v662 = vld [vmem:[#allocation12 + $0x90] sm:$0xff]
        %v663 = vld [vmem:[#allocation12 + $0x98] sm:$0xff]
        %v664 = vld [vmem:[#allocation12 + $0xa0] sm:$0xff]
        %v665 = vld [vmem:[#allocation12 + $0xa8] sm:$0xff]
        %v666 = vld [vmem:[#allocation12 + $0xb0] sm:$0xff]
        %v667 = vld [vmem:[#allocation12 + $0xb8] sm:$0xff]
        %v668 = vld [vmem:[#allocation12 + $0xc0] sm:$0xff]
        %v669 = vld [vmem:[#allocation12 + $0xc8] sm:$0xff]
        %v670 = vld [vmem:[#allocation12 + $0xd0] sm:$0xff]
        %v671 = vld [vmem:[#allocation12 + $0xd8] sm:$0xff]
        %v672 = vld [vmem:[#allocation12 + $0xe0] sm:$0xff]
        %v673 = vld [vmem:[#allocation12 + $0xe8] sm:$0xff]
        %v674 = vld [vmem:[#allocation12 + $0xf0] sm:$0xff]
        %v675 = vld [vmem:[#allocation12 + $0xf8] sm:$0xff]
        %v676 = vld [vmem:[#allocation12 + $0x100] sm:$0xff]
        %v677 = vld [vmem:[#allocation12 + $0x108] sm:$0xff]
        %v678 = vld [vmem:[#allocation12 + $0x110] sm:$0xff]
        %v679 = vld [vmem:[#allocation12 + $0x118] sm:$0xff]
        %v680 = vld [vmem:[#allocation12 + $0x120] sm:$0xff]
        %v681 = vld [vmem:[#allocation12 + $0x128] sm:$0xff]
        %v682 = vld [vmem:[#allocation12 + $0x130] sm:$0xff]
        %v683 = vld [vmem:[#allocation12 + $0x138] sm:$0xff]
        %v684 = vld [vmem:[#allocation12 + $0x140] sm:$0xff]
        %v685 = vld [vmem:[#allocation12 + $0x148] sm:$0xff]
        %v686 = vld [vmem:[#allocation12 + $0x150] sm:$0xff]
        %v687 = vld [vmem:[#allocation12 + $0x158] sm:$0xff]
        %v688 = vld [vmem:[#allocation12 + $0x160] sm:$0xff]
        %v689 = vld [vmem:[#allocation12 + $0x168] sm:$0xff]
        %v690 = vld [vmem:[#allocation12 + $0x170] sm:$0xff]
        %v691 = vld [vmem:[#allocation12 + $0x178] sm:$0xff]
        %v692 = vld [vmem:[#allocation12 + $0x180] sm:$0xff]
        %v693 = vld [vmem:[#allocation12 + $0x188] sm:$0xff]
        %v694 = vld [vmem:[#allocation12 + $0x190] sm:$0xff]
        %v695 = vld [vmem:[#allocation12 + $0x198] sm:$0xff]
        %v696 = vld [vmem:[#allocation12 + $0x1a0] sm:$0xff]
        %v697 = vld [vmem:[#allocation12 + $0x1a8] sm:$0xff]
        %v698 = vld [vmem:[#allocation12 + $0x1b0] sm:$0xff]
        %v699 = vld [vmem:[#allocation12 + $0x1b8] sm:$0xff]
        %v700 = vld [vmem:[#allocation12 + $0x1c0] sm:$0xff]
        %v701 = vld [vmem:[#allocation12 + $0x1c8] sm:$0xff]
        %v702 = vld [vmem:[#allocation12 + $0x1d0] sm:$0xff]
        %v703 = vld [vmem:[#allocation12 + $0x1d8] sm:$0xff]
        %v704 = vld [vmem:[#allocation12 + $0x1e0] sm:$0xff]
        %v705 = vld [vmem:[#allocation12 + $0x1e8] sm:$0xff]
        %v706 = vld [vmem:[#allocation12 + $0x1f0] sm:$0xff]
        %v707 = vld [vmem:[#allocation12 + $0x1f8] sm:$0xff]
        %v708 = vcombine.low %v640, %v641
        %v709 = vcombine.high %v640, %v641
        %v710 = vcombine.low %v642, %v643
        %v711 = vcombine.high %v642, %v643
        %716 = vmatprep.subr.mxu0 %v675
        %717 = vmatpush1.msra.mxu0 %v674
        %718 = vmatprep.subr.mxu0 %v673
        %719 = vmatpush1.msra.mxu0 %v672
        %720 = vmatprep.subr.mxu0 %v671
        %721 = vmatpush1.msra.mxu0 %v670
        %722 = vmatprep.subr.mxu0 %v669
        %723 = vmatpush1.msra.mxu0 %v668
        %724 = vmatprep.subr.mxu0 %v667
        %725 = vmatpush1.msra.mxu0 %v666
        %726 = vmatprep.subr.mxu0 %v665
        %727 = vmatpush1.msra.mxu0 %v664
        %728 = vmatprep.subr.mxu0 %v663
        %729 = vmatpush1.msra.mxu0 %v662
        %730 = vmatprep.subr.mxu0 %v661
        %731 = vmatpush1.msra.mxu0 %v660
        %732 = vmatprep.subr.mxu0 %v659
        %733 = vmatpush1.msra.mxu0 %v658
        %734 = vmatprep.subr.mxu0 %v657
        %735 = vmatpush1.msra.mxu0 %v656
        %736 = vmatprep.subr.mxu0 %v655
        %737 = vmatpush1.msra.mxu0 %v654
        %738 = vmatprep.subr.mxu0 %v653
        %739 = vmatpush1.msra.mxu0 %v652
        %740 = vmatprep.subr.mxu0 %v651
        %741 = vmatpush1.msra.mxu0 %v650
        %742 = vmatprep.subr.mxu0 %v649
        %743 = vmatpush1.msra.mxu0 %v648
        %744 = vmatprep.subr.mxu0 %v647
        %745 = vmatpush1.msra.mxu0 %v646
        %746 = vmatprep.subr.mxu0 %v645
        %747 = vmatpush1.msra.mxu0 %v644
        %748 = vmatprep.subr.mxu0 %v707
        %749 = vmatpush2.msra.mxu0 %v706
        %750 = vmatprep.subr.mxu0 %v705
        %751 = vmatpush2.msra.mxu0 %v704
        %752 = vmatprep.subr.mxu0 %v703
        %753 = vmatpush2.msra.mxu0 %v702
        %754 = vmatprep.subr.mxu0 %v701
        %755 = vmatpush2.msra.mxu0 %v700
        %756 = vmatprep.subr.mxu0 %v699
        %757 = vmatpush2.msra.mxu0 %v698
        %758 = vmatprep.subr.mxu0 %v697
        %759 = vmatpush2.msra.mxu0 %v696
        %760 = vmatprep.subr.mxu0 %v695
        %761 = vmatpush2.msra.mxu0 %v694
        %762 = vmatprep.subr.mxu0 %v693
        %763 = vmatpush2.msra.mxu0 %v692
        %764 = vmatprep.subr.mxu0 %v691
        %765 = vmatpush2.msra.mxu0 %v690
        %766 = vmatprep.subr.mxu0 %v689
        %767 = vmatpush2.msra.mxu0 %v688
        %768 = vmatprep.subr.mxu0 %v687
        %769 = vmatpush2.msra.mxu0 %v686
        %770 = vmatprep.subr.mxu0 %v685
        %771 = vmatpush2.msra.mxu0 %v684
        %772 = vmatprep.subr.mxu0 %v683
        %773 = vmatpush2.msra.mxu0 %v682
        %774 = vmatprep.subr.mxu0 %v681
        %775 = vmatpush2.msra.mxu0 %v680
        %776 = vmatprep.subr.mxu0 %v679
        %777 = vmatpush2.msra.mxu0 %v678
        %778 = vmatprep.subr.mxu0 %v677
        %779 = vmatpush2.msra.mxu0 %v676
        %780 = vmatprep.mubr.f32.mxu0 %v709
        %781 = vmatmul.mubr.f32.gmra.mxu0 %v708
        %v782 = vpop.f32.mrf.mxu0
        %v783 = vadd.f32 0.0, %v782
        %v784 = vpop.f32.mrf.mxu0
        %v785 = vadd.f32 0.0, %v784
        %786 = vmatprep.mubr.f32.mxu0 %v711
        %787 = vmatmul.mubr.f32.gmra.mxu0 %v710
        %v788 = vpop.f32.mrf.mxu0
        %v789 = vadd.f32 0.0, %v788
        %v790 = vpop.f32.mrf.mxu0
        %v791 = vadd.f32 0.0, %v790
        %792 = vdwg.mxu0
        %v793 = vadd.f32 %v617, %v783
        %v794 = vadd.f32 %v621, %v785
        %v795 = vadd.f32 %v617, %v789
        %v796 = vadd.f32 %v621, %v791
        %v797 = vld [vmem:[#allocation2] sm:$0x1e]
        %v798 = vld [vmem:[#allocation2 + $0x8] sm:$0x1e]
        %v799 = vld [vmem:[#allocation2 + $0x10] sm:$0x1e]
        %v800 = vld [vmem:[#allocation2 + $0x18] sm:$0x1e]
        %v801 = vld [vmem:[#allocation2 + $0x20] sm:$0x1e]
        %v802 = vld [vmem:[#allocation2 + $0x28] sm:$0x1e]
        %v803 = vld [vmem:[#allocation2 + $0x30] sm:$0x1e]
        %v804 = vld [vmem:[#allocation2 + $0x38] sm:$0x1e]
        %v813 = vcombine.low %v797, %v798
        %v814 = vcombine.high %v797, %v798
        %v815 = vcombine.low %v799, %v800
        %v816 = vcombine.high %v799, %v800
        %v817 = vcombine.low %v801, %v802
        %v818 = vcombine.high %v801, %v802
        %v819 = vcombine.low %v803, %v804
        %v820 = vcombine.high %v803, %v804
        %vm821 = vcmask 1042432
        %vm822 = vcmask 1046532
        %vm823 = vmor %vm821, %vm822
        %v824 = vrot.slane %v813, 5
        %v825 = vrot.slane %v824, 4
        %v826 = vrot.slane %v814, 5
        %v827 = vsel %vm823, %v825, %v826
        %v828 = vrot.slane %v815, 5
        %v829 = vrot.slane %v828, 4
        %v830 = vrot.slane %v816, 5
        %v831 = vsel %vm823, %v829, %v830
        %v832 = vrot.slane %v817, 5
        %v833 = vrot.slane %v832, 4
        %v834 = vrot.slane %v818, 5
        %v835 = vsel %vm823, %v833, %v834
        %v836 = vrot.slane %v819, 5
        %v837 = vrot.slane %v836, 4
        %v838 = vrot.slane %v820, 5
        %v839 = vsel %vm823, %v837, %v838
        %s840 = scalar_lea.vmem [#allocation12], 512
        %v841 = vld [vmem:[%s840] sm:$0xff]
        %v842 = vld [vmem:[%s840 + $0x8] sm:$0xff]
        %v843 = vld [vmem:[%s840 + $0x10] sm:$0xff]
        %v844 = vld [vmem:[%s840 + $0x18] sm:$0xff]
        %v845 = vld [vmem:[%s840 + $0x20] sm:$0xff]
        %v846 = vld [vmem:[%s840 + $0x28] sm:$0xff]
        %v847 = vld [vmem:[%s840 + $0x30] sm:$0xff]
        %v848 = vld [vmem:[%s840 + $0x38] sm:$0xff]
        %v849 = vld [vmem:[%s840 + $0x40] sm:$0xff]
        %v850 = vld [vmem:[%s840 + $0x48] sm:$0xff]
        %v851 = vld [vmem:[%s840 + $0x50] sm:$0xff]
        %v852 = vld [vmem:[%s840 + $0x58] sm:$0xff]
        %v853 = vld [vmem:[%s840 + $0x60] sm:$0xff]
        %v854 = vld [vmem:[%s840 + $0x68] sm:$0xff]
        %v855 = vld [vmem:[%s840 + $0x70] sm:$0xff]
        %v856 = vld [vmem:[%s840 + $0x78] sm:$0xff]
        %v857 = vld [vmem:[%s840 + $0x80] sm:$0xff]
        %v858 = vld [vmem:[%s840 + $0x88] sm:$0xff]
        %v859 = vld [vmem:[%s840 + $0x90] sm:$0xff]
        %v860 = vld [vmem:[%s840 + $0x98] sm:$0xff]
        %v861 = vld [vmem:[%s840 + $0xa0] sm:$0xff]
        %v862 = vld [vmem:[%s840 + $0xa8] sm:$0xff]
        %v863 = vld [vmem:[%s840 + $0xb0] sm:$0xff]
        %v864 = vld [vmem:[%s840 + $0xb8] sm:$0xff]
        %v865 = vld [vmem:[%s840 + $0xc0] sm:$0xff]
        %v866 = vld [vmem:[%s840 + $0xc8] sm:$0xff]
        %v867 = vld [vmem:[%s840 + $0xd0] sm:$0xff]
        %v868 = vld [vmem:[%s840 + $0xd8] sm:$0xff]
        %v869 = vld [vmem:[%s840 + $0xe0] sm:$0xff]
        %v870 = vld [vmem:[%s840 + $0xe8] sm:$0xff]
        %v871 = vld [vmem:[%s840 + $0xf0] sm:$0xff]
        %v872 = vld [vmem:[%s840 + $0xf8] sm:$0xff]
        %v873 = vld [vmem:[%s840 + $0x100] sm:$0xff]
        %v874 = vld [vmem:[%s840 + $0x108] sm:$0xff]
        %v875 = vld [vmem:[%s840 + $0x110] sm:$0xff]
        %v876 = vld [vmem:[%s840 + $0x118] sm:$0xff]
        %v877 = vld [vmem:[%s840 + $0x120] sm:$0xff]
        %v878 = vld [vmem:[%s840 + $0x128] sm:$0xff]
        %v879 = vld [vmem:[%s840 + $0x130] sm:$0xff]
        %v880 = vld [vmem:[%s840 + $0x138] sm:$0xff]
        %v881 = vld [vmem:[%s840 + $0x140] sm:$0xff]
        %v882 = vld [vmem:[%s840 + $0x148] sm:$0xff]
        %v883 = vld [vmem:[%s840 + $0x150] sm:$0xff]
        %v884 = vld [vmem:[%s840 + $0x158] sm:$0xff]
        %v885 = vld [vmem:[%s840 + $0x160] sm:$0xff]
        %v886 = vld [vmem:[%s840 + $0x168] sm:$0xff]
        %v887 = vld [vmem:[%s840 + $0x170] sm:$0xff]
        %v888 = vld [vmem:[%s840 + $0x178] sm:$0xff]
        %v889 = vld [vmem:[%s840 + $0x180] sm:$0xff]
        %v890 = vld [vmem:[%s840 + $0x188] sm:$0xff]
        %v891 = vld [vmem:[%s840 + $0x190] sm:$0xff]
        %v892 = vld [vmem:[%s840 + $0x198] sm:$0xff]
        %v893 = vld [vmem:[%s840 + $0x1a0] sm:$0xff]
        %v894 = vld [vmem:[%s840 + $0x1a8] sm:$0xff]
        %v895 = vld [vmem:[%s840 + $0x1b0] sm:$0xff]
        %v896 = vld [vmem:[%s840 + $0x1b8] sm:$0xff]
        %v897 = vld [vmem:[%s840 + $0x1c0] sm:$0xff]
        %v898 = vld [vmem:[%s840 + $0x1c8] sm:$0xff]
        %v899 = vld [vmem:[%s840 + $0x1d0] sm:$0xff]
        %v900 = vld [vmem:[%s840 + $0x1d8] sm:$0xff]
        %v901 = vld [vmem:[%s840 + $0x1e0] sm:$0xff]
        %v902 = vld [vmem:[%s840 + $0x1e8] sm:$0xff]
        %v903 = vld [vmem:[%s840 + $0x1f0] sm:$0xff]
        %v904 = vld [vmem:[%s840 + $0x1f8] sm:$0xff]
        %v905 = vcombine.low %v827, %v831
        %v906 = vcombine.high %v827, %v831
        %v907 = vcombine.low %v835, %v839
        %v908 = vcombine.high %v835, %v839
        %913 = vmatprep.subr.mxu0 %v872
        %914 = vmatpush1.msra.mxu0 %v871
        %915 = vmatprep.subr.mxu0 %v870
        %916 = vmatpush1.msra.mxu0 %v869
        %917 = vmatprep.subr.mxu0 %v868
        %918 = vmatpush1.msra.mxu0 %v867
        %919 = vmatprep.subr.mxu0 %v866
        %920 = vmatpush1.msra.mxu0 %v865
        %921 = vmatprep.subr.mxu0 %v864
        %922 = vmatpush1.msra.mxu0 %v863
        %923 = vmatprep.subr.mxu0 %v862
        %924 = vmatpush1.msra.mxu0 %v861
        %925 = vmatprep.subr.mxu0 %v860
        %926 = vmatpush1.msra.mxu0 %v859
        %927 = vmatprep.subr.mxu0 %v858
        %928 = vmatpush1.msra.mxu0 %v857
        %929 = vmatprep.subr.mxu0 %v856
        %930 = vmatpush1.msra.mxu0 %v855
        %931 = vmatprep.subr.mxu0 %v854
        %932 = vmatpush1.msra.mxu0 %v853
        %933 = vmatprep.subr.mxu0 %v852
        %934 = vmatpush1.msra.mxu0 %v851
        %935 = vmatprep.subr.mxu0 %v850
        %936 = vmatpush1.msra.mxu0 %v849
        %937 = vmatprep.subr.mxu0 %v848
        %938 = vmatpush1.msra.mxu0 %v847
        %939 = vmatprep.subr.mxu0 %v846
        %940 = vmatpush1.msra.mxu0 %v845
        %941 = vmatprep.subr.mxu0 %v844
        %942 = vmatpush1.msra.mxu0 %v843
        %943 = vmatprep.subr.mxu0 %v842
        %944 = vmatpush1.msra.mxu0 %v841
        %945 = vmatprep.subr.mxu0 %v904
        %946 = vmatpush2.msra.mxu0 %v903
        %947 = vmatprep.subr.mxu0 %v902
        %948 = vmatpush2.msra.mxu0 %v901
        %949 = vmatprep.subr.mxu0 %v900
        %950 = vmatpush2.msra.mxu0 %v899
        %951 = vmatprep.subr.mxu0 %v898
        %952 = vmatpush2.msra.mxu0 %v897
        %953 = vmatprep.subr.mxu0 %v896
        %954 = vmatpush2.msra.mxu0 %v895
        %955 = vmatprep.subr.mxu0 %v894
        %956 = vmatpush2.msra.mxu0 %v893
        %957 = vmatprep.subr.mxu0 %v892
        %958 = vmatpush2.msra.mxu0 %v891
        %959 = vmatprep.subr.mxu0 %v890
        %960 = vmatpush2.msra.mxu0 %v889
        %961 = vmatprep.subr.mxu0 %v888
        %962 = vmatpush2.msra.mxu0 %v887
        %963 = vmatprep.subr.mxu0 %v886
        %964 = vmatpush2.msra.mxu0 %v885
        %965 = vmatprep.subr.mxu0 %v884
        %966 = vmatpush2.msra.mxu0 %v883
        %967 = vmatprep.subr.mxu0 %v882
        %968 = vmatpush2.msra.mxu0 %v881
        %969 = vmatprep.subr.mxu0 %v880
        %970 = vmatpush2.msra.mxu0 %v879
        %971 = vmatprep.subr.mxu0 %v878
        %972 = vmatpush2.msra.mxu0 %v877
        %973 = vmatprep.subr.mxu0 %v876
        %974 = vmatpush2.msra.mxu0 %v875
        %975 = vmatprep.subr.mxu0 %v874
        %976 = vmatpush2.msra.mxu0 %v873
        %977 = vmatprep.mubr.f32.mxu0 %v906
        %978 = vmatmul.mubr.f32.gmra.mxu0 %v905
        %v979 = vpop.f32.mrf.mxu0
        %v980 = vadd.f32 0.0, %v979
        %v981 = vpop.f32.mrf.mxu0
        %v982 = vadd.f32 0.0, %v981
        %983 = vmatprep.mubr.f32.mxu0 %v908
        %984 = vmatmul.mubr.f32.gmra.mxu0 %v907
        %v985 = vpop.f32.mrf.mxu0
        %v986 = vadd.f32 0.0, %v985
        %v987 = vpop.f32.mrf.mxu0
        %v988 = vadd.f32 0.0, %v987
        %989 = vdwg.mxu0
        %v990 = vadd.f32 %v793, %v980
        %v991 = vadd.f32 %v794, %v982
        %v992 = vadd.f32 %v795, %v986
        %v993 = vadd.f32 %v796, %v988
        %v994 = vld [vmem:[#allocation2] sm:$0x3c]
        %v995 = vld [vmem:[#allocation2 + $0x8] sm:$0x3c]
        %v996 = vld [vmem:[#allocation2 + $0x10] sm:$0x3c]
        %v997 = vld [vmem:[#allocation2 + $0x18] sm:$0x3c]
        %v998 = vld [vmem:[#allocation2 + $0x20] sm:$0x3c]
        %v999 = vld [vmem:[#allocation2 + $0x28] sm:$0x3c]
        %v1000 = vld [vmem:[#allocation2 + $0x30] sm:$0x3c]
        %v1001 = vld [vmem:[#allocation2 + $0x38] sm:$0x3c]
        %v1010 = vcombine.low %v994, %v995
        %v1011 = vcombine.high %v994, %v995
        %v1012 = vcombine.low %v996, %v997
        %v1013 = vcombine.high %v996, %v997
        %v1014 = vcombine.low %v998, %v999
        %v1015 = vcombine.high %v998, %v999
        %v1016 = vcombine.low %v1000, %v1001
        %v1017 = vcombine.high %v1000, %v1001
        %vm1018 = vcmask 1041408
        %vm1019 = vcmask 1045508
        %vm1020 = vmor %vm1018, %vm1019
        %v1021 = vrot.slane %v1010, 6
        %v1022 = vrot.slane %v1021, 4
        %v1023 = vrot.slane %v1011, 6
        %v1024 = vsel %vm1020, %v1022, %v1023
        %v1025 = vrot.slane %v1012, 6
        %v1026 = vrot.slane %v1025, 4
        %v1027 = vrot.slane %v1013, 6
        %v1028 = vsel %vm1020, %v1026, %v1027
        %v1029 = vrot.slane %v1014, 6
        %v1030 = vrot.slane %v1029, 4
        %v1031 = vrot.slane %v1015, 6
        %v1032 = vsel %vm1020, %v1030, %v1031
        %v1033 = vrot.slane %v1016, 6
        %v1034 = vrot.slane %v1033, 4
        %v1035 = vrot.slane %v1017, 6
        %v1036 = vsel %vm1020, %v1034, %v1035
        %s1037 = scalar_lea.vmem [#allocation12], 1024
        %v1038 = vld [vmem:[%s1037] sm:$0xff]
        %v1039 = vld [vmem:[%s1037 + $0x8] sm:$0xff]
        %v1040 = vld [vmem:[%s1037 + $0x10] sm:$0xff]
        %v1041 = vld [vmem:[%s1037 + $0x18] sm:$0xff]
        %v1042 = vld [vmem:[%s1037 + $0x20] sm:$0xff]
        %v1043 = vld [vmem:[%s1037 + $0x28] sm:$0xff]
        %v1044 = vld [vmem:[%s1037 + $0x30] sm:$0xff]
        %v1045 = vld [vmem:[%s1037 + $0x38] sm:$0xff]
        %v1046 = vld [vmem:[%s1037 + $0x40] sm:$0xff]
        %v1047 = vld [vmem:[%s1037 + $0x48] sm:$0xff]
        %v1048 = vld [vmem:[%s1037 + $0x50] sm:$0xff]
        %v1049 = vld [vmem:[%s1037 + $0x58] sm:$0xff]
        %v1050 = vld [vmem:[%s1037 + $0x60] sm:$0xff]
        %v1051 = vld [vmem:[%s1037 + $0x68] sm:$0xff]
        %v1052 = vld [vmem:[%s1037 + $0x70] sm:$0xff]
        %v1053 = vld [vmem:[%s1037 + $0x78] sm:$0xff]
        %v1054 = vld [vmem:[%s1037 + $0x80] sm:$0xff]
        %v1055 = vld [vmem:[%s1037 + $0x88] sm:$0xff]
        %v1056 = vld [vmem:[%s1037 + $0x90] sm:$0xff]
        %v1057 = vld [vmem:[%s1037 + $0x98] sm:$0xff]
        %v1058 = vld [vmem:[%s1037 + $0xa0] sm:$0xff]
        %v1059 = vld [vmem:[%s1037 + $0xa8] sm:$0xff]
        %v1060 = vld [vmem:[%s1037 + $0xb0] sm:$0xff]
        %v1061 = vld [vmem:[%s1037 + $0xb8] sm:$0xff]
        %v1062 = vld [vmem:[%s1037 + $0xc0] sm:$0xff]
        %v1063 = vld [vmem:[%s1037 + $0xc8] sm:$0xff]
        %v1064 = vld [vmem:[%s1037 + $0xd0] sm:$0xff]
        %v1065 = vld [vmem:[%s1037 + $0xd8] sm:$0xff]
        %v1066 = vld [vmem:[%s1037 + $0xe0] sm:$0xff]
        %v1067 = vld [vmem:[%s1037 + $0xe8] sm:$0xff]
        %v1068 = vld [vmem:[%s1037 + $0xf0] sm:$0xff]
        %v1069 = vld [vmem:[%s1037 + $0xf8] sm:$0xff]
        %v1070 = vld [vmem:[%s1037 + $0x100] sm:$0xff]
        %v1071 = vld [vmem:[%s1037 + $0x108] sm:$0xff]
        %v1072 = vld [vmem:[%s1037 + $0x110] sm:$0xff]
        %v1073 = vld [vmem:[%s1037 + $0x118] sm:$0xff]
        %v1074 = vld [vmem:[%s1037 + $0x120] sm:$0xff]
        %v1075 = vld [vmem:[%s1037 + $0x128] sm:$0xff]
        %v1076 = vld [vmem:[%s1037 + $0x130] sm:$0xff]
        %v1077 = vld [vmem:[%s1037 + $0x138] sm:$0xff]
        %v1078 = vld [vmem:[%s1037 + $0x140] sm:$0xff]
        %v1079 = vld [vmem:[%s1037 + $0x148] sm:$0xff]
        %v1080 = vld [vmem:[%s1037 + $0x150] sm:$0xff]
        %v1081 = vld [vmem:[%s1037 + $0x158] sm:$0xff]
        %v1082 = vld [vmem:[%s1037 + $0x160] sm:$0xff]
        %v1083 = vld [vmem:[%s1037 + $0x168] sm:$0xff]
        %v1084 = vld [vmem:[%s1037 + $0x170] sm:$0xff]
        %v1085 = vld [vmem:[%s1037 + $0x178] sm:$0xff]
        %v1086 = vld [vmem:[%s1037 + $0x180] sm:$0xff]
        %v1087 = vld [vmem:[%s1037 + $0x188] sm:$0xff]
        %v1088 = vld [vmem:[%s1037 + $0x190] sm:$0xff]
        %v1089 = vld [vmem:[%s1037 + $0x198] sm:$0xff]
        %v1090 = vld [vmem:[%s1037 + $0x1a0] sm:$0xff]
        %v1091 = vld [vmem:[%s1037 + $0x1a8] sm:$0xff]
        %v1092 = vld [vmem:[%s1037 + $0x1b0] sm:$0xff]
        %v1093 = vld [vmem:[%s1037 + $0x1b8] sm:$0xff]
        %v1094 = vld [vmem:[%s1037 + $0x1c0] sm:$0xff]
        %v1095 = vld [vmem:[%s1037 + $0x1c8] sm:$0xff]
        %v1096 = vld [vmem:[%s1037 + $0x1d0] sm:$0xff]
        %v1097 = vld [vmem:[%s1037 + $0x1d8] sm:$0xff]
        %v1098 = vld [vmem:[%s1037 + $0x1e0] sm:$0xff]
        %v1099 = vld [vmem:[%s1037 + $0x1e8] sm:$0xff]
        %v1100 = vld [vmem:[%s1037 + $0x1f0] sm:$0xff]
        %v1101 = vld [vmem:[%s1037 + $0x1f8] sm:$0xff]
        %v1102 = vcombine.low %v1024, %v1028
        %v1103 = vcombine.high %v1024, %v1028
        %v1104 = vcombine.low %v1032, %v1036
        %v1105 = vcombine.high %v1032, %v1036
        %1110 = vmatprep.subr.mxu0 %v1069
        %1111 = vmatpush1.msra.mxu0 %v1068
        %1112 = vmatprep.subr.mxu0 %v1067
        %1113 = vmatpush1.msra.mxu0 %v1066
        %1114 = vmatprep.subr.mxu0 %v1065
        %1115 = vmatpush1.msra.mxu0 %v1064
        %1116 = vmatprep.subr.mxu0 %v1063
        %1117 = vmatpush1.msra.mxu0 %v1062
        %1118 = vmatprep.subr.mxu0 %v1061
        %1119 = vmatpush1.msra.mxu0 %v1060
        %1120 = vmatprep.subr.mxu0 %v1059
        %1121 = vmatpush1.msra.mxu0 %v1058
        %1122 = vmatprep.subr.mxu0 %v1057
        %1123 = vmatpush1.msra.mxu0 %v1056
        %1124 = vmatprep.subr.mxu0 %v1055
        %1125 = vmatpush1.msra.mxu0 %v1054
        %1126 = vmatprep.subr.mxu0 %v1053
        %1127 = vmatpush1.msra.mxu0 %v1052
        %1128 = vmatprep.subr.mxu0 %v1051
        %1129 = vmatpush1.msra.mxu0 %v1050
        %1130 = vmatprep.subr.mxu0 %v1049
        %1131 = vmatpush1.msra.mxu0 %v1048
        %1132 = vmatprep.subr.mxu0 %v1047
        %1133 = vmatpush1.msra.mxu0 %v1046
        %1134 = vmatprep.subr.mxu0 %v1045
        %1135 = vmatpush1.msra.mxu0 %v1044
        %1136 = vmatprep.subr.mxu0 %v1043
        %1137 = vmatpush1.msra.mxu0 %v1042
        %1138 = vmatprep.subr.mxu0 %v1041
        %1139 = vmatpush1.msra.mxu0 %v1040
        %1140 = vmatprep.subr.mxu0 %v1039
        %1141 = vmatpush1.msra.mxu0 %v1038
        %1142 = vmatprep.subr.mxu0 %v1101
        %1143 = vmatpush2.msra.mxu0 %v1100
        %1144 = vmatprep.subr.mxu0 %v1099
        %1145 = vmatpush2.msra.mxu0 %v1098
        %1146 = vmatprep.subr.mxu0 %v1097
        %1147 = vmatpush2.msra.mxu0 %v1096
        %1148 = vmatprep.subr.mxu0 %v1095
        %1149 = vmatpush2.msra.mxu0 %v1094
        %1150 = vmatprep.subr.mxu0 %v1093
        %1151 = vmatpush2.msra.mxu0 %v1092
        %1152 = vmatprep.subr.mxu0 %v1091
        %1153 = vmatpush2.msra.mxu0 %v1090
        %1154 = vmatprep.subr.mxu0 %v1089
        %1155 = vmatpush2.msra.mxu0 %v1088
        %1156 = vmatprep.subr.mxu0 %v1087
        %1157 = vmatpush2.msra.mxu0 %v1086
        %1158 = vmatprep.subr.mxu0 %v1085
        %1159 = vmatpush2.msra.mxu0 %v1084
        %1160 = vmatprep.subr.mxu0 %v1083
        %1161 = vmatpush2.msra.mxu0 %v1082
        %1162 = vmatprep.subr.mxu0 %v1081
        %1163 = vmatpush2.msra.mxu0 %v1080
        %1164 = vmatprep.subr.mxu0 %v1079
        %1165 = vmatpush2.msra.mxu0 %v1078
        %1166 = vmatprep.subr.mxu0 %v1077
        %1167 = vmatpush2.msra.mxu0 %v1076
        %1168 = vmatprep.subr.mxu0 %v1075
        %1169 = vmatpush2.msra.mxu0 %v1074
        %1170 = vmatprep.subr.mxu0 %v1073
        %1171 = vmatpush2.msra.mxu0 %v1072
        %1172 = vmatprep.subr.mxu0 %v1071
        %1173 = vmatpush2.msra.mxu0 %v1070
        %1174 = vmatprep.mubr.f32.mxu0 %v1103
        %1175 = vmatmul.mubr.f32.gmra.mxu0 %v1102
        %v1176 = vpop.f32.mrf.mxu0
        %v1177 = vadd.f32 0.0, %v1176
        %v1178 = vpop.f32.mrf.mxu0
        %v1179 = vadd.f32 0.0, %v1178
        %1180 = vmatprep.mubr.f32.mxu0 %v1105
        %1181 = vmatmul.mubr.f32.gmra.mxu0 %v1104
        %v1182 = vpop.f32.mrf.mxu0
        %v1183 = vadd.f32 0.0, %v1182
        %v1184 = vpop.f32.mrf.mxu0
        %v1185 = vadd.f32 0.0, %v1184
        %1186 = vdwg.mxu0
        %v1187 = vadd.f32 %v990, %v1177
        %v1188 = vadd.f32 %v991, %v1179
        %v1189 = vadd.f32 %v992, %v1183
        %v1190 = vadd.f32 %v993, %v1185
        %v1191 = vld [vmem:[%s587] sm:$0xf]
        %v1192 = vld [vmem:[%s587 + $0x8] sm:$0xf]
        %v1193 = vld [vmem:[%s587 + $0x10] sm:$0xf]
        %v1194 = vld [vmem:[%s587 + $0x18] sm:$0xf]
        %v1195 = vld [vmem:[%s587 + $0x20] sm:$0xf]
        %v1196 = vld [vmem:[%s587 + $0x28] sm:$0xf]
        %v1197 = vld [vmem:[%s587 + $0x30] sm:$0xf]
        %v1198 = vld [vmem:[%s587 + $0x38] sm:$0xf]
        %v1207 = vcombine.low %v1191, %v1192
        %v1208 = vcombine.low %v1193, %v1194
        %v1209 = vcombine.low %v1195, %v1196
        %v1210 = vcombine.low %v1197, %v1198
        %s1211 = scalar_lea.vmem [#allocation12], 1536
        %v1212 = vld [vmem:[%s1211] sm:$0xff]
        %v1213 = vld [vmem:[%s1211 + $0x8] sm:$0xff]
        %v1214 = vld [vmem:[%s1211 + $0x10] sm:$0xff]
        %v1215 = vld [vmem:[%s1211 + $0x18] sm:$0xff]
        %v1216 = vld [vmem:[%s1211 + $0x20] sm:$0xff]
        %v1217 = vld [vmem:[%s1211 + $0x28] sm:$0xff]
        %v1218 = vld [vmem:[%s1211 + $0x30] sm:$0xff]
        %v1219 = vld [vmem:[%s1211 + $0x38] sm:$0xff]
        %v1220 = vld [vmem:[%s1211 + $0x40] sm:$0xff]
        %v1221 = vld [vmem:[%s1211 + $0x48] sm:$0xff]
        %v1222 = vld [vmem:[%s1211 + $0x50] sm:$0xff]
        %v1223 = vld [vmem:[%s1211 + $0x58] sm:$0xff]
        %v1224 = vld [vmem:[%s1211 + $0x60] sm:$0xff]
        %v1225 = vld [vmem:[%s1211 + $0x68] sm:$0xff]
        %v1226 = vld [vmem:[%s1211 + $0x70] sm:$0xff]
        %v1227 = vld [vmem:[%s1211 + $0x78] sm:$0xff]
        %v1228 = vld [vmem:[%s1211 + $0x80] sm:$0xff]
        %v1229 = vld [vmem:[%s1211 + $0x88] sm:$0xff]
        %v1230 = vld [vmem:[%s1211 + $0x90] sm:$0xff]
        %v1231 = vld [vmem:[%s1211 + $0x98] sm:$0xff]
        %v1232 = vld [vmem:[%s1211 + $0xa0] sm:$0xff]
        %v1233 = vld [vmem:[%s1211 + $0xa8] sm:$0xff]
        %v1234 = vld [vmem:[%s1211 + $0xb0] sm:$0xff]
        %v1235 = vld [vmem:[%s1211 + $0xb8] sm:$0xff]
        %v1236 = vld [vmem:[%s1211 + $0xc0] sm:$0xff]
        %v1237 = vld [vmem:[%s1211 + $0xc8] sm:$0xff]
        %v1238 = vld [vmem:[%s1211 + $0xd0] sm:$0xff]
        %v1239 = vld [vmem:[%s1211 + $0xd8] sm:$0xff]
        %v1240 = vld [vmem:[%s1211 + $0xe0] sm:$0xff]
        %v1241 = vld [vmem:[%s1211 + $0xe8] sm:$0xff]
        %v1242 = vld [vmem:[%s1211 + $0xf0] sm:$0xff]
        %v1243 = vld [vmem:[%s1211 + $0xf8] sm:$0xff]
        %v1244 = vld [vmem:[%s1211 + $0x100] sm:$0xff]
        %v1245 = vld [vmem:[%s1211 + $0x108] sm:$0xff]
        %v1246 = vld [vmem:[%s1211 + $0x110] sm:$0xff]
        %v1247 = vld [vmem:[%s1211 + $0x118] sm:$0xff]
        %v1248 = vld [vmem:[%s1211 + $0x120] sm:$0xff]
        %v1249 = vld [vmem:[%s1211 + $0x128] sm:$0xff]
        %v1250 = vld [vmem:[%s1211 + $0x130] sm:$0xff]
        %v1251 = vld [vmem:[%s1211 + $0x138] sm:$0xff]
        %v1252 = vld [vmem:[%s1211 + $0x140] sm:$0xff]
        %v1253 = vld [vmem:[%s1211 + $0x148] sm:$0xff]
        %v1254 = vld [vmem:[%s1211 + $0x150] sm:$0xff]
        %v1255 = vld [vmem:[%s1211 + $0x158] sm:$0xff]
        %v1256 = vld [vmem:[%s1211 + $0x160] sm:$0xff]
        %v1257 = vld [vmem:[%s1211 + $0x168] sm:$0xff]
        %v1258 = vld [vmem:[%s1211 + $0x170] sm:$0xff]
        %v1259 = vld [vmem:[%s1211 + $0x178] sm:$0xff]
        %v1260 = vld [vmem:[%s1211 + $0x180] sm:$0xff]
        %v1261 = vld [vmem:[%s1211 + $0x188] sm:$0xff]
        %v1262 = vld [vmem:[%s1211 + $0x190] sm:$0xff]
        %v1263 = vld [vmem:[%s1211 + $0x198] sm:$0xff]
        %v1264 = vld [vmem:[%s1211 + $0x1a0] sm:$0xff]
        %v1265 = vld [vmem:[%s1211 + $0x1a8] sm:$0xff]
        %v1266 = vld [vmem:[%s1211 + $0x1b0] sm:$0xff]
        %v1267 = vld [vmem:[%s1211 + $0x1b8] sm:$0xff]
        %v1268 = vld [vmem:[%s1211 + $0x1c0] sm:$0xff]
        %v1269 = vld [vmem:[%s1211 + $0x1c8] sm:$0xff]
        %v1270 = vld [vmem:[%s1211 + $0x1d0] sm:$0xff]
        %v1271 = vld [vmem:[%s1211 + $0x1d8] sm:$0xff]
        %v1272 = vld [vmem:[%s1211 + $0x1e0] sm:$0xff]
        %v1273 = vld [vmem:[%s1211 + $0x1e8] sm:$0xff]
        %v1274 = vld [vmem:[%s1211 + $0x1f0] sm:$0xff]
        %v1275 = vld [vmem:[%s1211 + $0x1f8] sm:$0xff]
        %v1276 = vcombine.low %v1207, %v1208
        %v1277 = vcombine.high %v1207, %v1208
        %v1278 = vcombine.low %v1209, %v1210
        %v1279 = vcombine.high %v1209, %v1210
        %1284 = vmatprep.subr.mxu0 %v1243
        %1285 = vmatpush1.msra.mxu0 %v1242
        %1286 = vmatprep.subr.mxu0 %v1241
        %1287 = vmatpush1.msra.mxu0 %v1240
        %1288 = vmatprep.subr.mxu0 %v1239
        %1289 = vmatpush1.msra.mxu0 %v1238
        %1290 = vmatprep.subr.mxu0 %v1237
        %1291 = vmatpush1.msra.mxu0 %v1236
        %1292 = vmatprep.subr.mxu0 %v1235
        %1293 = vmatpush1.msra.mxu0 %v1234
        %1294 = vmatprep.subr.mxu0 %v1233
        %1295 = vmatpush1.msra.mxu0 %v1232
        %1296 = vmatprep.subr.mxu0 %v1231
        %1297 = vmatpush1.msra.mxu0 %v1230
        %1298 = vmatprep.subr.mxu0 %v1229
        %1299 = vmatpush1.msra.mxu0 %v1228
        %1300 = vmatprep.subr.mxu0 %v1227
        %1301 = vmatpush1.msra.mxu0 %v1226
        %1302 = vmatprep.subr.mxu0 %v1225
        %1303 = vmatpush1.msra.mxu0 %v1224
        %1304 = vmatprep.subr.mxu0 %v1223
        %1305 = vmatpush1.msra.mxu0 %v1222
        %1306 = vmatprep.subr.mxu0 %v1221
        %1307 = vmatpush1.msra.mxu0 %v1220
        %1308 = vmatprep.subr.mxu0 %v1219
        %1309 = vmatpush1.msra.mxu0 %v1218
        %1310 = vmatprep.subr.mxu0 %v1217
        %1311 = vmatpush1.msra.mxu0 %v1216
        %1312 = vmatprep.subr.mxu0 %v1215
        %1313 = vmatpush1.msra.mxu0 %v1214
        %1314 = vmatprep.subr.mxu0 %v1213
        %1315 = vmatpush1.msra.mxu0 %v1212
        %1316 = vmatprep.subr.mxu0 %v1275
        %1317 = vmatpush2.msra.mxu0 %v1274
        %1318 = vmatprep.subr.mxu0 %v1273
        %1319 = vmatpush2.msra.mxu0 %v1272
        %1320 = vmatprep.subr.mxu0 %v1271
        %1321 = vmatpush2.msra.mxu0 %v1270
        %1322 = vmatprep.subr.mxu0 %v1269
        %1323 = vmatpush2.msra.mxu0 %v1268
        %1324 = vmatprep.subr.mxu0 %v1267
        %1325 = vmatpush2.msra.mxu0 %v1266
        %1326 = vmatprep.subr.mxu0 %v1265
        %1327 = vmatpush2.msra.mxu0 %v1264
        %1328 = vmatprep.subr.mxu0 %v1263
        %1329 = vmatpush2.msra.mxu0 %v1262
        %1330 = vmatprep.subr.mxu0 %v1261
        %1331 = vmatpush2.msra.mxu0 %v1260
        %1332 = vmatprep.subr.mxu0 %v1259
        %1333 = vmatpush2.msra.mxu0 %v1258
        %1334 = vmatprep.subr.mxu0 %v1257
        %1335 = vmatpush2.msra.mxu0 %v1256
        %1336 = vmatprep.subr.mxu0 %v1255
        %1337 = vmatpush2.msra.mxu0 %v1254
        %1338 = vmatprep.subr.mxu0 %v1253
        %1339 = vmatpush2.msra.mxu0 %v1252
        %1340 = vmatprep.subr.mxu0 %v1251
        %1341 = vmatpush2.msra.mxu0 %v1250
        %1342 = vmatprep.subr.mxu0 %v1249
        %1343 = vmatpush2.msra.mxu0 %v1248
        %1344 = vmatprep.subr.mxu0 %v1247
        %1345 = vmatpush2.msra.mxu0 %v1246
        %1346 = vmatprep.subr.mxu0 %v1245
        %1347 = vmatpush2.msra.mxu0 %v1244
        %1348 = vmatprep.mubr.f32.mxu0 %v1277
        %1349 = vmatmul.mubr.f32.gmra.mxu0 %v1276
        %v1350 = vpop.f32.mrf.mxu0
        %v1351 = vadd.f32 0.0, %v1350
        %v1352 = vpop.f32.mrf.mxu0
        %v1353 = vadd.f32 0.0, %v1352
        %1354 = vmatprep.mubr.f32.mxu0 %v1279
        %1355 = vmatmul.mubr.f32.gmra.mxu0 %v1278
        %v1356 = vpop.f32.mrf.mxu0
        %v1357 = vadd.f32 0.0, %v1356
        %v1358 = vpop.f32.mrf.mxu0
        %v1359 = vadd.f32 0.0, %v1358
        %1360 = vdwg.mxu0
        %v1361 = vadd.f32 %v1187, %v1351
        %v1362 = vadd.f32 %v1188, %v1353
        %v1363 = vadd.f32 %v1189, %v1357
        %v1364 = vadd.f32 %v1190, %v1359
        %v1365 = vld [vmem:[%s587] sm:$0x1e]
        %v1366 = vld [vmem:[%s587 + $0x8] sm:$0x1e]
        %v1367 = vld [vmem:[%s587 + $0x10] sm:$0x1e]
        %v1368 = vld [vmem:[%s587 + $0x18] sm:$0x1e]
        %v1369 = vld [vmem:[%s587 + $0x20] sm:$0x1e]
        %v1370 = vld [vmem:[%s587 + $0x28] sm:$0x1e]
        %v1371 = vld [vmem:[%s587 + $0x30] sm:$0x1e]
        %v1372 = vld [vmem:[%s587 + $0x38] sm:$0x1e]
        %v1381 = vcombine.low %v1365, %v1366
        %v1382 = vcombine.high %v1365, %v1366
        %v1383 = vcombine.low %v1367, %v1368
        %v1384 = vcombine.high %v1367, %v1368
        %v1385 = vcombine.low %v1369, %v1370
        %v1386 = vcombine.high %v1369, %v1370
        %v1387 = vcombine.low %v1371, %v1372
        %v1388 = vcombine.high %v1371, %v1372
        %v1389 = vrot.slane %v1381, 5
        %v1390 = vrot.slane %v1389, 4
        %v1391 = vrot.slane %v1382, 5
        %v1392 = vsel %vm823, %v1390, %v1391
        %v1393 = vrot.slane %v1383, 5
        %v1394 = vrot.slane %v1393, 4
        %v1395 = vrot.slane %v1384, 5
        %v1396 = vsel %vm823, %v1394, %v1395
        %v1397 = vrot.slane %v1385, 5
        %v1398 = vrot.slane %v1397, 4
        %v1399 = vrot.slane %v1386, 5
        %v1400 = vsel %vm823, %v1398, %v1399
        %v1401 = vrot.slane %v1387, 5
        %v1402 = vrot.slane %v1401, 4
        %v1403 = vrot.slane %v1388, 5
        %v1404 = vsel %vm823, %v1402, %v1403
        %s1405 = scalar_lea.vmem [#allocation12], 2048
        %v1406 = vld [vmem:[%s1405] sm:$0xff]
        %v1407 = vld [vmem:[%s1405 + $0x8] sm:$0xff]
        %v1408 = vld [vmem:[%s1405 + $0x10] sm:$0xff]
        %v1409 = vld [vmem:[%s1405 + $0x18] sm:$0xff]
        %v1410 = vld [vmem:[%s1405 + $0x20] sm:$0xff]
        %v1411 = vld [vmem:[%s1405 + $0x28] sm:$0xff]
        %v1412 = vld [vmem:[%s1405 + $0x30] sm:$0xff]
        %v1413 = vld [vmem:[%s1405 + $0x38] sm:$0xff]
        %v1414 = vld [vmem:[%s1405 + $0x40] sm:$0xff]
        %v1415 = vld [vmem:[%s1405 + $0x48] sm:$0xff]
        %v1416 = vld [vmem:[%s1405 + $0x50] sm:$0xff]
        %v1417 = vld [vmem:[%s1405 + $0x58] sm:$0xff]
        %v1418 = vld [vmem:[%s1405 + $0x60] sm:$0xff]
        %v1419 = vld [vmem:[%s1405 + $0x68] sm:$0xff]
        %v1420 = vld [vmem:[%s1405 + $0x70] sm:$0xff]
        %v1421 = vld [vmem:[%s1405 + $0x78] sm:$0xff]
        %v1422 = vld [vmem:[%s1405 + $0x80] sm:$0xff]
        %v1423 = vld [vmem:[%s1405 + $0x88] sm:$0xff]
        %v1424 = vld [vmem:[%s1405 + $0x90] sm:$0xff]
        %v1425 = vld [vmem:[%s1405 + $0x98] sm:$0xff]
        %v1426 = vld [vmem:[%s1405 + $0xa0] sm:$0xff]
        %v1427 = vld [vmem:[%s1405 + $0xa8] sm:$0xff]
        %v1428 = vld [vmem:[%s1405 + $0xb0] sm:$0xff]
        %v1429 = vld [vmem:[%s1405 + $0xb8] sm:$0xff]
        %v1430 = vld [vmem:[%s1405 + $0xc0] sm:$0xff]
        %v1431 = vld [vmem:[%s1405 + $0xc8] sm:$0xff]
        %v1432 = vld [vmem:[%s1405 + $0xd0] sm:$0xff]
        %v1433 = vld [vmem:[%s1405 + $0xd8] sm:$0xff]
        %v1434 = vld [vmem:[%s1405 + $0xe0] sm:$0xff]
        %v1435 = vld [vmem:[%s1405 + $0xe8] sm:$0xff]
        %v1436 = vld [vmem:[%s1405 + $0xf0] sm:$0xff]
        %v1437 = vld [vmem:[%s1405 + $0xf8] sm:$0xff]
        %v1438 = vld [vmem:[%s1405 + $0x100] sm:$0xff]
        %v1439 = vld [vmem:[%s1405 + $0x108] sm:$0xff]
        %v1440 = vld [vmem:[%s1405 + $0x110] sm:$0xff]
        %v1441 = vld [vmem:[%s1405 + $0x118] sm:$0xff]
        %v1442 = vld [vmem:[%s1405 + $0x120] sm:$0xff]
        %v1443 = vld [vmem:[%s1405 + $0x128] sm:$0xff]
        %v1444 = vld [vmem:[%s1405 + $0x130] sm:$0xff]
        %v1445 = vld [vmem:[%s1405 + $0x138] sm:$0xff]
        %v1446 = vld [vmem:[%s1405 + $0x140] sm:$0xff]
        %v1447 = vld [vmem:[%s1405 + $0x148] sm:$0xff]
        %v1448 = vld [vmem:[%s1405 + $0x150] sm:$0xff]
        %v1449 = vld [vmem:[%s1405 + $0x158] sm:$0xff]
        %v1450 = vld [vmem:[%s1405 + $0x160] sm:$0xff]
        %v1451 = vld [vmem:[%s1405 + $0x168] sm:$0xff]
        %v1452 = vld [vmem:[%s1405 + $0x170] sm:$0xff]
        %v1453 = vld [vmem:[%s1405 + $0x178] sm:$0xff]
        %v1454 = vld [vmem:[%s1405 + $0x180] sm:$0xff]
        %v1455 = vld [vmem:[%s1405 + $0x188] sm:$0xff]
        %v1456 = vld [vmem:[%s1405 + $0x190] sm:$0xff]
        %v1457 = vld [vmem:[%s1405 + $0x198] sm:$0xff]
        %v1458 = vld [vmem:[%s1405 + $0x1a0] sm:$0xff]
        %v1459 = vld [vmem:[%s1405 + $0x1a8] sm:$0xff]
        %v1460 = vld [vmem:[%s1405 + $0x1b0] sm:$0xff]
        %v1461 = vld [vmem:[%s1405 + $0x1b8] sm:$0xff]
        %v1462 = vld [vmem:[%s1405 + $0x1c0] sm:$0xff]
        %v1463 = vld [vmem:[%s1405 + $0x1c8] sm:$0xff]
        %v1464 = vld [vmem:[%s1405 + $0x1d0] sm:$0xff]
        %v1465 = vld [vmem:[%s1405 + $0x1d8] sm:$0xff]
        %v1466 = vld [vmem:[%s1405 + $0x1e0] sm:$0xff]
        %v1467 = vld [vmem:[%s1405 + $0x1e8] sm:$0xff]
        %v1468 = vld [vmem:[%s1405 + $0x1f0] sm:$0xff]
        %v1469 = vld [vmem:[%s1405 + $0x1f8] sm:$0xff]
        %v1470 = vcombine.low %v1392, %v1396
        %v1471 = vcombine.high %v1392, %v1396
        %v1472 = vcombine.low %v1400, %v1404
        %v1473 = vcombine.high %v1400, %v1404
        %1478 = vmatprep.subr.mxu0 %v1437
        %1479 = vmatpush1.msra.mxu0 %v1436
        %1480 = vmatprep.subr.mxu0 %v1435
        %1481 = vmatpush1.msra.mxu0 %v1434
        %1482 = vmatprep.subr.mxu0 %v1433
        %1483 = vmatpush1.msra.mxu0 %v1432
        %1484 = vmatprep.subr.mxu0 %v1431
        %1485 = vmatpush1.msra.mxu0 %v1430
        %1486 = vmatprep.subr.mxu0 %v1429
        %1487 = vmatpush1.msra.mxu0 %v1428
        %1488 = vmatprep.subr.mxu0 %v1427
        %1489 = vmatpush1.msra.mxu0 %v1426
        %1490 = vmatprep.subr.mxu0 %v1425
        %1491 = vmatpush1.msra.mxu0 %v1424
        %1492 = vmatprep.subr.mxu0 %v1423
        %1493 = vmatpush1.msra.mxu0 %v1422
        %1494 = vmatprep.subr.mxu0 %v1421
        %1495 = vmatpush1.msra.mxu0 %v1420
        %1496 = vmatprep.subr.mxu0 %v1419
        %1497 = vmatpush1.msra.mxu0 %v1418
        %1498 = vmatprep.subr.mxu0 %v1417
        %1499 = vmatpush1.msra.mxu0 %v1416
        %1500 = vmatprep.subr.mxu0 %v1415
        %1501 = vmatpush1.msra.mxu0 %v1414
        %1502 = vmatprep.subr.mxu0 %v1413
        %1503 = vmatpush1.msra.mxu0 %v1412
        %1504 = vmatprep.subr.mxu0 %v1411
        %1505 = vmatpush1.msra.mxu0 %v1410
        %1506 = vmatprep.subr.mxu0 %v1409
        %1507 = vmatpush1.msra.mxu0 %v1408
        %1508 = vmatprep.subr.mxu0 %v1407
        %1509 = vmatpush1.msra.mxu0 %v1406
        %1510 = vmatprep.subr.mxu0 %v1469
        %1511 = vmatpush2.msra.mxu0 %v1468
        %1512 = vmatprep.subr.mxu0 %v1467
        %1513 = vmatpush2.msra.mxu0 %v1466
        %1514 = vmatprep.subr.mxu0 %v1465
        %1515 = vmatpush2.msra.mxu0 %v1464
        %1516 = vmatprep.subr.mxu0 %v1463
        %1517 = vmatpush2.msra.mxu0 %v1462
        %1518 = vmatprep.subr.mxu0 %v1461
        %1519 = vmatpush2.msra.mxu0 %v1460
        %1520 = vmatprep.subr.mxu0 %v1459
        %1521 = vmatpush2.msra.mxu0 %v1458
        %1522 = vmatprep.subr.mxu0 %v1457
        %1523 = vmatpush2.msra.mxu0 %v1456
        %1524 = vmatprep.subr.mxu0 %v1455
        %1525 = vmatpush2.msra.mxu0 %v1454
        %1526 = vmatprep.subr.mxu0 %v1453
        %1527 = vmatpush2.msra.mxu0 %v1452
        %1528 = vmatprep.subr.mxu0 %v1451
        %1529 = vmatpush2.msra.mxu0 %v1450
        %1530 = vmatprep.subr.mxu0 %v1449
        %1531 = vmatpush2.msra.mxu0 %v1448
        %1532 = vmatprep.subr.mxu0 %v1447
        %1533 = vmatpush2.msra.mxu0 %v1446
        %1534 = vmatprep.subr.mxu0 %v1445
        %1535 = vmatpush2.msra.mxu0 %v1444
        %1536 = vmatprep.subr.mxu0 %v1443
        %1537 = vmatpush2.msra.mxu0 %v1442
        %1538 = vmatprep.subr.mxu0 %v1441
        %1539 = vmatpush2.msra.mxu0 %v1440
        %1540 = vmatprep.subr.mxu0 %v1439
        %1541 = vmatpush2.msra.mxu0 %v1438
        %1542 = vmatprep.mubr.f32.mxu0 %v1471
        %1543 = vmatmul.mubr.f32.gmra.mxu0 %v1470
        %v1544 = vpop.f32.mrf.mxu0
        %v1545 = vadd.f32 0.0, %v1544
        %v1546 = vpop.f32.mrf.mxu0
        %v1547 = vadd.f32 0.0, %v1546
        %1548 = vmatprep.mubr.f32.mxu0 %v1473
        %1549 = vmatmul.mubr.f32.gmra.mxu0 %v1472
        %v1550 = vpop.f32.mrf.mxu0
        %v1551 = vadd.f32 0.0, %v1550
        %v1552 = vpop.f32.mrf.mxu0
        %v1553 = vadd.f32 0.0, %v1552
        %1554 = vdwg.mxu0
        %v1555 = vadd.f32 %v1361, %v1545
        %v1556 = vadd.f32 %v1362, %v1547
        %v1557 = vadd.f32 %v1363, %v1551
        %v1558 = vadd.f32 %v1364, %v1553
        %v1559 = vld [vmem:[%s587] sm:$0x3c]
        %v1560 = vld [vmem:[%s587 + $0x8] sm:$0x3c]
        %v1561 = vld [vmem:[%s587 + $0x10] sm:$0x3c]
        %v1562 = vld [vmem:[%s587 + $0x18] sm:$0x3c]
        %v1563 = vld [vmem:[%s587 + $0x20] sm:$0x3c]
        %v1564 = vld [vmem:[%s587 + $0x28] sm:$0x3c]
        %v1565 = vld [vmem:[%s587 + $0x30] sm:$0x3c]
        %v1566 = vld [vmem:[%s587 + $0x38] sm:$0x3c]
        %v1575 = vcombine.low %v1559, %v1560
        %v1576 = vcombine.high %v1559, %v1560
        %v1577 = vcombine.low %v1561, %v1562
        %v1578 = vcombine.high %v1561, %v1562
        %v1579 = vcombine.low %v1563, %v1564
        %v1580 = vcombine.high %v1563, %v1564
        %v1581 = vcombine.low %v1565, %v1566
        %v1582 = vcombine.high %v1565, %v1566
        %v1583 = vrot.slane %v1575, 6
        %v1584 = vrot.slane %v1583, 4
        %v1585 = vrot.slane %v1576, 6
        %v1586 = vsel %vm1020, %v1584, %v1585
        %v1587 = vrot.slane %v1577, 6
        %v1588 = vrot.slane %v1587, 4
        %v1589 = vrot.slane %v1578, 6
        %v1590 = vsel %vm1020, %v1588, %v1589
        %v1591 = vrot.slane %v1579, 6
        %v1592 = vrot.slane %v1591, 4
        %v1593 = vrot.slane %v1580, 6
        %v1594 = vsel %vm1020, %v1592, %v1593
        %v1595 = vrot.slane %v1581, 6
        %v1596 = vrot.slane %v1595, 4
        %v1597 = vrot.slane %v1582, 6
        %v1598 = vsel %vm1020, %v1596, %v1597
        %s1599 = scalar_lea.vmem [#allocation12], 2560
        %v1600 = vld [vmem:[%s1599] sm:$0xff]
        %v1601 = vld [vmem:[%s1599 + $0x8] sm:$0xff]
        %v1602 = vld [vmem:[%s1599 + $0x10] sm:$0xff]
        %v1603 = vld [vmem:[%s1599 + $0x18] sm:$0xff]
        %v1604 = vld [vmem:[%s1599 + $0x20] sm:$0xff]
        %v1605 = vld [vmem:[%s1599 + $0x28] sm:$0xff]
        %v1606 = vld [vmem:[%s1599 + $0x30] sm:$0xff]
        %v1607 = vld [vmem:[%s1599 + $0x38] sm:$0xff]
        %v1608 = vld [vmem:[%s1599 + $0x40] sm:$0xff]
        %v1609 = vld [vmem:[%s1599 + $0x48] sm:$0xff]
        %v1610 = vld [vmem:[%s1599 + $0x50] sm:$0xff]
        %v1611 = vld [vmem:[%s1599 + $0x58] sm:$0xff]
        %v1612 = vld [vmem:[%s1599 + $0x60] sm:$0xff]
        %v1613 = vld [vmem:[%s1599 + $0x68] sm:$0xff]
        %v1614 = vld [vmem:[%s1599 + $0x70] sm:$0xff]
        %v1615 = vld [vmem:[%s1599 + $0x78] sm:$0xff]
        %v1616 = vld [vmem:[%s1599 + $0x80] sm:$0xff]
        %v1617 = vld [vmem:[%s1599 + $0x88] sm:$0xff]
        %v1618 = vld [vmem:[%s1599 + $0x90] sm:$0xff]
        %v1619 = vld [vmem:[%s1599 + $0x98] sm:$0xff]
        %v1620 = vld [vmem:[%s1599 + $0xa0] sm:$0xff]
        %v1621 = vld [vmem:[%s1599 + $0xa8] sm:$0xff]
        %v1622 = vld [vmem:[%s1599 + $0xb0] sm:$0xff]
        %v1623 = vld [vmem:[%s1599 + $0xb8] sm:$0xff]
        %v1624 = vld [vmem:[%s1599 + $0xc0] sm:$0xff]
        %v1625 = vld [vmem:[%s1599 + $0xc8] sm:$0xff]
        %v1626 = vld [vmem:[%s1599 + $0xd0] sm:$0xff]
        %v1627 = vld [vmem:[%s1599 + $0xd8] sm:$0xff]
        %v1628 = vld [vmem:[%s1599 + $0xe0] sm:$0xff]
        %v1629 = vld [vmem:[%s1599 + $0xe8] sm:$0xff]
        %v1630 = vld [vmem:[%s1599 + $0xf0] sm:$0xff]
        %v1631 = vld [vmem:[%s1599 + $0xf8] sm:$0xff]
        %v1632 = vld [vmem:[%s1599 + $0x100] sm:$0xff]
        %v1633 = vld [vmem:[%s1599 + $0x108] sm:$0xff]
        %v1634 = vld [vmem:[%s1599 + $0x110] sm:$0xff]
        %v1635 = vld [vmem:[%s1599 + $0x118] sm:$0xff]
        %v1636 = vld [vmem:[%s1599 + $0x120] sm:$0xff]
        %v1637 = vld [vmem:[%s1599 + $0x128] sm:$0xff]
        %v1638 = vld [vmem:[%s1599 + $0x130] sm:$0xff]
        %v1639 = vld [vmem:[%s1599 + $0x138] sm:$0xff]
        %v1640 = vld [vmem:[%s1599 + $0x140] sm:$0xff]
        %v1641 = vld [vmem:[%s1599 + $0x148] sm:$0xff]
        %v1642 = vld [vmem:[%s1599 + $0x150] sm:$0xff]
        %v1643 = vld [vmem:[%s1599 + $0x158] sm:$0xff]
        %v1644 = vld [vmem:[%s1599 + $0x160] sm:$0xff]
        %v1645 = vld [vmem:[%s1599 + $0x168] sm:$0xff]
        %v1646 = vld [vmem:[%s1599 + $0x170] sm:$0xff]
        %v1647 = vld [vmem:[%s1599 + $0x178] sm:$0xff]
        %v1648 = vld [vmem:[%s1599 + $0x180] sm:$0xff]
        %v1649 = vld [vmem:[%s1599 + $0x188] sm:$0xff]
        %v1650 = vld [vmem:[%s1599 + $0x190] sm:$0xff]
        %v1651 = vld [vmem:[%s1599 + $0x198] sm:$0xff]
        %v1652 = vld [vmem:[%s1599 + $0x1a0] sm:$0xff]
        %v1653 = vld [vmem:[%s1599 + $0x1a8] sm:$0xff]
        %v1654 = vld [vmem:[%s1599 + $0x1b0] sm:$0xff]
        %v1655 = vld [vmem:[%s1599 + $0x1b8] sm:$0xff]
        %v1656 = vld [vmem:[%s1599 + $0x1c0] sm:$0xff]
        %v1657 = vld [vmem:[%s1599 + $0x1c8] sm:$0xff]
        %v1658 = vld [vmem:[%s1599 + $0x1d0] sm:$0xff]
        %v1659 = vld [vmem:[%s1599 + $0x1d8] sm:$0xff]
        %v1660 = vld [vmem:[%s1599 + $0x1e0] sm:$0xff]
        %v1661 = vld [vmem:[%s1599 + $0x1e8] sm:$0xff]
        %v1662 = vld [vmem:[%s1599 + $0x1f0] sm:$0xff]
        %v1663 = vld [vmem:[%s1599 + $0x1f8] sm:$0xff]
        %v1664 = vcombine.low %v1586, %v1590
        %v1665 = vcombine.high %v1586, %v1590
        %v1666 = vcombine.low %v1594, %v1598
        %v1667 = vcombine.high %v1594, %v1598
        %1672 = vmatprep.subr.mxu0 %v1631
        %1673 = vmatpush1.msra.mxu0 %v1630
        %1674 = vmatprep.subr.mxu0 %v1629
        %1675 = vmatpush1.msra.mxu0 %v1628
        %1676 = vmatprep.subr.mxu0 %v1627
        %1677 = vmatpush1.msra.mxu0 %v1626
        %1678 = vmatprep.subr.mxu0 %v1625
        %1679 = vmatpush1.msra.mxu0 %v1624
        %1680 = vmatprep.subr.mxu0 %v1623
        %1681 = vmatpush1.msra.mxu0 %v1622
        %1682 = vmatprep.subr.mxu0 %v1621
        %1683 = vmatpush1.msra.mxu0 %v1620
        %1684 = vmatprep.subr.mxu0 %v1619
        %1685 = vmatpush1.msra.mxu0 %v1618
        %1686 = vmatprep.subr.mxu0 %v1617
        %1687 = vmatpush1.msra.mxu0 %v1616
        %1688 = vmatprep.subr.mxu0 %v1615
        %1689 = vmatpush1.msra.mxu0 %v1614
        %1690 = vmatprep.subr.mxu0 %v1613
        %1691 = vmatpush1.msra.mxu0 %v1612
        %1692 = vmatprep.subr.mxu0 %v1611
        %1693 = vmatpush1.msra.mxu0 %v1610
        %1694 = vmatprep.subr.mxu0 %v1609
        %1695 = vmatpush1.msra.mxu0 %v1608
        %1696 = vmatprep.subr.mxu0 %v1607
        %1697 = vmatpush1.msra.mxu0 %v1606
        %1698 = vmatprep.subr.mxu0 %v1605
        %1699 = vmatpush1.msra.mxu0 %v1604
        %1700 = vmatprep.subr.mxu0 %v1603
        %1701 = vmatpush1.msra.mxu0 %v1602
        %1702 = vmatprep.subr.mxu0 %v1601
        %1703 = vmatpush1.msra.mxu0 %v1600
        %1704 = vmatprep.subr.mxu0 %v1663
        %1705 = vmatpush2.msra.mxu0 %v1662
        %1706 = vmatprep.subr.mxu0 %v1661
        %1707 = vmatpush2.msra.mxu0 %v1660
        %1708 = vmatprep.subr.mxu0 %v1659
        %1709 = vmatpush2.msra.mxu0 %v1658
        %1710 = vmatprep.subr.mxu0 %v1657
        %1711 = vmatpush2.msra.mxu0 %v1656
        %1712 = vmatprep.subr.mxu0 %v1655
        %1713 = vmatpush2.msra.mxu0 %v1654
        %1714 = vmatprep.subr.mxu0 %v1653
        %1715 = vmatpush2.msra.mxu0 %v1652
        %1716 = vmatprep.subr.mxu0 %v1651
        %1717 = vmatpush2.msra.mxu0 %v1650
        %1718 = vmatprep.subr.mxu0 %v1649
        %1719 = vmatpush2.msra.mxu0 %v1648
        %1720 = vmatprep.subr.mxu0 %v1647
        %1721 = vmatpush2.msra.mxu0 %v1646
        %1722 = vmatprep.subr.mxu0 %v1645
        %1723 = vmatpush2.msra.mxu0 %v1644
        %1724 = vmatprep.subr.mxu0 %v1643
        %1725 = vmatpush2.msra.mxu0 %v1642
        %1726 = vmatprep.subr.mxu0 %v1641
        %1727 = vmatpush2.msra.mxu0 %v1640
        %1728 = vmatprep.subr.mxu0 %v1639
        %1729 = vmatpush2.msra.mxu0 %v1638
        %1730 = vmatprep.subr.mxu0 %v1637
        %1731 = vmatpush2.msra.mxu0 %v1636
        %1732 = vmatprep.subr.mxu0 %v1635
        %1733 = vmatpush2.msra.mxu0 %v1634
        %1734 = vmatprep.subr.mxu0 %v1633
        %1735 = vmatpush2.msra.mxu0 %v1632
        %1736 = vmatprep.mubr.f32.mxu0 %v1665
        %1737 = vmatmul.mubr.f32.gmra.mxu0 %v1664
        %v1738 = vpop.f32.mrf.mxu0
        %v1739 = vadd.f32 0.0, %v1738
        %v1740 = vpop.f32.mrf.mxu0
        %v1741 = vadd.f32 0.0, %v1740
        %1742 = vmatprep.mubr.f32.mxu0 %v1667
        %1743 = vmatmul.mubr.f32.gmra.mxu0 %v1666
        %v1744 = vpop.f32.mrf.mxu0
        %v1745 = vadd.f32 0.0, %v1744
        %v1746 = vpop.f32.mrf.mxu0
        %v1747 = vadd.f32 0.0, %v1746
        %1748 = vdwg.mxu0
        %v1749 = vadd.f32 %v1555, %v1739
        %v1750 = vadd.f32 %v1556, %v1741
        %v1751 = vadd.f32 %v1557, %v1745
        %v1752 = vadd.f32 %v1558, %v1747
        %s1753 = scalar_lea.vmem [#allocation2], 32
        %v1754 = vld [vmem:[%s1753] sm:$0xf]
        %v1755 = vld [vmem:[%s1753 + $0x8] sm:$0xf]
        %v1756 = vld [vmem:[%s1753 + $0x10] sm:$0xf]
        %v1757 = vld [vmem:[%s1753 + $0x18] sm:$0xf]
        %v1758 = vld [vmem:[%s1753 + $0x20] sm:$0xf]
        %v1759 = vld [vmem:[%s1753 + $0x28] sm:$0xf]
        %v1760 = vld [vmem:[%s1753 + $0x30] sm:$0xf]
        %v1761 = vld [vmem:[%s1753 + $0x38] sm:$0xf]
        %v1770 = vcombine.low %v1754, %v1755
        %v1771 = vcombine.low %v1756, %v1757
        %v1772 = vcombine.low %v1758, %v1759
        %v1773 = vcombine.low %v1760, %v1761
        %s1774 = scalar_lea.vmem [#allocation12], 3072
        %v1775 = vld [vmem:[%s1774] sm:$0xff]
        %v1776 = vld [vmem:[%s1774 + $0x8] sm:$0xff]
        %v1777 = vld [vmem:[%s1774 + $0x10] sm:$0xff]
        %v1778 = vld [vmem:[%s1774 + $0x18] sm:$0xff]
        %v1779 = vld [vmem:[%s1774 + $0x20] sm:$0xff]
        %v1780 = vld [vmem:[%s1774 + $0x28] sm:$0xff]
        %v1781 = vld [vmem:[%s1774 + $0x30] sm:$0xff]
        %v1782 = vld [vmem:[%s1774 + $0x38] sm:$0xff]
        %v1783 = vld [vmem:[%s1774 + $0x40] sm:$0xff]
        %v1784 = vld [vmem:[%s1774 + $0x48] sm:$0xff]
        %v1785 = vld [vmem:[%s1774 + $0x50] sm:$0xff]
        %v1786 = vld [vmem:[%s1774 + $0x58] sm:$0xff]
        %v1787 = vld [vmem:[%s1774 + $0x60] sm:$0xff]
        %v1788 = vld [vmem:[%s1774 + $0x68] sm:$0xff]
        %v1789 = vld [vmem:[%s1774 + $0x70] sm:$0xff]
        %v1790 = vld [vmem:[%s1774 + $0x78] sm:$0xff]
        %v1791 = vld [vmem:[%s1774 + $0x80] sm:$0xff]
        %v1792 = vld [vmem:[%s1774 + $0x88] sm:$0xff]
        %v1793 = vld [vmem:[%s1774 + $0x90] sm:$0xff]
        %v1794 = vld [vmem:[%s1774 + $0x98] sm:$0xff]
        %v1795 = vld [vmem:[%s1774 + $0xa0] sm:$0xff]
        %v1796 = vld [vmem:[%s1774 + $0xa8] sm:$0xff]
        %v1797 = vld [vmem:[%s1774 + $0xb0] sm:$0xff]
        %v1798 = vld [vmem:[%s1774 + $0xb8] sm:$0xff]
        %v1799 = vld [vmem:[%s1774 + $0xc0] sm:$0xff]
        %v1800 = vld [vmem:[%s1774 + $0xc8] sm:$0xff]
        %v1801 = vld [vmem:[%s1774 + $0xd0] sm:$0xff]
        %v1802 = vld [vmem:[%s1774 + $0xd8] sm:$0xff]
        %v1803 = vld [vmem:[%s1774 + $0xe0] sm:$0xff]
        %v1804 = vld [vmem:[%s1774 + $0xe8] sm:$0xff]
        %v1805 = vld [vmem:[%s1774 + $0xf0] sm:$0xff]
        %v1806 = vld [vmem:[%s1774 + $0xf8] sm:$0xff]
        %v1807 = vld [vmem:[%s1774 + $0x100] sm:$0xff]
        %v1808 = vld [vmem:[%s1774 + $0x108] sm:$0xff]
        %v1809 = vld [vmem:[%s1774 + $0x110] sm:$0xff]
        %v1810 = vld [vmem:[%s1774 + $0x118] sm:$0xff]
        %v1811 = vld [vmem:[%s1774 + $0x120] sm:$0xff]
        %v1812 = vld [vmem:[%s1774 + $0x128] sm:$0xff]
        %v1813 = vld [vmem:[%s1774 + $0x130] sm:$0xff]
        %v1814 = vld [vmem:[%s1774 + $0x138] sm:$0xff]
        %v1815 = vld [vmem:[%s1774 + $0x140] sm:$0xff]
        %v1816 = vld [vmem:[%s1774 + $0x148] sm:$0xff]
        %v1817 = vld [vmem:[%s1774 + $0x150] sm:$0xff]
        %v1818 = vld [vmem:[%s1774 + $0x158] sm:$0xff]
        %v1819 = vld [vmem:[%s1774 + $0x160] sm:$0xff]
        %v1820 = vld [vmem:[%s1774 + $0x168] sm:$0xff]
        %v1821 = vld [vmem:[%s1774 + $0x170] sm:$0xff]
        %v1822 = vld [vmem:[%s1774 + $0x178] sm:$0xff]
        %v1823 = vld [vmem:[%s1774 + $0x180] sm:$0xff]
        %v1824 = vld [vmem:[%s1774 + $0x188] sm:$0xff]
        %v1825 = vld [vmem:[%s1774 + $0x190] sm:$0xff]
        %v1826 = vld [vmem:[%s1774 + $0x198] sm:$0xff]
        %v1827 = vld [vmem:[%s1774 + $0x1a0] sm:$0xff]
        %v1828 = vld [vmem:[%s1774 + $0x1a8] sm:$0xff]
        %v1829 = vld [vmem:[%s1774 + $0x1b0] sm:$0xff]
        %v1830 = vld [vmem:[%s1774 + $0x1b8] sm:$0xff]
        %v1831 = vld [vmem:[%s1774 + $0x1c0] sm:$0xff]
        %v1832 = vld [vmem:[%s1774 + $0x1c8] sm:$0xff]
        %v1833 = vld [vmem:[%s1774 + $0x1d0] sm:$0xff]
        %v1834 = vld [vmem:[%s1774 + $0x1d8] sm:$0xff]
        %v1835 = vld [vmem:[%s1774 + $0x1e0] sm:$0xff]
        %v1836 = vld [vmem:[%s1774 + $0x1e8] sm:$0xff]
        %v1837 = vld [vmem:[%s1774 + $0x1f0] sm:$0xff]
        %v1838 = vld [vmem:[%s1774 + $0x1f8] sm:$0xff]
        %v1839 = vcombine.low %v1770, %v1771
        %v1840 = vcombine.high %v1770, %v1771
        %v1841 = vcombine.low %v1772, %v1773
        %v1842 = vcombine.high %v1772, %v1773
        %1847 = vmatprep.subr.mxu0 %v1806
        %1848 = vmatpush1.msra.mxu0 %v1805
        %1849 = vmatprep.subr.mxu0 %v1804
        %1850 = vmatpush1.msra.mxu0 %v1803
        %1851 = vmatprep.subr.mxu0 %v1802
        %1852 = vmatpush1.msra.mxu0 %v1801
        %1853 = vmatprep.subr.mxu0 %v1800
        %1854 = vmatpush1.msra.mxu0 %v1799
        %1855 = vmatprep.subr.mxu0 %v1798
        %1856 = vmatpush1.msra.mxu0 %v1797
        %1857 = vmatprep.subr.mxu0 %v1796
        %1858 = vmatpush1.msra.mxu0 %v1795
        %1859 = vmatprep.subr.mxu0 %v1794
        %1860 = vmatpush1.msra.mxu0 %v1793
        %1861 = vmatprep.subr.mxu0 %v1792
        %1862 = vmatpush1.msra.mxu0 %v1791
        %1863 = vmatprep.subr.mxu0 %v1790
        %1864 = vmatpush1.msra.mxu0 %v1789
        %1865 = vmatprep.subr.mxu0 %v1788
        %1866 = vmatpush1.msra.mxu0 %v1787
        %1867 = vmatprep.subr.mxu0 %v1786
        %1868 = vmatpush1.msra.mxu0 %v1785
        %1869 = vmatprep.subr.mxu0 %v1784
        %1870 = vmatpush1.msra.mxu0 %v1783
        %1871 = vmatprep.subr.mxu0 %v1782
        %1872 = vmatpush1.msra.mxu0 %v1781
        %1873 = vmatprep.subr.mxu0 %v1780
        %1874 = vmatpush1.msra.mxu0 %v1779
        %1875 = vmatprep.subr.mxu0 %v1778
        %1876 = vmatpush1.msra.mxu0 %v1777
        %1877 = vmatprep.subr.mxu0 %v1776
        %1878 = vmatpush1.msra.mxu0 %v1775
        %1879 = vmatprep.subr.mxu0 %v1838
        %1880 = vmatpush2.msra.mxu0 %v1837
        %1881 = vmatprep.subr.mxu0 %v1836
        %1882 = vmatpush2.msra.mxu0 %v1835
        %1883 = vmatprep.subr.mxu0 %v1834
        %1884 = vmatpush2.msra.mxu0 %v1833
        %1885 = vmatprep.subr.mxu0 %v1832
        %1886 = vmatpush2.msra.mxu0 %v1831
        %1887 = vmatprep.subr.mxu0 %v1830
        %1888 = vmatpush2.msra.mxu0 %v1829
        %1889 = vmatprep.subr.mxu0 %v1828
        %1890 = vmatpush2.msra.mxu0 %v1827
        %1891 = vmatprep.subr.mxu0 %v1826
        %1892 = vmatpush2.msra.mxu0 %v1825
        %1893 = vmatprep.subr.mxu0 %v1824
        %1894 = vmatpush2.msra.mxu0 %v1823
        %1895 = vmatprep.subr.mxu0 %v1822
        %1896 = vmatpush2.msra.mxu0 %v1821
        %1897 = vmatprep.subr.mxu0 %v1820
        %1898 = vmatpush2.msra.mxu0 %v1819
        %1899 = vmatprep.subr.mxu0 %v1818
        %1900 = vmatpush2.msra.mxu0 %v1817
        %1901 = vmatprep.subr.mxu0 %v1816
        %1902 = vmatpush2.msra.mxu0 %v1815
        %1903 = vmatprep.subr.mxu0 %v1814
        %1904 = vmatpush2.msra.mxu0 %v1813
        %1905 = vmatprep.subr.mxu0 %v1812
        %1906 = vmatpush2.msra.mxu0 %v1811
        %1907 = vmatprep.subr.mxu0 %v1810
        %1908 = vmatpush2.msra.mxu0 %v1809
        %1909 = vmatprep.subr.mxu0 %v1808
        %1910 = vmatpush2.msra.mxu0 %v1807
        %1911 = vmatprep.mubr.f32.mxu0 %v1840
        %1912 = vmatmul.mubr.f32.gmra.mxu0 %v1839
        %v1913 = vpop.f32.mrf.mxu0
        %v1914 = vadd.f32 0.0, %v1913
        %v1915 = vpop.f32.mrf.mxu0
        %v1916 = vadd.f32 0.0, %v1915
        %1917 = vmatprep.mubr.f32.mxu0 %v1842
        %1918 = vmatmul.mubr.f32.gmra.mxu0 %v1841
        %v1919 = vpop.f32.mrf.mxu0
        %v1920 = vadd.f32 0.0, %v1919
        %v1921 = vpop.f32.mrf.mxu0
        %v1922 = vadd.f32 0.0, %v1921
        %1923 = vdwg.mxu0
        %v1924 = vadd.f32 %v1749, %v1914
        %v1925 = vadd.f32 %v1750, %v1916
        %v1926 = vadd.f32 %v1751, %v1920
        %v1927 = vadd.f32 %v1752, %v1922
        %v1928 = vld [vmem:[%s1753] sm:$0x1e]
        %v1929 = vld [vmem:[%s1753 + $0x8] sm:$0x1e]
        %v1930 = vld [vmem:[%s1753 + $0x10] sm:$0x1e]
        %v1931 = vld [vmem:[%s1753 + $0x18] sm:$0x1e]
        %v1932 = vld [vmem:[%s1753 + $0x20] sm:$0x1e]
        %v1933 = vld [vmem:[%s1753 + $0x28] sm:$0x1e]
        %v1934 = vld [vmem:[%s1753 + $0x30] sm:$0x1e]
        %v1935 = vld [vmem:[%s1753 + $0x38] sm:$0x1e]
        %v1944 = vcombine.low %v1928, %v1929
        %v1945 = vcombine.high %v1928, %v1929
        %v1946 = vcombine.low %v1930, %v1931
        %v1947 = vcombine.high %v1930, %v1931
        %v1948 = vcombine.low %v1932, %v1933
        %v1949 = vcombine.high %v1932, %v1933
        %v1950 = vcombine.low %v1934, %v1935
        %v1951 = vcombine.high %v1934, %v1935
        %v1952 = vrot.slane %v1944, 5
        %v1953 = vrot.slane %v1952, 4
        %v1954 = vrot.slane %v1945, 5
        %v1955 = vsel %vm823, %v1953, %v1954
        %v1956 = vrot.slane %v1946, 5
        %v1957 = vrot.slane %v1956, 4
        %v1958 = vrot.slane %v1947, 5
        %v1959 = vsel %vm823, %v1957, %v1958
        %v1960 = vrot.slane %v1948, 5
        %v1961 = vrot.slane %v1960, 4
        %v1962 = vrot.slane %v1949, 5
        %v1963 = vsel %vm823, %v1961, %v1962
        %v1964 = vrot.slane %v1950, 5
        %v1965 = vrot.slane %v1964, 4
        %v1966 = vrot.slane %v1951, 5
        %v1967 = vsel %vm823, %v1965, %v1966
        %s1968 = scalar_lea.vmem [#allocation12], 3584
        %v1969 = vld [vmem:[%s1968] sm:$0xff]
        %v1970 = vld [vmem:[%s1968 + $0x8] sm:$0xff]
        %v1971 = vld [vmem:[%s1968 + $0x10] sm:$0xff]
        %v1972 = vld [vmem:[%s1968 + $0x18] sm:$0xff]
        %v1973 = vld [vmem:[%s1968 + $0x20] sm:$0xff]
        %v1974 = vld [vmem:[%s1968 + $0x28] sm:$0xff]
        %v1975 = vld [vmem:[%s1968 + $0x30] sm:$0xff]
        %v1976 = vld [vmem:[%s1968 + $0x38] sm:$0xff]
        %v1977 = vld [vmem:[%s1968 + $0x40] sm:$0xff]
        %v1978 = vld [vmem:[%s1968 + $0x48] sm:$0xff]
        %v1979 = vld [vmem:[%s1968 + $0x50] sm:$0xff]
        %v1980 = vld [vmem:[%s1968 + $0x58] sm:$0xff]
        %v1981 = vld [vmem:[%s1968 + $0x60] sm:$0xff]
        %v1982 = vld [vmem:[%s1968 + $0x68] sm:$0xff]
        %v1983 = vld [vmem:[%s1968 + $0x70] sm:$0xff]
        %v1984 = vld [vmem:[%s1968 + $0x78] sm:$0xff]
        %v1985 = vld [vmem:[%s1968 + $0x80] sm:$0xff]
        %v1986 = vld [vmem:[%s1968 + $0x88] sm:$0xff]
        %v1987 = vld [vmem:[%s1968 + $0x90] sm:$0xff]
        %v1988 = vld [vmem:[%s1968 + $0x98] sm:$0xff]
        %v1989 = vld [vmem:[%s1968 + $0xa0] sm:$0xff]
        %v1990 = vld [vmem:[%s1968 + $0xa8] sm:$0xff]
        %v1991 = vld [vmem:[%s1968 + $0xb0] sm:$0xff]
        %v1992 = vld [vmem:[%s1968 + $0xb8] sm:$0xff]
        %v1993 = vld [vmem:[%s1968 + $0xc0] sm:$0xff]
        %v1994 = vld [vmem:[%s1968 + $0xc8] sm:$0xff]
        %v1995 = vld [vmem:[%s1968 + $0xd0] sm:$0xff]
        %v1996 = vld [vmem:[%s1968 + $0xd8] sm:$0xff]
        %v1997 = vld [vmem:[%s1968 + $0xe0] sm:$0xff]
        %v1998 = vld [vmem:[%s1968 + $0xe8] sm:$0xff]
        %v1999 = vld [vmem:[%s1968 + $0xf0] sm:$0xff]
        %v2000 = vld [vmem:[%s1968 + $0xf8] sm:$0xff]
        %v2001 = vld [vmem:[%s1968 + $0x100] sm:$0xff]
        %v2002 = vld [vmem:[%s1968 + $0x108] sm:$0xff]
        %v2003 = vld [vmem:[%s1968 + $0x110] sm:$0xff]
        %v2004 = vld [vmem:[%s1968 + $0x118] sm:$0xff]
        %v2005 = vld [vmem:[%s1968 + $0x120] sm:$0xff]
        %v2006 = vld [vmem:[%s1968 + $0x128] sm:$0xff]
        %v2007 = vld [vmem:[%s1968 + $0x130] sm:$0xff]
        %v2008 = vld [vmem:[%s1968 + $0x138] sm:$0xff]
        %v2009 = vld [vmem:[%s1968 + $0x140] sm:$0xff]
        %v2010 = vld [vmem:[%s1968 + $0x148] sm:$0xff]
        %v2011 = vld [vmem:[%s1968 + $0x150] sm:$0xff]
        %v2012 = vld [vmem:[%s1968 + $0x158] sm:$0xff]
        %v2013 = vld [vmem:[%s1968 + $0x160] sm:$0xff]
        %v2014 = vld [vmem:[%s1968 + $0x168] sm:$0xff]
        %v2015 = vld [vmem:[%s1968 + $0x170] sm:$0xff]
        %v2016 = vld [vmem:[%s1968 + $0x178] sm:$0xff]
        %v2017 = vld [vmem:[%s1968 + $0x180] sm:$0xff]
        %v2018 = vld [vmem:[%s1968 + $0x188] sm:$0xff]
        %v2019 = vld [vmem:[%s1968 + $0x190] sm:$0xff]
        %v2020 = vld [vmem:[%s1968 + $0x198] sm:$0xff]
        %v2021 = vld [vmem:[%s1968 + $0x1a0] sm:$0xff]
        %v2022 = vld [vmem:[%s1968 + $0x1a8] sm:$0xff]
        %v2023 = vld [vmem:[%s1968 + $0x1b0] sm:$0xff]
        %v2024 = vld [vmem:[%s1968 + $0x1b8] sm:$0xff]
        %v2025 = vld [vmem:[%s1968 + $0x1c0] sm:$0xff]
        %v2026 = vld [vmem:[%s1968 + $0x1c8] sm:$0xff]
        %v2027 = vld [vmem:[%s1968 + $0x1d0] sm:$0xff]
        %v2028 = vld [vmem:[%s1968 + $0x1d8] sm:$0xff]
        %v2029 = vld [vmem:[%s1968 + $0x1e0] sm:$0xff]
        %v2030 = vld [vmem:[%s1968 + $0x1e8] sm:$0xff]
        %v2031 = vld [vmem:[%s1968 + $0x1f0] sm:$0xff]
        %v2032 = vld [vmem:[%s1968 + $0x1f8] sm:$0xff]
        %v2033 = vcombine.low %v1955, %v1959
        %v2034 = vcombine.high %v1955, %v1959
        %v2035 = vcombine.low %v1963, %v1967
        %v2036 = vcombine.high %v1963, %v1967
        %2041 = vmatprep.subr.mxu0 %v2000
        %2042 = vmatpush1.msra.mxu0 %v1999
        %2043 = vmatprep.subr.mxu0 %v1998
        %2044 = vmatpush1.msra.mxu0 %v1997
        %2045 = vmatprep.subr.mxu0 %v1996
        %2046 = vmatpush1.msra.mxu0 %v1995
        %2047 = vmatprep.subr.mxu0 %v1994
        %2048 = vmatpush1.msra.mxu0 %v1993
        %2049 = vmatprep.subr.mxu0 %v1992
        %2050 = vmatpush1.msra.mxu0 %v1991
        %2051 = vmatprep.subr.mxu0 %v1990
        %2052 = vmatpush1.msra.mxu0 %v1989
        %2053 = vmatprep.subr.mxu0 %v1988
        %2054 = vmatpush1.msra.mxu0 %v1987
        %2055 = vmatprep.subr.mxu0 %v1986
        %2056 = vmatpush1.msra.mxu0 %v1985
        %2057 = vmatprep.subr.mxu0 %v1984
        %2058 = vmatpush1.msra.mxu0 %v1983
        %2059 = vmatprep.subr.mxu0 %v1982
        %2060 = vmatpush1.msra.mxu0 %v1981
        %2061 = vmatprep.subr.mxu0 %v1980
        %2062 = vmatpush1.msra.mxu0 %v1979
        %2063 = vmatprep.subr.mxu0 %v1978
        %2064 = vmatpush1.msra.mxu0 %v1977
        %2065 = vmatprep.subr.mxu0 %v1976
        %2066 = vmatpush1.msra.mxu0 %v1975
        %2067 = vmatprep.subr.mxu0 %v1974
        %2068 = vmatpush1.msra.mxu0 %v1973
        %2069 = vmatprep.subr.mxu0 %v1972
        %2070 = vmatpush1.msra.mxu0 %v1971
        %2071 = vmatprep.subr.mxu0 %v1970
        %2072 = vmatpush1.msra.mxu0 %v1969
        %2073 = vmatprep.subr.mxu0 %v2032
        %2074 = vmatpush2.msra.mxu0 %v2031
        %2075 = vmatprep.subr.mxu0 %v2030
        %2076 = vmatpush2.msra.mxu0 %v2029
        %2077 = vmatprep.subr.mxu0 %v2028
        %2078 = vmatpush2.msra.mxu0 %v2027
        %2079 = vmatprep.subr.mxu0 %v2026
        %2080 = vmatpush2.msra.mxu0 %v2025
        %2081 = vmatprep.subr.mxu0 %v2024
        %2082 = vmatpush2.msra.mxu0 %v2023
        %2083 = vmatprep.subr.mxu0 %v2022
        %2084 = vmatpush2.msra.mxu0 %v2021
        %2085 = vmatprep.subr.mxu0 %v2020
        %2086 = vmatpush2.msra.mxu0 %v2019
        %2087 = vmatprep.subr.mxu0 %v2018
        %2088 = vmatpush2.msra.mxu0 %v2017
        %2089 = vmatprep.subr.mxu0 %v2016
        %2090 = vmatpush2.msra.mxu0 %v2015
        %2091 = vmatprep.subr.mxu0 %v2014
        %2092 = vmatpush2.msra.mxu0 %v2013
        %2093 = vmatprep.subr.mxu0 %v2012
        %2094 = vmatpush2.msra.mxu0 %v2011
        %2095 = vmatprep.subr.mxu0 %v2010
        %2096 = vmatpush2.msra.mxu0 %v2009
        %2097 = vmatprep.subr.mxu0 %v2008
        %2098 = vmatpush2.msra.mxu0 %v2007
        %2099 = vmatprep.subr.mxu0 %v2006
        %2100 = vmatpush2.msra.mxu0 %v2005
        %2101 = vmatprep.subr.mxu0 %v2004
        %2102 = vmatpush2.msra.mxu0 %v2003
        %2103 = vmatprep.subr.mxu0 %v2002
        %2104 = vmatpush2.msra.mxu0 %v2001
        %2105 = vmatprep.mubr.f32.mxu0 %v2034
        %2106 = vmatmul.mubr.f32.gmra.mxu0 %v2033
        %v2107 = vpop.f32.mrf.mxu0
        %v2108 = vadd.f32 0.0, %v2107
        %v2109 = vpop.f32.mrf.mxu0
        %v2110 = vadd.f32 0.0, %v2109
        %2111 = vmatprep.mubr.f32.mxu0 %v2036
        %2112 = vmatmul.mubr.f32.gmra.mxu0 %v2035
        %v2113 = vpop.f32.mrf.mxu0
        %v2114 = vadd.f32 0.0, %v2113
        %v2115 = vpop.f32.mrf.mxu0
        %v2116 = vadd.f32 0.0, %v2115
        %2117 = vdwg.mxu0
        %v2118 = vadd.f32 %v1924, %v2108
        %v2119 = vadd.f32 %v1925, %v2110
        %v2120 = vadd.f32 %v1926, %v2114
        %v2121 = vadd.f32 %v1927, %v2116
        %v2122 = vld [vmem:[%s1753] sm:$0x3c]
        %v2123 = vld [vmem:[%s1753 + $0x8] sm:$0x3c]
        %v2124 = vld [vmem:[%s1753 + $0x10] sm:$0x3c]
        %v2125 = vld [vmem:[%s1753 + $0x18] sm:$0x3c]
        %v2126 = vld [vmem:[%s1753 + $0x20] sm:$0x3c]
        %v2127 = vld [vmem:[%s1753 + $0x28] sm:$0x3c]
        %v2128 = vld [vmem:[%s1753 + $0x30] sm:$0x3c]
        %v2129 = vld [vmem:[%s1753 + $0x38] sm:$0x3c]
        %v2138 = vcombine.low %v2122, %v2123
        %v2139 = vcombine.high %v2122, %v2123
        %v2140 = vcombine.low %v2124, %v2125
        %v2141 = vcombine.high %v2124, %v2125
        %v2142 = vcombine.low %v2126, %v2127
        %v2143 = vcombine.high %v2126, %v2127
        %v2144 = vcombine.low %v2128, %v2129
        %v2145 = vcombine.high %v2128, %v2129
        %v2146 = vrot.slane %v2138, 6
        %v2147 = vrot.slane %v2146, 4
        %v2148 = vrot.slane %v2139, 6
        %v2149 = vsel %vm1020, %v2147, %v2148
        %v2150 = vrot.slane %v2140, 6
        %v2151 = vrot.slane %v2150, 4
        %v2152 = vrot.slane %v2141, 6
        %v2153 = vsel %vm1020, %v2151, %v2152
        %v2154 = vrot.slane %v2142, 6
        %v2155 = vrot.slane %v2154, 4
        %v2156 = vrot.slane %v2143, 6
        %v2157 = vsel %vm1020, %v2155, %v2156
        %v2158 = vrot.slane %v2144, 6
        %v2159 = vrot.slane %v2158, 4
        %v2160 = vrot.slane %v2145, 6
        %v2161 = vsel %vm1020, %v2159, %v2160
        %s2162 = scalar_lea.vmem [#allocation12], 4096
        %v2163 = vld [vmem:[%s2162] sm:$0xff]
        %v2164 = vld [vmem:[%s2162 + $0x8] sm:$0xff]
        %v2165 = vld [vmem:[%s2162 + $0x10] sm:$0xff]
        %v2166 = vld [vmem:[%s2162 + $0x18] sm:$0xff]
        %v2167 = vld [vmem:[%s2162 + $0x20] sm:$0xff]
        %v2168 = vld [vmem:[%s2162 + $0x28] sm:$0xff]
        %v2169 = vld [vmem:[%s2162 + $0x30] sm:$0xff]
        %v2170 = vld [vmem:[%s2162 + $0x38] sm:$0xff]
        %v2171 = vld [vmem:[%s2162 + $0x40] sm:$0xff]
        %v2172 = vld [vmem:[%s2162 + $0x48] sm:$0xff]
        %v2173 = vld [vmem:[%s2162 + $0x50] sm:$0xff]
        %v2174 = vld [vmem:[%s2162 + $0x58] sm:$0xff]
        %v2175 = vld [vmem:[%s2162 + $0x60] sm:$0xff]
        %v2176 = vld [vmem:[%s2162 + $0x68] sm:$0xff]
        %v2177 = vld [vmem:[%s2162 + $0x70] sm:$0xff]
        %v2178 = vld [vmem:[%s2162 + $0x78] sm:$0xff]
        %v2179 = vld [vmem:[%s2162 + $0x80] sm:$0xff]
        %v2180 = vld [vmem:[%s2162 + $0x88] sm:$0xff]
        %v2181 = vld [vmem:[%s2162 + $0x90] sm:$0xff]
        %v2182 = vld [vmem:[%s2162 + $0x98] sm:$0xff]
        %v2183 = vld [vmem:[%s2162 + $0xa0] sm:$0xff]
        %v2184 = vld [vmem:[%s2162 + $0xa8] sm:$0xff]
        %v2185 = vld [vmem:[%s2162 + $0xb0] sm:$0xff]
        %v2186 = vld [vmem:[%s2162 + $0xb8] sm:$0xff]
        %v2187 = vld [vmem:[%s2162 + $0xc0] sm:$0xff]
        %v2188 = vld [vmem:[%s2162 + $0xc8] sm:$0xff]
        %v2189 = vld [vmem:[%s2162 + $0xd0] sm:$0xff]
        %v2190 = vld [vmem:[%s2162 + $0xd8] sm:$0xff]
        %v2191 = vld [vmem:[%s2162 + $0xe0] sm:$0xff]
        %v2192 = vld [vmem:[%s2162 + $0xe8] sm:$0xff]
        %v2193 = vld [vmem:[%s2162 + $0xf0] sm:$0xff]
        %v2194 = vld [vmem:[%s2162 + $0xf8] sm:$0xff]
        %v2195 = vld [vmem:[%s2162 + $0x100] sm:$0xff]
        %v2196 = vld [vmem:[%s2162 + $0x108] sm:$0xff]
        %v2197 = vld [vmem:[%s2162 + $0x110] sm:$0xff]
        %v2198 = vld [vmem:[%s2162 + $0x118] sm:$0xff]
        %v2199 = vld [vmem:[%s2162 + $0x120] sm:$0xff]
        %v2200 = vld [vmem:[%s2162 + $0x128] sm:$0xff]
        %v2201 = vld [vmem:[%s2162 + $0x130] sm:$0xff]
        %v2202 = vld [vmem:[%s2162 + $0x138] sm:$0xff]
        %v2203 = vld [vmem:[%s2162 + $0x140] sm:$0xff]
        %v2204 = vld [vmem:[%s2162 + $0x148] sm:$0xff]
        %v2205 = vld [vmem:[%s2162 + $0x150] sm:$0xff]
        %v2206 = vld [vmem:[%s2162 + $0x158] sm:$0xff]
        %v2207 = vld [vmem:[%s2162 + $0x160] sm:$0xff]
        %v2208 = vld [vmem:[%s2162 + $0x168] sm:$0xff]
        %v2209 = vld [vmem:[%s2162 + $0x170] sm:$0xff]
        %v2210 = vld [vmem:[%s2162 + $0x178] sm:$0xff]
        %v2211 = vld [vmem:[%s2162 + $0x180] sm:$0xff]
        %v2212 = vld [vmem:[%s2162 + $0x188] sm:$0xff]
        %v2213 = vld [vmem:[%s2162 + $0x190] sm:$0xff]
        %v2214 = vld [vmem:[%s2162 + $0x198] sm:$0xff]
        %v2215 = vld [vmem:[%s2162 + $0x1a0] sm:$0xff]
        %v2216 = vld [vmem:[%s2162 + $0x1a8] sm:$0xff]
        %v2217 = vld [vmem:[%s2162 + $0x1b0] sm:$0xff]
        %v2218 = vld [vmem:[%s2162 + $0x1b8] sm:$0xff]
        %v2219 = vld [vmem:[%s2162 + $0x1c0] sm:$0xff]
        %v2220 = vld [vmem:[%s2162 + $0x1c8] sm:$0xff]
        %v2221 = vld [vmem:[%s2162 + $0x1d0] sm:$0xff]
        %v2222 = vld [vmem:[%s2162 + $0x1d8] sm:$0xff]
        %v2223 = vld [vmem:[%s2162 + $0x1e0] sm:$0xff]
        %v2224 = vld [vmem:[%s2162 + $0x1e8] sm:$0xff]
        %v2225 = vld [vmem:[%s2162 + $0x1f0] sm:$0xff]
        %v2226 = vld [vmem:[%s2162 + $0x1f8] sm:$0xff]
        %v2227 = vcombine.low %v2149, %v2153
        %v2228 = vcombine.high %v2149, %v2153
        %v2229 = vcombine.low %v2157, %v2161
        %v2230 = vcombine.high %v2157, %v2161
        %2235 = vmatprep.subr.mxu0 %v2194
        %2236 = vmatpush1.msra.mxu0 %v2193
        %2237 = vmatprep.subr.mxu0 %v2192
        %2238 = vmatpush1.msra.mxu0 %v2191
        %2239 = vmatprep.subr.mxu0 %v2190
        %2240 = vmatpush1.msra.mxu0 %v2189
        %2241 = vmatprep.subr.mxu0 %v2188
        %2242 = vmatpush1.msra.mxu0 %v2187
        %2243 = vmatprep.subr.mxu0 %v2186
        %2244 = vmatpush1.msra.mxu0 %v2185
        %2245 = vmatprep.subr.mxu0 %v2184
        %2246 = vmatpush1.msra.mxu0 %v2183
        %2247 = vmatprep.subr.mxu0 %v2182
        %2248 = vmatpush1.msra.mxu0 %v2181
        %2249 = vmatprep.subr.mxu0 %v2180
        %2250 = vmatpush1.msra.mxu0 %v2179
        %2251 = vmatprep.subr.mxu0 %v2178
        %2252 = vmatpush1.msra.mxu0 %v2177
        %2253 = vmatprep.subr.mxu0 %v2176
        %2254 = vmatpush1.msra.mxu0 %v2175
        %2255 = vmatprep.subr.mxu0 %v2174
        %2256 = vmatpush1.msra.mxu0 %v2173
        %2257 = vmatprep.subr.mxu0 %v2172
        %2258 = vmatpush1.msra.mxu0 %v2171
        %2259 = vmatprep.subr.mxu0 %v2170
        %2260 = vmatpush1.msra.mxu0 %v2169
        %2261 = vmatprep.subr.mxu0 %v2168
        %2262 = vmatpush1.msra.mxu0 %v2167
        %2263 = vmatprep.subr.mxu0 %v2166
        %2264 = vmatpush1.msra.mxu0 %v2165
        %2265 = vmatprep.subr.mxu0 %v2164
        %2266 = vmatpush1.msra.mxu0 %v2163
        %2267 = vmatprep.subr.mxu0 %v2226
        %2268 = vmatpush2.msra.mxu0 %v2225
        %2269 = vmatprep.subr.mxu0 %v2224
        %2270 = vmatpush2.msra.mxu0 %v2223
        %2271 = vmatprep.subr.mxu0 %v2222
        %2272 = vmatpush2.msra.mxu0 %v2221
        %2273 = vmatprep.subr.mxu0 %v2220
        %2274 = vmatpush2.msra.mxu0 %v2219
        %2275 = vmatprep.subr.mxu0 %v2218
        %2276 = vmatpush2.msra.mxu0 %v2217
        %2277 = vmatprep.subr.mxu0 %v2216
        %2278 = vmatpush2.msra.mxu0 %v2215
        %2279 = vmatprep.subr.mxu0 %v2214
        %2280 = vmatpush2.msra.mxu0 %v2213
        %2281 = vmatprep.subr.mxu0 %v2212
        %2282 = vmatpush2.msra.mxu0 %v2211
        %2283 = vmatprep.subr.mxu0 %v2210
        %2284 = vmatpush2.msra.mxu0 %v2209
        %2285 = vmatprep.subr.mxu0 %v2208
        %2286 = vmatpush2.msra.mxu0 %v2207
        %2287 = vmatprep.subr.mxu0 %v2206
        %2288 = vmatpush2.msra.mxu0 %v2205
        %2289 = vmatprep.subr.mxu0 %v2204
        %2290 = vmatpush2.msra.mxu0 %v2203
        %2291 = vmatprep.subr.mxu0 %v2202
        %2292 = vmatpush2.msra.mxu0 %v2201
        %2293 = vmatprep.subr.mxu0 %v2200
        %2294 = vmatpush2.msra.mxu0 %v2199
        %2295 = vmatprep.subr.mxu0 %v2198
        %2296 = vmatpush2.msra.mxu0 %v2197
        %2297 = vmatprep.subr.mxu0 %v2196
        %2298 = vmatpush2.msra.mxu0 %v2195
        %2299 = vmatprep.mubr.f32.mxu0 %v2228
        %2300 = vmatmul.mubr.f32.gmra.mxu0 %v2227
        %v2301 = vpop.f32.mrf.mxu0
        %v2302 = vadd.f32 0.0, %v2301
        %v2303 = vpop.f32.mrf.mxu0
        %v2304 = vadd.f32 0.0, %v2303
        %2305 = vmatprep.mubr.f32.mxu0 %v2230
        %2306 = vmatmul.mubr.f32.gmra.mxu0 %v2229
        %v2307 = vpop.f32.mrf.mxu0
        %v2308 = vadd.f32 0.0, %v2307
        %v2309 = vpop.f32.mrf.mxu0
        %v2310 = vadd.f32 0.0, %v2309
        %2311 = vdwg.mxu0
        %v2312 = vadd.f32 %v2118, %v2302
        %v2313 = vadd.f32 %v2119, %v2304
        %v2314 = vadd.f32 %v2120, %v2308
        %v2315 = vadd.f32 %v2121, %v2310
        %v2316 = vld [vmem:[%s452] sm:$0xf]
        %v2317 = vld [vmem:[%s452 + $0x4] sm:$0xf]
        %v2318 = vld [vmem:[%s452 + $0x8] sm:$0xf]
        %v2319 = vld [vmem:[%s452 + $0xc] sm:$0xf]
        %v2320 = vld [vmem:[%s470] sm:$0xf]
        %v2321 = vld [vmem:[%s470 + $0x4] sm:$0xf]
        %v2322 = vld [vmem:[%s470 + $0x8] sm:$0xf]
        %v2323 = vld [vmem:[%s470 + $0xc] sm:$0xf]
        %v2328 = vcombine.low %v2320, %v2321
        %v2329 = vcombine.low %v2322, %v2323
        %v2332 = vadd.f32 %v2312, %v2328
        %v2333 = vadd.f32 %v2314, %v2329
        %v2334 = vxor.u32 %v2332, 2147483648
        %v2335 = vxor.u32 %v2333, 2147483648
        %v2336 = vmul.f32 %v2334, 1.442695
        %v2337 = vpow.pop %v2336
        %v2338 = vmul.f32 %v2335, 1.442695
        %v2339 = vpow.pop %v2338
        %v2340 = vadd.f32 %v2337, 1.0
        %v2341 = vadd.f32 %v2339, 1.0
        %v2342 = vrcp.pop %v2340
        %v2343 = vmul.f32 1.0, %v2342
        %v2344 = vrcp.pop %v2341
        %v2345 = vmul.f32 1.0, %v2344
        %v2346 = vld [vmem:[%s479] sm:$0xf]
        %v2347 = vld [vmem:[%s479 + $0x4] sm:$0xf]
        %v2348 = vld [vmem:[%s479 + $0x8] sm:$0xf]
        %v2349 = vld [vmem:[%s479 + $0xc] sm:$0xf]
        %v2354 = vcombine.low %v2346, %v2347
        %v2355 = vcombine.low %v2348, %v2349
        %v2358 = vadd.f32 %v2313, %v2354
        %v2359 = vadd.f32 %v2315, %v2355
        %v2360 = vxor.u32 %v2358, 2147483648
        %v2361 = vxor.u32 %v2359, 2147483648
        %v2362 = vmul.f32 %v2360, 1.442695
        %v2363 = vpow.pop %v2362
        %v2364 = vmul.f32 %v2361, 1.442695
        %v2365 = vpow.pop %v2364
        %v2366 = vadd.f32 %v2363, 1.0
        %v2367 = vadd.f32 %v2365, 1.0
        %v2368 = vrcp.pop %v2366
        %v2369 = vmul.f32 1.0, %v2368
        %v2370 = vrcp.pop %v2367
        %v2371 = vmul.f32 1.0, %v2370
        %v2376 = vcombine.low %v2316, %v2317
        %v2377 = vcombine.low %v2318, %v2319
        %v2380 = vmul.f32 %v2369, %v2376
        %v2381 = vmul.f32 %v2371, %v2377
        %v2384 = vcombine.high %v2380, %v2380
        %v2385 = vcombine.high %v2381, %v2381
        %v2386 = vrot.slane %v2380, 7
        %v2387 = vrot.slane %v2384, 7
        %v2388 = vrot.slane %v2381, 7
        %v2389 = vrot.slane %v2385, 7
        %2394 = vst [vmem:[%s587] sm:$0x1e] %v2386
        %2395 = vst [vmem:[%s587 + $0x10] sm:$0x1e] %v2387
        %2396 = vst [vmem:[%s587 + $0x20] sm:$0x1e] %v2388
        %2397 = vst [vmem:[%s587 + $0x30] sm:$0x1e] %v2389
        %v2398 = vld [vmem:[#allocation17] sm:$0x1]
        %v2400 = vlaneseq
        %v2401 = vshrl.u32 %v2400, 7
        %v2402 = vsub.s32 0, %v2401
        %v2403 = vrot.slane %v2398, %v2402
        %v2405 = vld [vmem:[#allocation2] sm:$0xf]
        %v2406 = vld [vmem:[#allocation2 + $0x8] sm:$0xf]
        %v2407 = vld [vmem:[#allocation2 + $0x10] sm:$0xf]
        %v2408 = vld [vmem:[#allocation2 + $0x18] sm:$0xf]
        %v2409 = vld [vmem:[#allocation2 + $0x20] sm:$0xf]
        %v2410 = vld [vmem:[#allocation2 + $0x28] sm:$0xf]
        %v2411 = vld [vmem:[#allocation2 + $0x30] sm:$0xf]
        %v2412 = vld [vmem:[#allocation2 + $0x38] sm:$0xf]
        %v2421 = vcombine.low %v2405, %v2406
        %v2422 = vcombine.low %v2407, %v2408
        %v2423 = vcombine.low %v2409, %v2410
        %v2424 = vcombine.low %v2411, %v2412
        %v2425 = vld [vmem:[#allocation15] sm:$0xff]
        %v2426 = vld [vmem:[#allocation15 + $0x8] sm:$0xff]
        %v2427 = vld [vmem:[#allocation15 + $0x10] sm:$0xff]
        %v2428 = vld [vmem:[#allocation15 + $0x18] sm:$0xff]
        %v2429 = vld [vmem:[#allocation15 + $0x20] sm:$0xff]
        %v2430 = vld [vmem:[#allocation15 + $0x28] sm:$0xff]
        %v2431 = vld [vmem:[#allocation15 + $0x30] sm:$0xff]
        %v2432 = vld [vmem:[#allocation15 + $0x38] sm:$0xff]
        %v2433 = vld [vmem:[#allocation15 + $0x40] sm:$0xff]
        %v2434 = vld [vmem:[#allocation15 + $0x48] sm:$0xff]
        %v2435 = vld [vmem:[#allocation15 + $0x50] sm:$0xff]
        %v2436 = vld [vmem:[#allocation15 + $0x58] sm:$0xff]
        %v2437 = vld [vmem:[#allocation15 + $0x60] sm:$0xff]
        %v2438 = vld [vmem:[#allocation15 + $0x68] sm:$0xff]
        %v2439 = vld [vmem:[#allocation15 + $0x70] sm:$0xff]
        %v2440 = vld [vmem:[#allocation15 + $0x78] sm:$0xff]
        %v2441 = vld [vmem:[#allocation15 + $0x80] sm:$0xff]
        %v2442 = vld [vmem:[#allocation15 + $0x88] sm:$0xff]
        %v2443 = vld [vmem:[#allocation15 + $0x90] sm:$0xff]
        %v2444 = vld [vmem:[#allocation15 + $0x98] sm:$0xff]
        %v2445 = vld [vmem:[#allocation15 + $0xa0] sm:$0xff]
        %v2446 = vld [vmem:[#allocation15 + $0xa8] sm:$0xff]
        %v2447 = vld [vmem:[#allocation15 + $0xb0] sm:$0xff]
        %v2448 = vld [vmem:[#allocation15 + $0xb8] sm:$0xff]
        %v2449 = vld [vmem:[#allocation15 + $0xc0] sm:$0xff]
        %v2450 = vld [vmem:[#allocation15 + $0xc8] sm:$0xff]
        %v2451 = vld [vmem:[#allocation15 + $0xd0] sm:$0xff]
        %v2452 = vld [vmem:[#allocation15 + $0xd8] sm:$0xff]
        %v2453 = vld [vmem:[#allocation15 + $0xe0] sm:$0xff]
        %v2454 = vld [vmem:[#allocation15 + $0xe8] sm:$0xff]
        %v2455 = vld [vmem:[#allocation15 + $0xf0] sm:$0xff]
        %v2456 = vld [vmem:[#allocation15 + $0xf8] sm:$0xff]
        %v2457 = vcombine.low %v2421, %v2422
        %v2458 = vcombine.high %v2421, %v2422
        %v2459 = vcombine.low %v2423, %v2424
        %v2460 = vcombine.high %v2423, %v2424
        %2465 = vmatprep.subr.mxu0 0.0
        %2466 = vmatpush1.msra.mxu0 %v2440
        %2467 = vmatprep.subr.mxu0 0.0
        %2468 = vmatpush1.msra.mxu0 %v2439
        %2469 = vmatprep.subr.mxu0 0.0
        %2470 = vmatpush1.msra.mxu0 %v2438
        %2471 = vmatprep.subr.mxu0 0.0
        %2472 = vmatpush1.msra.mxu0 %v2437
        %2473 = vmatprep.subr.mxu0 0.0
        %2474 = vmatpush1.msra.mxu0 %v2436
        %2475 = vmatprep.subr.mxu0 0.0
        %2476 = vmatpush1.msra.mxu0 %v2435
        %2477 = vmatprep.subr.mxu0 0.0
        %2478 = vmatpush1.msra.mxu0 %v2434
        %2479 = vmatprep.subr.mxu0 0.0
        %2480 = vmatpush1.msra.mxu0 %v2433
        %2481 = vmatprep.subr.mxu0 0.0
        %2482 = vmatpush1.msra.mxu0 %v2432
        %2483 = vmatprep.subr.mxu0 0.0
        %2484 = vmatpush1.msra.mxu0 %v2431
        %2485 = vmatprep.subr.mxu0 0.0
        %2486 = vmatpush1.msra.mxu0 %v2430
        %2487 = vmatprep.subr.mxu0 0.0
        %2488 = vmatpush1.msra.mxu0 %v2429
        %2489 = vmatprep.subr.mxu0 0.0
        %2490 = vmatpush1.msra.mxu0 %v2428
        %2491 = vmatprep.subr.mxu0 0.0
        %2492 = vmatpush1.msra.mxu0 %v2427
        %2493 = vmatprep.subr.mxu0 0.0
        %2494 = vmatpush1.msra.mxu0 %v2426
        %2495 = vmatprep.subr.mxu0 0.0
        %2496 = vmatpush1.msra.mxu0 %v2425
        %2497 = vmatprep.subr.mxu0 0.0
        %2498 = vmatpush2.msra.mxu0 %v2456
        %2499 = vmatprep.subr.mxu0 0.0
        %2500 = vmatpush2.msra.mxu0 %v2455
        %2501 = vmatprep.subr.mxu0 0.0
        %2502 = vmatpush2.msra.mxu0 %v2454
        %2503 = vmatprep.subr.mxu0 0.0
        %2504 = vmatpush2.msra.mxu0 %v2453
        %2505 = vmatprep.subr.mxu0 0.0
        %2506 = vmatpush2.msra.mxu0 %v2452
        %2507 = vmatprep.subr.mxu0 0.0
        %2508 = vmatpush2.msra.mxu0 %v2451
        %2509 = vmatprep.subr.mxu0 0.0
        %2510 = vmatpush2.msra.mxu0 %v2450
        %2511 = vmatprep.subr.mxu0 0.0
        %2512 = vmatpush2.msra.mxu0 %v2449
        %2513 = vmatprep.subr.mxu0 0.0
        %2514 = vmatpush2.msra.mxu0 %v2448
        %2515 = vmatprep.subr.mxu0 0.0
        %2516 = vmatpush2.msra.mxu0 %v2447
        %2517 = vmatprep.subr.mxu0 0.0
        %2518 = vmatpush2.msra.mxu0 %v2446
        %2519 = vmatprep.subr.mxu0 0.0
        %2520 = vmatpush2.msra.mxu0 %v2445
        %2521 = vmatprep.subr.mxu0 0.0
        %2522 = vmatpush2.msra.mxu0 %v2444
        %2523 = vmatprep.subr.mxu0 0.0
        %2524 = vmatpush2.msra.mxu0 %v2443
        %2525 = vmatprep.subr.mxu0 0.0
        %2526 = vmatpush2.msra.mxu0 %v2442
        %2527 = vmatprep.subr.mxu0 0.0
        %2528 = vmatpush2.msra.mxu0 %v2441
        %2529 = vmatprep.mubr.f32.mxu0 %v2458
        %2530 = vmatmul.mubr.f32.gmra.mxu0 %v2457
        %v2531 = vpop.f32.mrf.mxu0
        %v2532 = vadd.f32 0.0, %v2531
        %v2533 = vpop.f32.mrf.mxu0
        %2534 = vmatprep.mubr.f32.mxu0 %v2460
        %2535 = vmatmul.mubr.f32.gmra.mxu0 %v2459
        %v2536 = vpop.f32.mrf.mxu0
        %v2537 = vadd.f32 0.0, %v2536
        %v2538 = vpop.f32.mrf.mxu0
        %2539 = vdwg.mxu0
        %v2540 = vadd.f32 %v2403, %v2532
        %v2541 = vadd.f32 %v2403, %v2537
        %v2542 = vld [vmem:[#allocation2] sm:$0x1e]
        %v2543 = vld [vmem:[#allocation2 + $0x8] sm:$0x1e]
        %v2544 = vld [vmem:[#allocation2 + $0x10] sm:$0x1e]
        %v2545 = vld [vmem:[#allocation2 + $0x18] sm:$0x1e]
        %v2546 = vld [vmem:[#allocation2 + $0x20] sm:$0x1e]
        %v2547 = vld [vmem:[#allocation2 + $0x28] sm:$0x1e]
        %v2548 = vld [vmem:[#allocation2 + $0x30] sm:$0x1e]
        %v2549 = vld [vmem:[#allocation2 + $0x38] sm:$0x1e]
        %v2558 = vcombine.low %v2542, %v2543
        %v2559 = vcombine.high %v2542, %v2543
        %v2560 = vcombine.low %v2544, %v2545
        %v2561 = vcombine.high %v2544, %v2545
        %v2562 = vcombine.low %v2546, %v2547
        %v2563 = vcombine.high %v2546, %v2547
        %v2564 = vcombine.low %v2548, %v2549
        %v2565 = vcombine.high %v2548, %v2549
        %v2566 = vrot.slane %v2558, 5
        %v2567 = vrot.slane %v2566, 4
        %v2568 = vrot.slane %v2559, 5
        %v2569 = vsel %vm823, %v2567, %v2568
        %v2570 = vrot.slane %v2560, 5
        %v2571 = vrot.slane %v2570, 4
        %v2572 = vrot.slane %v2561, 5
        %v2573 = vsel %vm823, %v2571, %v2572
        %v2574 = vrot.slane %v2562, 5
        %v2575 = vrot.slane %v2574, 4
        %v2576 = vrot.slane %v2563, 5
        %v2577 = vsel %vm823, %v2575, %v2576
        %v2578 = vrot.slane %v2564, 5
        %v2579 = vrot.slane %v2578, 4
        %v2580 = vrot.slane %v2565, 5
        %v2581 = vsel %vm823, %v2579, %v2580
        %s2582 = scalar_lea.vmem [#allocation15], 256
        %v2583 = vld [vmem:[%s2582] sm:$0xff]
        %v2584 = vld [vmem:[%s2582 + $0x8] sm:$0xff]
        %v2585 = vld [vmem:[%s2582 + $0x10] sm:$0xff]
        %v2586 = vld [vmem:[%s2582 + $0x18] sm:$0xff]
        %v2587 = vld [vmem:[%s2582 + $0x20] sm:$0xff]
        %v2588 = vld [vmem:[%s2582 + $0x28] sm:$0xff]
        %v2589 = vld [vmem:[%s2582 + $0x30] sm:$0xff]
        %v2590 = vld [vmem:[%s2582 + $0x38] sm:$0xff]
        %v2591 = vld [vmem:[%s2582 + $0x40] sm:$0xff]
        %v2592 = vld [vmem:[%s2582 + $0x48] sm:$0xff]
        %v2593 = vld [vmem:[%s2582 + $0x50] sm:$0xff]
        %v2594 = vld [vmem:[%s2582 + $0x58] sm:$0xff]
        %v2595 = vld [vmem:[%s2582 + $0x60] sm:$0xff]
        %v2596 = vld [vmem:[%s2582 + $0x68] sm:$0xff]
        %v2597 = vld [vmem:[%s2582 + $0x70] sm:$0xff]
        %v2598 = vld [vmem:[%s2582 + $0x78] sm:$0xff]
        %v2599 = vld [vmem:[%s2582 + $0x80] sm:$0xff]
        %v2600 = vld [vmem:[%s2582 + $0x88] sm:$0xff]
        %v2601 = vld [vmem:[%s2582 + $0x90] sm:$0xff]
        %v2602 = vld [vmem:[%s2582 + $0x98] sm:$0xff]
        %v2603 = vld [vmem:[%s2582 + $0xa0] sm:$0xff]
        %v2604 = vld [vmem:[%s2582 + $0xa8] sm:$0xff]
        %v2605 = vld [vmem:[%s2582 + $0xb0] sm:$0xff]
        %v2606 = vld [vmem:[%s2582 + $0xb8] sm:$0xff]
        %v2607 = vld [vmem:[%s2582 + $0xc0] sm:$0xff]
        %v2608 = vld [vmem:[%s2582 + $0xc8] sm:$0xff]
        %v2609 = vld [vmem:[%s2582 + $0xd0] sm:$0xff]
        %v2610 = vld [vmem:[%s2582 + $0xd8] sm:$0xff]
        %v2611 = vld [vmem:[%s2582 + $0xe0] sm:$0xff]
        %v2612 = vld [vmem:[%s2582 + $0xe8] sm:$0xff]
        %v2613 = vld [vmem:[%s2582 + $0xf0] sm:$0xff]
        %v2614 = vld [vmem:[%s2582 + $0xf8] sm:$0xff]
        %v2615 = vcombine.low %v2569, %v2573
        %v2616 = vcombine.high %v2569, %v2573
        %v2617 = vcombine.low %v2577, %v2581
        %v2618 = vcombine.high %v2577, %v2581
        %2623 = vmatprep.subr.mxu0 0.0
        %2624 = vmatpush1.msra.mxu0 %v2598
        %2625 = vmatprep.subr.mxu0 0.0
        %2626 = vmatpush1.msra.mxu0 %v2597
        %2627 = vmatprep.subr.mxu0 0.0
        %2628 = vmatpush1.msra.mxu0 %v2596
        %2629 = vmatprep.subr.mxu0 0.0
        %2630 = vmatpush1.msra.mxu0 %v2595
        %2631 = vmatprep.subr.mxu0 0.0
        %2632 = vmatpush1.msra.mxu0 %v2594
        %2633 = vmatprep.subr.mxu0 0.0
        %2634 = vmatpush1.msra.mxu0 %v2593
        %2635 = vmatprep.subr.mxu0 0.0
        %2636 = vmatpush1.msra.mxu0 %v2592
        %2637 = vmatprep.subr.mxu0 0.0
        %2638 = vmatpush1.msra.mxu0 %v2591
        %2639 = vmatprep.subr.mxu0 0.0
        %2640 = vmatpush1.msra.mxu0 %v2590
        %2641 = vmatprep.subr.mxu0 0.0
        %2642 = vmatpush1.msra.mxu0 %v2589
        %2643 = vmatprep.subr.mxu0 0.0
        %2644 = vmatpush1.msra.mxu0 %v2588
        %2645 = vmatprep.subr.mxu0 0.0
        %2646 = vmatpush1.msra.mxu0 %v2587
        %2647 = vmatprep.subr.mxu0 0.0
        %2648 = vmatpush1.msra.mxu0 %v2586
        %2649 = vmatprep.subr.mxu0 0.0
        %2650 = vmatpush1.msra.mxu0 %v2585
        %2651 = vmatprep.subr.mxu0 0.0
        %2652 = vmatpush1.msra.mxu0 %v2584
        %2653 = vmatprep.subr.mxu0 0.0
        %2654 = vmatpush1.msra.mxu0 %v2583
        %2655 = vmatprep.subr.mxu0 0.0
        %2656 = vmatpush2.msra.mxu0 %v2614
        %2657 = vmatprep.subr.mxu0 0.0
        %2658 = vmatpush2.msra.mxu0 %v2613
        %2659 = vmatprep.subr.mxu0 0.0
        %2660 = vmatpush2.msra.mxu0 %v2612
        %2661 = vmatprep.subr.mxu0 0.0
        %2662 = vmatpush2.msra.mxu0 %v2611
        %2663 = vmatprep.subr.mxu0 0.0
        %2664 = vmatpush2.msra.mxu0 %v2610
        %2665 = vmatprep.subr.mxu0 0.0
        %2666 = vmatpush2.msra.mxu0 %v2609
        %2667 = vmatprep.subr.mxu0 0.0
        %2668 = vmatpush2.msra.mxu0 %v2608
        %2669 = vmatprep.subr.mxu0 0.0
        %2670 = vmatpush2.msra.mxu0 %v2607
        %2671 = vmatprep.subr.mxu0 0.0
        %2672 = vmatpush2.msra.mxu0 %v2606
        %2673 = vmatprep.subr.mxu0 0.0
        %2674 = vmatpush2.msra.mxu0 %v2605
        %2675 = vmatprep.subr.mxu0 0.0
        %2676 = vmatpush2.msra.mxu0 %v2604
        %2677 = vmatprep.subr.mxu0 0.0
        %2678 = vmatpush2.msra.mxu0 %v2603
        %2679 = vmatprep.subr.mxu0 0.0
        %2680 = vmatpush2.msra.mxu0 %v2602
        %2681 = vmatprep.subr.mxu0 0.0
        %2682 = vmatpush2.msra.mxu0 %v2601
        %2683 = vmatprep.subr.mxu0 0.0
        %2684 = vmatpush2.msra.mxu0 %v2600
        %2685 = vmatprep.subr.mxu0 0.0
        %2686 = vmatpush2.msra.mxu0 %v2599
        %2687 = vmatprep.mubr.f32.mxu0 %v2616
        %2688 = vmatmul.mubr.f32.gmra.mxu0 %v2615
        %v2689 = vpop.f32.mrf.mxu0
        %v2690 = vadd.f32 0.0, %v2689
        %v2691 = vpop.f32.mrf.mxu0
        %2692 = vmatprep.mubr.f32.mxu0 %v2618
        %2693 = vmatmul.mubr.f32.gmra.mxu0 %v2617
        %v2694 = vpop.f32.mrf.mxu0
        %v2695 = vadd.f32 0.0, %v2694
        %v2696 = vpop.f32.mrf.mxu0
        %2697 = vdwg.mxu0
        %v2698 = vadd.f32 %v2540, %v2690
        %v2699 = vadd.f32 %v2541, %v2695
        %v2700 = vld [vmem:[#allocation2] sm:$0x3c]
        %v2701 = vld [vmem:[#allocation2 + $0x8] sm:$0x3c]
        %v2702 = vld [vmem:[#allocation2 + $0x10] sm:$0x3c]
        %v2703 = vld [vmem:[#allocation2 + $0x18] sm:$0x3c]
        %v2704 = vld [vmem:[#allocation2 + $0x20] sm:$0x3c]
        %v2705 = vld [vmem:[#allocation2 + $0x28] sm:$0x3c]
        %v2706 = vld [vmem:[#allocation2 + $0x30] sm:$0x3c]
        %v2707 = vld [vmem:[#allocation2 + $0x38] sm:$0x3c]
        %v2716 = vcombine.low %v2700, %v2701
        %v2717 = vcombine.high %v2700, %v2701
        %v2718 = vcombine.low %v2702, %v2703
        %v2719 = vcombine.high %v2702, %v2703
        %v2720 = vcombine.low %v2704, %v2705
        %v2721 = vcombine.high %v2704, %v2705
        %v2722 = vcombine.low %v2706, %v2707
        %v2723 = vcombine.high %v2706, %v2707
        %v2724 = vrot.slane %v2716, 6
        %v2725 = vrot.slane %v2724, 4
        %v2726 = vrot.slane %v2717, 6
        %v2727 = vsel %vm1020, %v2725, %v2726
        %v2728 = vrot.slane %v2718, 6
        %v2729 = vrot.slane %v2728, 4
        %v2730 = vrot.slane %v2719, 6
        %v2731 = vsel %vm1020, %v2729, %v2730
        %v2732 = vrot.slane %v2720, 6
        %v2733 = vrot.slane %v2732, 4
        %v2734 = vrot.slane %v2721, 6
        %v2735 = vsel %vm1020, %v2733, %v2734
        %v2736 = vrot.slane %v2722, 6
        %v2737 = vrot.slane %v2736, 4
        %v2738 = vrot.slane %v2723, 6
        %v2739 = vsel %vm1020, %v2737, %v2738
        %s2740 = scalar_lea.vmem [#allocation15], 512
        %v2741 = vld [vmem:[%s2740] sm:$0xff]
        %v2742 = vld [vmem:[%s2740 + $0x8] sm:$0xff]
        %v2743 = vld [vmem:[%s2740 + $0x10] sm:$0xff]
        %v2744 = vld [vmem:[%s2740 + $0x18] sm:$0xff]
        %v2745 = vld [vmem:[%s2740 + $0x20] sm:$0xff]
        %v2746 = vld [vmem:[%s2740 + $0x28] sm:$0xff]
        %v2747 = vld [vmem:[%s2740 + $0x30] sm:$0xff]
        %v2748 = vld [vmem:[%s2740 + $0x38] sm:$0xff]
        %v2749 = vld [vmem:[%s2740 + $0x40] sm:$0xff]
        %v2750 = vld [vmem:[%s2740 + $0x48] sm:$0xff]
        %v2751 = vld [vmem:[%s2740 + $0x50] sm:$0xff]
        %v2752 = vld [vmem:[%s2740 + $0x58] sm:$0xff]
        %v2753 = vld [vmem:[%s2740 + $0x60] sm:$0xff]
        %v2754 = vld [vmem:[%s2740 + $0x68] sm:$0xff]
        %v2755 = vld [vmem:[%s2740 + $0x70] sm:$0xff]
        %v2756 = vld [vmem:[%s2740 + $0x78] sm:$0xff]
        %v2757 = vld [vmem:[%s2740 + $0x80] sm:$0xff]
        %v2758 = vld [vmem:[%s2740 + $0x88] sm:$0xff]
        %v2759 = vld [vmem:[%s2740 + $0x90] sm:$0xff]
        %v2760 = vld [vmem:[%s2740 + $0x98] sm:$0xff]
        %v2761 = vld [vmem:[%s2740 + $0xa0] sm:$0xff]
        %v2762 = vld [vmem:[%s2740 + $0xa8] sm:$0xff]
        %v2763 = vld [vmem:[%s2740 + $0xb0] sm:$0xff]
        %v2764 = vld [vmem:[%s2740 + $0xb8] sm:$0xff]
        %v2765 = vld [vmem:[%s2740 + $0xc0] sm:$0xff]
        %v2766 = vld [vmem:[%s2740 + $0xc8] sm:$0xff]
        %v2767 = vld [vmem:[%s2740 + $0xd0] sm:$0xff]
        %v2768 = vld [vmem:[%s2740 + $0xd8] sm:$0xff]
        %v2769 = vld [vmem:[%s2740 + $0xe0] sm:$0xff]
        %v2770 = vld [vmem:[%s2740 + $0xe8] sm:$0xff]
        %v2771 = vld [vmem:[%s2740 + $0xf0] sm:$0xff]
        %v2772 = vld [vmem:[%s2740 + $0xf8] sm:$0xff]
        %v2773 = vcombine.low %v2727, %v2731
        %v2774 = vcombine.high %v2727, %v2731
        %v2775 = vcombine.low %v2735, %v2739
        %v2776 = vcombine.high %v2735, %v2739
        %2781 = vmatprep.subr.mxu0 0.0
        %2782 = vmatpush1.msra.mxu0 %v2756
        %2783 = vmatprep.subr.mxu0 0.0
        %2784 = vmatpush1.msra.mxu0 %v2755
        %2785 = vmatprep.subr.mxu0 0.0
        %2786 = vmatpush1.msra.mxu0 %v2754
        %2787 = vmatprep.subr.mxu0 0.0
        %2788 = vmatpush1.msra.mxu0 %v2753
        %2789 = vmatprep.subr.mxu0 0.0
        %2790 = vmatpush1.msra.mxu0 %v2752
        %2791 = vmatprep.subr.mxu0 0.0
        %2792 = vmatpush1.msra.mxu0 %v2751
        %2793 = vmatprep.subr.mxu0 0.0
        %2794 = vmatpush1.msra.mxu0 %v2750
        %2795 = vmatprep.subr.mxu0 0.0
        %2796 = vmatpush1.msra.mxu0 %v2749
        %2797 = vmatprep.subr.mxu0 0.0
        %2798 = vmatpush1.msra.mxu0 %v2748
        %2799 = vmatprep.subr.mxu0 0.0
        %2800 = vmatpush1.msra.mxu0 %v2747
        %2801 = vmatprep.subr.mxu0 0.0
        %2802 = vmatpush1.msra.mxu0 %v2746
        %2803 = vmatprep.subr.mxu0 0.0
        %2804 = vmatpush1.msra.mxu0 %v2745
        %2805 = vmatprep.subr.mxu0 0.0
        %2806 = vmatpush1.msra.mxu0 %v2744
        %2807 = vmatprep.subr.mxu0 0.0
        %2808 = vmatpush1.msra.mxu0 %v2743
        %2809 = vmatprep.subr.mxu0 0.0
        %2810 = vmatpush1.msra.mxu0 %v2742
        %2811 = vmatprep.subr.mxu0 0.0
        %2812 = vmatpush1.msra.mxu0 %v2741
        %2813 = vmatprep.subr.mxu0 0.0
        %2814 = vmatpush2.msra.mxu0 %v2772
        %2815 = vmatprep.subr.mxu0 0.0
        %2816 = vmatpush2.msra.mxu0 %v2771
        %2817 = vmatprep.subr.mxu0 0.0
        %2818 = vmatpush2.msra.mxu0 %v2770
        %2819 = vmatprep.subr.mxu0 0.0
        %2820 = vmatpush2.msra.mxu0 %v2769
        %2821 = vmatprep.subr.mxu0 0.0
        %2822 = vmatpush2.msra.mxu0 %v2768
        %2823 = vmatprep.subr.mxu0 0.0
        %2824 = vmatpush2.msra.mxu0 %v2767
        %2825 = vmatprep.subr.mxu0 0.0
        %2826 = vmatpush2.msra.mxu0 %v2766
        %2827 = vmatprep.subr.mxu0 0.0
        %2828 = vmatpush2.msra.mxu0 %v2765
        %2829 = vmatprep.subr.mxu0 0.0
        %2830 = vmatpush2.msra.mxu0 %v2764
        %2831 = vmatprep.subr.mxu0 0.0
        %2832 = vmatpush2.msra.mxu0 %v2763
        %2833 = vmatprep.subr.mxu0 0.0
        %2834 = vmatpush2.msra.mxu0 %v2762
        %2835 = vmatprep.subr.mxu0 0.0
        %2836 = vmatpush2.msra.mxu0 %v2761
        %2837 = vmatprep.subr.mxu0 0.0
        %2838 = vmatpush2.msra.mxu0 %v2760
        %2839 = vmatprep.subr.mxu0 0.0
        %2840 = vmatpush2.msra.mxu0 %v2759
        %2841 = vmatprep.subr.mxu0 0.0
        %2842 = vmatpush2.msra.mxu0 %v2758
        %2843 = vmatprep.subr.mxu0 0.0
        %2844 = vmatpush2.msra.mxu0 %v2757
        %2845 = vmatprep.mubr.f32.mxu0 %v2774
        %2846 = vmatmul.mubr.f32.gmra.mxu0 %v2773
        %v2847 = vpop.f32.mrf.mxu0
        %v2848 = vadd.f32 0.0, %v2847
        %v2849 = vpop.f32.mrf.mxu0
        %2850 = vmatprep.mubr.f32.mxu0 %v2776
        %2851 = vmatmul.mubr.f32.gmra.mxu0 %v2775
        %v2852 = vpop.f32.mrf.mxu0
        %v2853 = vadd.f32 0.0, %v2852
        %v2854 = vpop.f32.mrf.mxu0
        %2855 = vdwg.mxu0
        %v2856 = vadd.f32 %v2698, %v2848
        %v2857 = vadd.f32 %v2699, %v2853
        %v2858 = vld [vmem:[%s587] sm:$0xf]
        %v2859 = vld [vmem:[%s587 + $0x8] sm:$0xf]
        %v2860 = vld [vmem:[%s587 + $0x10] sm:$0xf]
        %v2861 = vld [vmem:[%s587 + $0x18] sm:$0xf]
        %v2862 = vld [vmem:[%s587 + $0x20] sm:$0xf]
        %v2863 = vld [vmem:[%s587 + $0x28] sm:$0xf]
        %v2864 = vld [vmem:[%s587 + $0x30] sm:$0xf]
        %v2865 = vld [vmem:[%s587 + $0x38] sm:$0xf]
        %v2874 = vcombine.low %v2858, %v2859
        %v2875 = vcombine.low %v2860, %v2861
        %v2876 = vcombine.low %v2862, %v2863
        %v2877 = vcombine.low %v2864, %v2865
        %s2878 = scalar_lea.vmem [#allocation15], 768
        %v2879 = vld [vmem:[%s2878] sm:$0xff]
        %v2880 = vld [vmem:[%s2878 + $0x8] sm:$0xff]
        %v2881 = vld [vmem:[%s2878 + $0x10] sm:$0xff]
        %v2882 = vld [vmem:[%s2878 + $0x18] sm:$0xff]
        %v2883 = vld [vmem:[%s2878 + $0x20] sm:$0xff]
        %v2884 = vld [vmem:[%s2878 + $0x28] sm:$0xff]
        %v2885 = vld [vmem:[%s2878 + $0x30] sm:$0xff]
        %v2886 = vld [vmem:[%s2878 + $0x38] sm:$0xff]
        %v2887 = vld [vmem:[%s2878 + $0x40] sm:$0xff]
        %v2888 = vld [vmem:[%s2878 + $0x48] sm:$0xff]
        %v2889 = vld [vmem:[%s2878 + $0x50] sm:$0xff]
        %v2890 = vld [vmem:[%s2878 + $0x58] sm:$0xff]
        %v2891 = vld [vmem:[%s2878 + $0x60] sm:$0xff]
        %v2892 = vld [vmem:[%s2878 + $0x68] sm:$0xff]
        %v2893 = vld [vmem:[%s2878 + $0x70] sm:$0xff]
        %v2894 = vld [vmem:[%s2878 + $0x78] sm:$0xff]
        %v2895 = vld [vmem:[%s2878 + $0x80] sm:$0xff]
        %v2896 = vld [vmem:[%s2878 + $0x88] sm:$0xff]
        %v2897 = vld [vmem:[%s2878 + $0x90] sm:$0xff]
        %v2898 = vld [vmem:[%s2878 + $0x98] sm:$0xff]
        %v2899 = vld [vmem:[%s2878 + $0xa0] sm:$0xff]
        %v2900 = vld [vmem:[%s2878 + $0xa8] sm:$0xff]
        %v2901 = vld [vmem:[%s2878 + $0xb0] sm:$0xff]
        %v2902 = vld [vmem:[%s2878 + $0xb8] sm:$0xff]
        %v2903 = vld [vmem:[%s2878 + $0xc0] sm:$0xff]
        %v2904 = vld [vmem:[%s2878 + $0xc8] sm:$0xff]
        %v2905 = vld [vmem:[%s2878 + $0xd0] sm:$0xff]
        %v2906 = vld [vmem:[%s2878 + $0xd8] sm:$0xff]
        %v2907 = vld [vmem:[%s2878 + $0xe0] sm:$0xff]
        %v2908 = vld [vmem:[%s2878 + $0xe8] sm:$0xff]
        %v2909 = vld [vmem:[%s2878 + $0xf0] sm:$0xff]
        %v2910 = vld [vmem:[%s2878 + $0xf8] sm:$0xff]
        %v2911 = vcombine.low %v2874, %v2875
        %v2912 = vcombine.high %v2874, %v2875
        %v2913 = vcombine.low %v2876, %v2877
        %v2914 = vcombine.high %v2876, %v2877
        %2919 = vmatprep.subr.mxu0 0.0
        %2920 = vmatpush1.msra.mxu0 %v2894
        %2921 = vmatprep.subr.mxu0 0.0
        %2922 = vmatpush1.msra.mxu0 %v2893
        %2923 = vmatprep.subr.mxu0 0.0
        %2924 = vmatpush1.msra.mxu0 %v2892
        %2925 = vmatprep.subr.mxu0 0.0
        %2926 = vmatpush1.msra.mxu0 %v2891
        %2927 = vmatprep.subr.mxu0 0.0
        %2928 = vmatpush1.msra.mxu0 %v2890
        %2929 = vmatprep.subr.mxu0 0.0
        %2930 = vmatpush1.msra.mxu0 %v2889
        %2931 = vmatprep.subr.mxu0 0.0
        %2932 = vmatpush1.msra.mxu0 %v2888
        %2933 = vmatprep.subr.mxu0 0.0
        %2934 = vmatpush1.msra.mxu0 %v2887
        %2935 = vmatprep.subr.mxu0 0.0
        %2936 = vmatpush1.msra.mxu0 %v2886
        %2937 = vmatprep.subr.mxu0 0.0
        %2938 = vmatpush1.msra.mxu0 %v2885
        %2939 = vmatprep.subr.mxu0 0.0
        %2940 = vmatpush1.msra.mxu0 %v2884
        %2941 = vmatprep.subr.mxu0 0.0
        %2942 = vmatpush1.msra.mxu0 %v2883
        %2943 = vmatprep.subr.mxu0 0.0
        %2944 = vmatpush1.msra.mxu0 %v2882
        %2945 = vmatprep.subr.mxu0 0.0
        %2946 = vmatpush1.msra.mxu0 %v2881
        %2947 = vmatprep.subr.mxu0 0.0
        %2948 = vmatpush1.msra.mxu0 %v2880
        %2949 = vmatprep.subr.mxu0 0.0
        %2950 = vmatpush1.msra.mxu0 %v2879
        %2951 = vmatprep.subr.mxu0 0.0
        %2952 = vmatpush2.msra.mxu0 %v2910
        %2953 = vmatprep.subr.mxu0 0.0
        %2954 = vmatpush2.msra.mxu0 %v2909
        %2955 = vmatprep.subr.mxu0 0.0
        %2956 = vmatpush2.msra.mxu0 %v2908
        %2957 = vmatprep.subr.mxu0 0.0
        %2958 = vmatpush2.msra.mxu0 %v2907
        %2959 = vmatprep.subr.mxu0 0.0
        %2960 = vmatpush2.msra.mxu0 %v2906
        %2961 = vmatprep.subr.mxu0 0.0
        %2962 = vmatpush2.msra.mxu0 %v2905
        %2963 = vmatprep.subr.mxu0 0.0
        %2964 = vmatpush2.msra.mxu0 %v2904
        %2965 = vmatprep.subr.mxu0 0.0
        %2966 = vmatpush2.msra.mxu0 %v2903
        %2967 = vmatprep.subr.mxu0 0.0
        %2968 = vmatpush2.msra.mxu0 %v2902
        %2969 = vmatprep.subr.mxu0 0.0
        %2970 = vmatpush2.msra.mxu0 %v2901
        %2971 = vmatprep.subr.mxu0 0.0
        %2972 = vmatpush2.msra.mxu0 %v2900
        %2973 = vmatprep.subr.mxu0 0.0
        %2974 = vmatpush2.msra.mxu0 %v2899
        %2975 = vmatprep.subr.mxu0 0.0
        %2976 = vmatpush2.msra.mxu0 %v2898
        %2977 = vmatprep.subr.mxu0 0.0
        %2978 = vmatpush2.msra.mxu0 %v2897
        %2979 = vmatprep.subr.mxu0 0.0
        %2980 = vmatpush2.msra.mxu0 %v2896
        %2981 = vmatprep.subr.mxu0 0.0
        %2982 = vmatpush2.msra.mxu0 %v2895
        %2983 = vmatprep.mubr.f32.mxu0 %v2912
        %2984 = vmatmul.mubr.f32.gmra.mxu0 %v2911
        %v2985 = vpop.f32.mrf.mxu0
        %v2986 = vadd.f32 0.0, %v2985
        %v2987 = vpop.f32.mrf.mxu0
        %2988 = vmatprep.mubr.f32.mxu0 %v2914
        %2989 = vmatmul.mubr.f32.gmra.mxu0 %v2913
        %v2990 = vpop.f32.mrf.mxu0
        %v2991 = vadd.f32 0.0, %v2990
        %v2992 = vpop.f32.mrf.mxu0
        %2993 = vdwg.mxu0
        %v2994 = vadd.f32 %v2856, %v2986
        %v2995 = vadd.f32 %v2857, %v2991
        %v2996 = vld [vmem:[%s587] sm:$0x1e]
        %v2997 = vld [vmem:[%s587 + $0x8] sm:$0x1e]
        %v2998 = vld [vmem:[%s587 + $0x10] sm:$0x1e]
        %v2999 = vld [vmem:[%s587 + $0x18] sm:$0x1e]
        %v3000 = vld [vmem:[%s587 + $0x20] sm:$0x1e]
        %v3001 = vld [vmem:[%s587 + $0x28] sm:$0x1e]
        %v3002 = vld [vmem:[%s587 + $0x30] sm:$0x1e]
        %v3003 = vld [vmem:[%s587 + $0x38] sm:$0x1e]
        %v3012 = vcombine.low %v2996, %v2997
        %v3013 = vcombine.high %v2996, %v2997
        %v3014 = vcombine.low %v2998, %v2999
        %v3015 = vcombine.high %v2998, %v2999
        %v3016 = vcombine.low %v3000, %v3001
        %v3017 = vcombine.high %v3000, %v3001
        %v3018 = vcombine.low %v3002, %v3003
        %v3019 = vcombine.high %v3002, %v3003
        %v3020 = vrot.slane %v3012, 5
        %v3021 = vrot.slane %v3020, 4
        %v3022 = vrot.slane %v3013, 5
        %v3023 = vsel %vm823, %v3021, %v3022
        %v3024 = vrot.slane %v3014, 5
        %v3025 = vrot.slane %v3024, 4
        %v3026 = vrot.slane %v3015, 5
        %v3027 = vsel %vm823, %v3025, %v3026
        %v3028 = vrot.slane %v3016, 5
        %v3029 = vrot.slane %v3028, 4
        %v3030 = vrot.slane %v3017, 5
        %v3031 = vsel %vm823, %v3029, %v3030
        %v3032 = vrot.slane %v3018, 5
        %v3033 = vrot.slane %v3032, 4
        %v3034 = vrot.slane %v3019, 5
        %v3035 = vsel %vm823, %v3033, %v3034
        %s3036 = scalar_lea.vmem [#allocation15], 1024
        %v3037 = vld [vmem:[%s3036] sm:$0xff]
        %v3038 = vld [vmem:[%s3036 + $0x8] sm:$0xff]
        %v3039 = vld [vmem:[%s3036 + $0x10] sm:$0xff]
        %v3040 = vld [vmem:[%s3036 + $0x18] sm:$0xff]
        %v3041 = vld [vmem:[%s3036 + $0x20] sm:$0xff]
        %v3042 = vld [vmem:[%s3036 + $0x28] sm:$0xff]
        %v3043 = vld [vmem:[%s3036 + $0x30] sm:$0xff]
        %v3044 = vld [vmem:[%s3036 + $0x38] sm:$0xff]
        %v3045 = vld [vmem:[%s3036 + $0x40] sm:$0xff]
        %v3046 = vld [vmem:[%s3036 + $0x48] sm:$0xff]
        %v3047 = vld [vmem:[%s3036 + $0x50] sm:$0xff]
        %v3048 = vld [vmem:[%s3036 + $0x58] sm:$0xff]
        %v3049 = vld [vmem:[%s3036 + $0x60] sm:$0xff]
        %v3050 = vld [vmem:[%s3036 + $0x68] sm:$0xff]
        %v3051 = vld [vmem:[%s3036 + $0x70] sm:$0xff]
        %v3052 = vld [vmem:[%s3036 + $0x78] sm:$0xff]
        %v3053 = vld [vmem:[%s3036 + $0x80] sm:$0xff]
        %v3054 = vld [vmem:[%s3036 + $0x88] sm:$0xff]
        %v3055 = vld [vmem:[%s3036 + $0x90] sm:$0xff]
        %v3056 = vld [vmem:[%s3036 + $0x98] sm:$0xff]
        %v3057 = vld [vmem:[%s3036 + $0xa0] sm:$0xff]
        %v3058 = vld [vmem:[%s3036 + $0xa8] sm:$0xff]
        %v3059 = vld [vmem:[%s3036 + $0xb0] sm:$0xff]
        %v3060 = vld [vmem:[%s3036 + $0xb8] sm:$0xff]
        %v3061 = vld [vmem:[%s3036 + $0xc0] sm:$0xff]
        %v3062 = vld [vmem:[%s3036 + $0xc8] sm:$0xff]
        %v3063 = vld [vmem:[%s3036 + $0xd0] sm:$0xff]
        %v3064 = vld [vmem:[%s3036 + $0xd8] sm:$0xff]
        %v3065 = vld [vmem:[%s3036 + $0xe0] sm:$0xff]
        %v3066 = vld [vmem:[%s3036 + $0xe8] sm:$0xff]
        %v3067 = vld [vmem:[%s3036 + $0xf0] sm:$0xff]
        %v3068 = vld [vmem:[%s3036 + $0xf8] sm:$0xff]
        %v3069 = vcombine.low %v3023, %v3027
        %v3070 = vcombine.high %v3023, %v3027
        %v3071 = vcombine.low %v3031, %v3035
        %v3072 = vcombine.high %v3031, %v3035
        %3077 = vmatprep.subr.mxu0 0.0
        %3078 = vmatpush1.msra.mxu0 %v3052
        %3079 = vmatprep.subr.mxu0 0.0
        %3080 = vmatpush1.msra.mxu0 %v3051
        %3081 = vmatprep.subr.mxu0 0.0
        %3082 = vmatpush1.msra.mxu0 %v3050
        %3083 = vmatprep.subr.mxu0 0.0
        %3084 = vmatpush1.msra.mxu0 %v3049
        %3085 = vmatprep.subr.mxu0 0.0
        %3086 = vmatpush1.msra.mxu0 %v3048
        %3087 = vmatprep.subr.mxu0 0.0
        %3088 = vmatpush1.msra.mxu0 %v3047
        %3089 = vmatprep.subr.mxu0 0.0
        %3090 = vmatpush1.msra.mxu0 %v3046
        %3091 = vmatprep.subr.mxu0 0.0
        %3092 = vmatpush1.msra.mxu0 %v3045
        %3093 = vmatprep.subr.mxu0 0.0
        %3094 = vmatpush1.msra.mxu0 %v3044
        %3095 = vmatprep.subr.mxu0 0.0
        %3096 = vmatpush1.msra.mxu0 %v3043
        %3097 = vmatprep.subr.mxu0 0.0
        %3098 = vmatpush1.msra.mxu0 %v3042
        %3099 = vmatprep.subr.mxu0 0.0
        %3100 = vmatpush1.msra.mxu0 %v3041
        %3101 = vmatprep.subr.mxu0 0.0
        %3102 = vmatpush1.msra.mxu0 %v3040
        %3103 = vmatprep.subr.mxu0 0.0
        %3104 = vmatpush1.msra.mxu0 %v3039
        %3105 = vmatprep.subr.mxu0 0.0
        %3106 = vmatpush1.msra.mxu0 %v3038
        %3107 = vmatprep.subr.mxu0 0.0
        %3108 = vmatpush1.msra.mxu0 %v3037
        %3109 = vmatprep.subr.mxu0 0.0
        %3110 = vmatpush2.msra.mxu0 %v3068
        %3111 = vmatprep.subr.mxu0 0.0
        %3112 = vmatpush2.msra.mxu0 %v3067
        %3113 = vmatprep.subr.mxu0 0.0
        %3114 = vmatpush2.msra.mxu0 %v3066
        %3115 = vmatprep.subr.mxu0 0.0
        %3116 = vmatpush2.msra.mxu0 %v3065
        %3117 = vmatprep.subr.mxu0 0.0
        %3118 = vmatpush2.msra.mxu0 %v3064
        %3119 = vmatprep.subr.mxu0 0.0
        %3120 = vmatpush2.msra.mxu0 %v3063
        %3121 = vmatprep.subr.mxu0 0.0
        %3122 = vmatpush2.msra.mxu0 %v3062
        %3123 = vmatprep.subr.mxu0 0.0
        %3124 = vmatpush2.msra.mxu0 %v3061
        %3125 = vmatprep.subr.mxu0 0.0
        %3126 = vmatpush2.msra.mxu0 %v3060
        %3127 = vmatprep.subr.mxu0 0.0
        %3128 = vmatpush2.msra.mxu0 %v3059
        %3129 = vmatprep.subr.mxu0 0.0
        %3130 = vmatpush2.msra.mxu0 %v3058
        %3131 = vmatprep.subr.mxu0 0.0
        %3132 = vmatpush2.msra.mxu0 %v3057
        %3133 = vmatprep.subr.mxu0 0.0
        %3134 = vmatpush2.msra.mxu0 %v3056
        %3135 = vmatprep.subr.mxu0 0.0
        %3136 = vmatpush2.msra.mxu0 %v3055
        %3137 = vmatprep.subr.mxu0 0.0
        %3138 = vmatpush2.msra.mxu0 %v3054
        %3139 = vmatprep.subr.mxu0 0.0
        %3140 = vmatpush2.msra.mxu0 %v3053
        %3141 = vmatprep.mubr.f32.mxu0 %v3070
        %3142 = vmatmul.mubr.f32.gmra.mxu0 %v3069
        %v3143 = vpop.f32.mrf.mxu0
        %v3144 = vadd.f32 0.0, %v3143
        %v3145 = vpop.f32.mrf.mxu0
        %3146 = vmatprep.mubr.f32.mxu0 %v3072
        %3147 = vmatmul.mubr.f32.gmra.mxu0 %v3071
        %v3148 = vpop.f32.mrf.mxu0
        %v3149 = vadd.f32 0.0, %v3148
        %v3150 = vpop.f32.mrf.mxu0
        %3151 = vdwg.mxu0
        %v3152 = vadd.f32 %v2994, %v3144
        %v3153 = vadd.f32 %v2995, %v3149
        %v3154 = vld [vmem:[%s587] sm:$0x3c]
        %v3155 = vld [vmem:[%s587 + $0x8] sm:$0x3c]
        %v3156 = vld [vmem:[%s587 + $0x10] sm:$0x3c]
        %v3157 = vld [vmem:[%s587 + $0x18] sm:$0x3c]
        %v3158 = vld [vmem:[%s587 + $0x20] sm:$0x3c]
        %v3159 = vld [vmem:[%s587 + $0x28] sm:$0x3c]
        %v3160 = vld [vmem:[%s587 + $0x30] sm:$0x3c]
        %v3161 = vld [vmem:[%s587 + $0x38] sm:$0x3c]
        %v3170 = vcombine.low %v3154, %v3155
        %v3171 = vcombine.high %v3154, %v3155
        %v3172 = vcombine.low %v3156, %v3157
        %v3173 = vcombine.high %v3156, %v3157
        %v3174 = vcombine.low %v3158, %v3159
        %v3175 = vcombine.high %v3158, %v3159
        %v3176 = vcombine.low %v3160, %v3161
        %v3177 = vcombine.high %v3160, %v3161
        %v3178 = vrot.slane %v3170, 6
        %v3179 = vrot.slane %v3178, 4
        %v3180 = vrot.slane %v3171, 6
        %v3181 = vsel %vm1020, %v3179, %v3180
        %v3182 = vrot.slane %v3172, 6
        %v3183 = vrot.slane %v3182, 4
        %v3184 = vrot.slane %v3173, 6
        %v3185 = vsel %vm1020, %v3183, %v3184
        %v3186 = vrot.slane %v3174, 6
        %v3187 = vrot.slane %v3186, 4
        %v3188 = vrot.slane %v3175, 6
        %v3189 = vsel %vm1020, %v3187, %v3188
        %v3190 = vrot.slane %v3176, 6
        %v3191 = vrot.slane %v3190, 4
        %v3192 = vrot.slane %v3177, 6
        %v3193 = vsel %vm1020, %v3191, %v3192
        %s3194 = scalar_lea.vmem [#allocation15], 1280
        %v3195 = vld [vmem:[%s3194] sm:$0xff]
        %v3196 = vld [vmem:[%s3194 + $0x8] sm:$0xff]
        %v3197 = vld [vmem:[%s3194 + $0x10] sm:$0xff]
        %v3198 = vld [vmem:[%s3194 + $0x18] sm:$0xff]
        %v3199 = vld [vmem:[%s3194 + $0x20] sm:$0xff]
        %v3200 = vld [vmem:[%s3194 + $0x28] sm:$0xff]
        %v3201 = vld [vmem:[%s3194 + $0x30] sm:$0xff]
        %v3202 = vld [vmem:[%s3194 + $0x38] sm:$0xff]
        %v3203 = vld [vmem:[%s3194 + $0x40] sm:$0xff]
        %v3204 = vld [vmem:[%s3194 + $0x48] sm:$0xff]
        %v3205 = vld [vmem:[%s3194 + $0x50] sm:$0xff]
        %v3206 = vld [vmem:[%s3194 + $0x58] sm:$0xff]
        %v3207 = vld [vmem:[%s3194 + $0x60] sm:$0xff]
        %v3208 = vld [vmem:[%s3194 + $0x68] sm:$0xff]
        %v3209 = vld [vmem:[%s3194 + $0x70] sm:$0xff]
        %v3210 = vld [vmem:[%s3194 + $0x78] sm:$0xff]
        %v3211 = vld [vmem:[%s3194 + $0x80] sm:$0xff]
        %v3212 = vld [vmem:[%s3194 + $0x88] sm:$0xff]
        %v3213 = vld [vmem:[%s3194 + $0x90] sm:$0xff]
        %v3214 = vld [vmem:[%s3194 + $0x98] sm:$0xff]
        %v3215 = vld [vmem:[%s3194 + $0xa0] sm:$0xff]
        %v3216 = vld [vmem:[%s3194 + $0xa8] sm:$0xff]
        %v3217 = vld [vmem:[%s3194 + $0xb0] sm:$0xff]
        %v3218 = vld [vmem:[%s3194 + $0xb8] sm:$0xff]
        %v3219 = vld [vmem:[%s3194 + $0xc0] sm:$0xff]
        %v3220 = vld [vmem:[%s3194 + $0xc8] sm:$0xff]
        %v3221 = vld [vmem:[%s3194 + $0xd0] sm:$0xff]
        %v3222 = vld [vmem:[%s3194 + $0xd8] sm:$0xff]
        %v3223 = vld [vmem:[%s3194 + $0xe0] sm:$0xff]
        %v3224 = vld [vmem:[%s3194 + $0xe8] sm:$0xff]
        %v3225 = vld [vmem:[%s3194 + $0xf0] sm:$0xff]
        %v3226 = vld [vmem:[%s3194 + $0xf8] sm:$0xff]
        %v3227 = vcombine.low %v3181, %v3185
        %v3228 = vcombine.high %v3181, %v3185
        %v3229 = vcombine.low %v3189, %v3193
        %v3230 = vcombine.high %v3189, %v3193
        %3235 = vmatprep.subr.mxu0 0.0
        %3236 = vmatpush1.msra.mxu0 %v3210
        %3237 = vmatprep.subr.mxu0 0.0
        %3238 = vmatpush1.msra.mxu0 %v3209
        %3239 = vmatprep.subr.mxu0 0.0
        %3240 = vmatpush1.msra.mxu0 %v3208
        %3241 = vmatprep.subr.mxu0 0.0
        %3242 = vmatpush1.msra.mxu0 %v3207
        %3243 = vmatprep.subr.mxu0 0.0
        %3244 = vmatpush1.msra.mxu0 %v3206
        %3245 = vmatprep.subr.mxu0 0.0
        %3246 = vmatpush1.msra.mxu0 %v3205
        %3247 = vmatprep.subr.mxu0 0.0
        %3248 = vmatpush1.msra.mxu0 %v3204
        %3249 = vmatprep.subr.mxu0 0.0
        %3250 = vmatpush1.msra.mxu0 %v3203
        %3251 = vmatprep.subr.mxu0 0.0
        %3252 = vmatpush1.msra.mxu0 %v3202
        %3253 = vmatprep.subr.mxu0 0.0
        %3254 = vmatpush1.msra.mxu0 %v3201
        %3255 = vmatprep.subr.mxu0 0.0
        %3256 = vmatpush1.msra.mxu0 %v3200
        %3257 = vmatprep.subr.mxu0 0.0
        %3258 = vmatpush1.msra.mxu0 %v3199
        %3259 = vmatprep.subr.mxu0 0.0
        %3260 = vmatpush1.msra.mxu0 %v3198
        %3261 = vmatprep.subr.mxu0 0.0
        %3262 = vmatpush1.msra.mxu0 %v3197
        %3263 = vmatprep.subr.mxu0 0.0
        %3264 = vmatpush1.msra.mxu0 %v3196
        %3265 = vmatprep.subr.mxu0 0.0
        %3266 = vmatpush1.msra.mxu0 %v3195
        %3267 = vmatprep.subr.mxu0 0.0
        %3268 = vmatpush2.msra.mxu0 %v3226
        %3269 = vmatprep.subr.mxu0 0.0
        %3270 = vmatpush2.msra.mxu0 %v3225
        %3271 = vmatprep.subr.mxu0 0.0
        %3272 = vmatpush2.msra.mxu0 %v3224
        %3273 = vmatprep.subr.mxu0 0.0
        %3274 = vmatpush2.msra.mxu0 %v3223
        %3275 = vmatprep.subr.mxu0 0.0
        %3276 = vmatpush2.msra.mxu0 %v3222
        %3277 = vmatprep.subr.mxu0 0.0
        %3278 = vmatpush2.msra.mxu0 %v3221
        %3279 = vmatprep.subr.mxu0 0.0
        %3280 = vmatpush2.msra.mxu0 %v3220
        %3281 = vmatprep.subr.mxu0 0.0
        %3282 = vmatpush2.msra.mxu0 %v3219
        %3283 = vmatprep.subr.mxu0 0.0
        %3284 = vmatpush2.msra.mxu0 %v3218
        %3285 = vmatprep.subr.mxu0 0.0
        %3286 = vmatpush2.msra.mxu0 %v3217
        %3287 = vmatprep.subr.mxu0 0.0
        %3288 = vmatpush2.msra.mxu0 %v3216
        %3289 = vmatprep.subr.mxu0 0.0
        %3290 = vmatpush2.msra.mxu0 %v3215
        %3291 = vmatprep.subr.mxu0 0.0
        %3292 = vmatpush2.msra.mxu0 %v3214
        %3293 = vmatprep.subr.mxu0 0.0
        %3294 = vmatpush2.msra.mxu0 %v3213
        %3295 = vmatprep.subr.mxu0 0.0
        %3296 = vmatpush2.msra.mxu0 %v3212
        %3297 = vmatprep.subr.mxu0 0.0
        %3298 = vmatpush2.msra.mxu0 %v3211
        %3299 = vmatprep.mubr.f32.mxu0 %v3228
        %3300 = vmatmul.mubr.f32.gmra.mxu0 %v3227
        %v3301 = vpop.f32.mrf.mxu0
        %v3302 = vadd.f32 0.0, %v3301
        %v3303 = vpop.f32.mrf.mxu0
        %3304 = vmatprep.mubr.f32.mxu0 %v3230
        %3305 = vmatmul.mubr.f32.gmra.mxu0 %v3229
        %v3306 = vpop.f32.mrf.mxu0
        %v3307 = vadd.f32 0.0, %v3306
        %v3308 = vpop.f32.mrf.mxu0
        %3309 = vdwg.mxu0
        %v3310 = vadd.f32 %v3152, %v3302
        %v3311 = vadd.f32 %v3153, %v3307
        %v3312 = vld [vmem:[%s1753] sm:$0xf]
        %v3313 = vld [vmem:[%s1753 + $0x8] sm:$0xf]
        %v3314 = vld [vmem:[%s1753 + $0x10] sm:$0xf]
        %v3315 = vld [vmem:[%s1753 + $0x18] sm:$0xf]
        %v3316 = vld [vmem:[%s1753 + $0x20] sm:$0xf]
        %v3317 = vld [vmem:[%s1753 + $0x28] sm:$0xf]
        %v3318 = vld [vmem:[%s1753 + $0x30] sm:$0xf]
        %v3319 = vld [vmem:[%s1753 + $0x38] sm:$0xf]
        %v3328 = vcombine.low %v3312, %v3313
        %v3329 = vcombine.low %v3314, %v3315
        %v3330 = vcombine.low %v3316, %v3317
        %v3331 = vcombine.low %v3318, %v3319
        %s3332 = scalar_lea.vmem [#allocation15], 1536
        %v3333 = vld [vmem:[%s3332] sm:$0xff]
        %v3334 = vld [vmem:[%s3332 + $0x8] sm:$0xff]
        %v3335 = vld [vmem:[%s3332 + $0x10] sm:$0xff]
        %v3336 = vld [vmem:[%s3332 + $0x18] sm:$0xff]
        %v3337 = vld [vmem:[%s3332 + $0x20] sm:$0xff]
        %v3338 = vld [vmem:[%s3332 + $0x28] sm:$0xff]
        %v3339 = vld [vmem:[%s3332 + $0x30] sm:$0xff]
        %v3340 = vld [vmem:[%s3332 + $0x38] sm:$0xff]
        %v3341 = vld [vmem:[%s3332 + $0x40] sm:$0xff]
        %v3342 = vld [vmem:[%s3332 + $0x48] sm:$0xff]
        %v3343 = vld [vmem:[%s3332 + $0x50] sm:$0xff]
        %v3344 = vld [vmem:[%s3332 + $0x58] sm:$0xff]
        %v3345 = vld [vmem:[%s3332 + $0x60] sm:$0xff]
        %v3346 = vld [vmem:[%s3332 + $0x68] sm:$0xff]
        %v3347 = vld [vmem:[%s3332 + $0x70] sm:$0xff]
        %v3348 = vld [vmem:[%s3332 + $0x78] sm:$0xff]
        %v3349 = vld [vmem:[%s3332 + $0x80] sm:$0xff]
        %v3350 = vld [vmem:[%s3332 + $0x88] sm:$0xff]
        %v3351 = vld [vmem:[%s3332 + $0x90] sm:$0xff]
        %v3352 = vld [vmem:[%s3332 + $0x98] sm:$0xff]
        %v3353 = vld [vmem:[%s3332 + $0xa0] sm:$0xff]
        %v3354 = vld [vmem:[%s3332 + $0xa8] sm:$0xff]
        %v3355 = vld [vmem:[%s3332 + $0xb0] sm:$0xff]
        %v3356 = vld [vmem:[%s3332 + $0xb8] sm:$0xff]
        %v3357 = vld [vmem:[%s3332 + $0xc0] sm:$0xff]
        %v3358 = vld [vmem:[%s3332 + $0xc8] sm:$0xff]
        %v3359 = vld [vmem:[%s3332 + $0xd0] sm:$0xff]
        %v3360 = vld [vmem:[%s3332 + $0xd8] sm:$0xff]
        %v3361 = vld [vmem:[%s3332 + $0xe0] sm:$0xff]
        %v3362 = vld [vmem:[%s3332 + $0xe8] sm:$0xff]
        %v3363 = vld [vmem:[%s3332 + $0xf0] sm:$0xff]
        %v3364 = vld [vmem:[%s3332 + $0xf8] sm:$0xff]
        %v3365 = vcombine.low %v3328, %v3329
        %v3366 = vcombine.high %v3328, %v3329
        %v3367 = vcombine.low %v3330, %v3331
        %v3368 = vcombine.high %v3330, %v3331
        %3373 = vmatprep.subr.mxu0 0.0
        %3374 = vmatpush1.msra.mxu0 %v3348
        %3375 = vmatprep.subr.mxu0 0.0
        %3376 = vmatpush1.msra.mxu0 %v3347
        %3377 = vmatprep.subr.mxu0 0.0
        %3378 = vmatpush1.msra.mxu0 %v3346
        %3379 = vmatprep.subr.mxu0 0.0
        %3380 = vmatpush1.msra.mxu0 %v3345
        %3381 = vmatprep.subr.mxu0 0.0
        %3382 = vmatpush1.msra.mxu0 %v3344
        %3383 = vmatprep.subr.mxu0 0.0
        %3384 = vmatpush1.msra.mxu0 %v3343
        %3385 = vmatprep.subr.mxu0 0.0
        %3386 = vmatpush1.msra.mxu0 %v3342
        %3387 = vmatprep.subr.mxu0 0.0
        %3388 = vmatpush1.msra.mxu0 %v3341
        %3389 = vmatprep.subr.mxu0 0.0
        %3390 = vmatpush1.msra.mxu0 %v3340
        %3391 = vmatprep.subr.mxu0 0.0
        %3392 = vmatpush1.msra.mxu0 %v3339
        %3393 = vmatprep.subr.mxu0 0.0
        %3394 = vmatpush1.msra.mxu0 %v3338
        %3395 = vmatprep.subr.mxu0 0.0
        %3396 = vmatpush1.msra.mxu0 %v3337
        %3397 = vmatprep.subr.mxu0 0.0
        %3398 = vmatpush1.msra.mxu0 %v3336
        %3399 = vmatprep.subr.mxu0 0.0
        %3400 = vmatpush1.msra.mxu0 %v3335
        %3401 = vmatprep.subr.mxu0 0.0
        %3402 = vmatpush1.msra.mxu0 %v3334
        %3403 = vmatprep.subr.mxu0 0.0
        %3404 = vmatpush1.msra.mxu0 %v3333
        %3405 = vmatprep.subr.mxu0 0.0
        %3406 = vmatpush2.msra.mxu0 %v3364
        %3407 = vmatprep.subr.mxu0 0.0
        %3408 = vmatpush2.msra.mxu0 %v3363
        %3409 = vmatprep.subr.mxu0 0.0
        %3410 = vmatpush2.msra.mxu0 %v3362
        %3411 = vmatprep.subr.mxu0 0.0
        %3412 = vmatpush2.msra.mxu0 %v3361
        %3413 = vmatprep.subr.mxu0 0.0
        %3414 = vmatpush2.msra.mxu0 %v3360
        %3415 = vmatprep.subr.mxu0 0.0
        %3416 = vmatpush2.msra.mxu0 %v3359
        %3417 = vmatprep.subr.mxu0 0.0
        %3418 = vmatpush2.msra.mxu0 %v3358
        %3419 = vmatprep.subr.mxu0 0.0
        %3420 = vmatpush2.msra.mxu0 %v3357
        %3421 = vmatprep.subr.mxu0 0.0
        %3422 = vmatpush2.msra.mxu0 %v3356
        %3423 = vmatprep.subr.mxu0 0.0
        %3424 = vmatpush2.msra.mxu0 %v3355
        %3425 = vmatprep.subr.mxu0 0.0
        %3426 = vmatpush2.msra.mxu0 %v3354
        %3427 = vmatprep.subr.mxu0 0.0
        %3428 = vmatpush2.msra.mxu0 %v3353
        %3429 = vmatprep.subr.mxu0 0.0
        %3430 = vmatpush2.msra.mxu0 %v3352
        %3431 = vmatprep.subr.mxu0 0.0
        %3432 = vmatpush2.msra.mxu0 %v3351
        %3433 = vmatprep.subr.mxu0 0.0
        %3434 = vmatpush2.msra.mxu0 %v3350
        %3435 = vmatprep.subr.mxu0 0.0
        %3436 = vmatpush2.msra.mxu0 %v3349
        %3437 = vmatprep.mubr.f32.mxu0 %v3366
        %3438 = vmatmul.mubr.f32.gmra.mxu0 %v3365
        %v3439 = vpop.f32.mrf.mxu0
        %v3440 = vadd.f32 0.0, %v3439
        %v3441 = vpop.f32.mrf.mxu0
        %3442 = vmatprep.mubr.f32.mxu0 %v3368
        %3443 = vmatmul.mubr.f32.gmra.mxu0 %v3367
        %v3444 = vpop.f32.mrf.mxu0
        %v3445 = vadd.f32 0.0, %v3444
        %v3446 = vpop.f32.mrf.mxu0
        %3447 = vdwg.mxu0
        %v3448 = vadd.f32 %v3310, %v3440
        %v3449 = vadd.f32 %v3311, %v3445
        %v3450 = vld [vmem:[%s1753] sm:$0x1e]
        %v3451 = vld [vmem:[%s1753 + $0x8] sm:$0x1e]
        %v3452 = vld [vmem:[%s1753 + $0x10] sm:$0x1e]
        %v3453 = vld [vmem:[%s1753 + $0x18] sm:$0x1e]
        %v3454 = vld [vmem:[%s1753 + $0x20] sm:$0x1e]
        %v3455 = vld [vmem:[%s1753 + $0x28] sm:$0x1e]
        %v3456 = vld [vmem:[%s1753 + $0x30] sm:$0x1e]
        %v3457 = vld [vmem:[%s1753 + $0x38] sm:$0x1e]
        %v3466 = vcombine.low %v3450, %v3451
        %v3467 = vcombine.high %v3450, %v3451
        %v3468 = vcombine.low %v3452, %v3453
        %v3469 = vcombine.high %v3452, %v3453
        %v3470 = vcombine.low %v3454, %v3455
        %v3471 = vcombine.high %v3454, %v3455
        %v3472 = vcombine.low %v3456, %v3457
        %v3473 = vcombine.high %v3456, %v3457
        %v3474 = vrot.slane %v3466, 5
        %v3475 = vrot.slane %v3474, 4
        %v3476 = vrot.slane %v3467, 5
        %v3477 = vsel %vm823, %v3475, %v3476
        %v3478 = vrot.slane %v3468, 5
        %v3479 = vrot.slane %v3478, 4
        %v3480 = vrot.slane %v3469, 5
        %v3481 = vsel %vm823, %v3479, %v3480
        %v3482 = vrot.slane %v3470, 5
        %v3483 = vrot.slane %v3482, 4
        %v3484 = vrot.slane %v3471, 5
        %v3485 = vsel %vm823, %v3483, %v3484
        %v3486 = vrot.slane %v3472, 5
        %v3487 = vrot.slane %v3486, 4
        %v3488 = vrot.slane %v3473, 5
        %v3489 = vsel %vm823, %v3487, %v3488
        %s3490 = scalar_lea.vmem [#allocation15], 1792
        %v3491 = vld [vmem:[%s3490] sm:$0xff]
        %v3492 = vld [vmem:[%s3490 + $0x8] sm:$0xff]
        %v3493 = vld [vmem:[%s3490 + $0x10] sm:$0xff]
        %v3494 = vld [vmem:[%s3490 + $0x18] sm:$0xff]
        %v3495 = vld [vmem:[%s3490 + $0x20] sm:$0xff]
        %v3496 = vld [vmem:[%s3490 + $0x28] sm:$0xff]
        %v3497 = vld [vmem:[%s3490 + $0x30] sm:$0xff]
        %v3498 = vld [vmem:[%s3490 + $0x38] sm:$0xff]
        %v3499 = vld [vmem:[%s3490 + $0x40] sm:$0xff]
        %v3500 = vld [vmem:[%s3490 + $0x48] sm:$0xff]
        %v3501 = vld [vmem:[%s3490 + $0x50] sm:$0xff]
        %v3502 = vld [vmem:[%s3490 + $0x58] sm:$0xff]
        %v3503 = vld [vmem:[%s3490 + $0x60] sm:$0xff]
        %v3504 = vld [vmem:[%s3490 + $0x68] sm:$0xff]
        %v3505 = vld [vmem:[%s3490 + $0x70] sm:$0xff]
        %v3506 = vld [vmem:[%s3490 + $0x78] sm:$0xff]
        %v3507 = vld [vmem:[%s3490 + $0x80] sm:$0xff]
        %v3508 = vld [vmem:[%s3490 + $0x88] sm:$0xff]
        %v3509 = vld [vmem:[%s3490 + $0x90] sm:$0xff]
        %v3510 = vld [vmem:[%s3490 + $0x98] sm:$0xff]
        %v3511 = vld [vmem:[%s3490 + $0xa0] sm:$0xff]
        %v3512 = vld [vmem:[%s3490 + $0xa8] sm:$0xff]
        %v3513 = vld [vmem:[%s3490 + $0xb0] sm:$0xff]
        %v3514 = vld [vmem:[%s3490 + $0xb8] sm:$0xff]
        %v3515 = vld [vmem:[%s3490 + $0xc0] sm:$0xff]
        %v3516 = vld [vmem:[%s3490 + $0xc8] sm:$0xff]
        %v3517 = vld [vmem:[%s3490 + $0xd0] sm:$0xff]
        %v3518 = vld [vmem:[%s3490 + $0xd8] sm:$0xff]
        %v3519 = vld [vmem:[%s3490 + $0xe0] sm:$0xff]
        %v3520 = vld [vmem:[%s3490 + $0xe8] sm:$0xff]
        %v3521 = vld [vmem:[%s3490 + $0xf0] sm:$0xff]
        %v3522 = vld [vmem:[%s3490 + $0xf8] sm:$0xff]
        %v3523 = vcombine.low %v3477, %v3481
        %v3524 = vcombine.high %v3477, %v3481
        %v3525 = vcombine.low %v3485, %v3489
        %v3526 = vcombine.high %v3485, %v3489
        %3531 = vmatprep.subr.mxu0 0.0
        %3532 = vmatpush1.msra.mxu0 %v3506
        %3533 = vmatprep.subr.mxu0 0.0
        %3534 = vmatpush1.msra.mxu0 %v3505
        %3535 = vmatprep.subr.mxu0 0.0
        %3536 = vmatpush1.msra.mxu0 %v3504
        %3537 = vmatprep.subr.mxu0 0.0
        %3538 = vmatpush1.msra.mxu0 %v3503
        %3539 = vmatprep.subr.mxu0 0.0
        %3540 = vmatpush1.msra.mxu0 %v3502
        %3541 = vmatprep.subr.mxu0 0.0
        %3542 = vmatpush1.msra.mxu0 %v3501
        %3543 = vmatprep.subr.mxu0 0.0
        %3544 = vmatpush1.msra.mxu0 %v3500
        %3545 = vmatprep.subr.mxu0 0.0
        %3546 = vmatpush1.msra.mxu0 %v3499
        %3547 = vmatprep.subr.mxu0 0.0
        %3548 = vmatpush1.msra.mxu0 %v3498
        %3549 = vmatprep.subr.mxu0 0.0
        %3550 = vmatpush1.msra.mxu0 %v3497
        %3551 = vmatprep.subr.mxu0 0.0
        %3552 = vmatpush1.msra.mxu0 %v3496
        %3553 = vmatprep.subr.mxu0 0.0
        %3554 = vmatpush1.msra.mxu0 %v3495
        %3555 = vmatprep.subr.mxu0 0.0
        %3556 = vmatpush1.msra.mxu0 %v3494
        %3557 = vmatprep.subr.mxu0 0.0
        %3558 = vmatpush1.msra.mxu0 %v3493
        %3559 = vmatprep.subr.mxu0 0.0
        %3560 = vmatpush1.msra.mxu0 %v3492
        %3561 = vmatprep.subr.mxu0 0.0
        %3562 = vmatpush1.msra.mxu0 %v3491
        %3563 = vmatprep.subr.mxu0 0.0
        %3564 = vmatpush2.msra.mxu0 %v3522
        %3565 = vmatprep.subr.mxu0 0.0
        %3566 = vmatpush2.msra.mxu0 %v3521
        %3567 = vmatprep.subr.mxu0 0.0
        %3568 = vmatpush2.msra.mxu0 %v3520
        %3569 = vmatprep.subr.mxu0 0.0
        %3570 = vmatpush2.msra.mxu0 %v3519
        %3571 = vmatprep.subr.mxu0 0.0
        %3572 = vmatpush2.msra.mxu0 %v3518
        %3573 = vmatprep.subr.mxu0 0.0
        %3574 = vmatpush2.msra.mxu0 %v3517
        %3575 = vmatprep.subr.mxu0 0.0
        %3576 = vmatpush2.msra.mxu0 %v3516
        %3577 = vmatprep.subr.mxu0 0.0
        %3578 = vmatpush2.msra.mxu0 %v3515
        %3579 = vmatprep.subr.mxu0 0.0
        %3580 = vmatpush2.msra.mxu0 %v3514
        %3581 = vmatprep.subr.mxu0 0.0
        %3582 = vmatpush2.msra.mxu0 %v3513
        %3583 = vmatprep.subr.mxu0 0.0
        %3584 = vmatpush2.msra.mxu0 %v3512
        %3585 = vmatprep.subr.mxu0 0.0
        %3586 = vmatpush2.msra.mxu0 %v3511
        %3587 = vmatprep.subr.mxu0 0.0
        %3588 = vmatpush2.msra.mxu0 %v3510
        %3589 = vmatprep.subr.mxu0 0.0
        %3590 = vmatpush2.msra.mxu0 %v3509
        %3591 = vmatprep.subr.mxu0 0.0
        %3592 = vmatpush2.msra.mxu0 %v3508
        %3593 = vmatprep.subr.mxu0 0.0
        %3594 = vmatpush2.msra.mxu0 %v3507
        %3595 = vmatprep.mubr.f32.mxu0 %v3524
        %3596 = vmatmul.mubr.f32.gmra.mxu0 %v3523
        %v3597 = vpop.f32.mrf.mxu0
        %v3598 = vadd.f32 0.0, %v3597
        %v3599 = vpop.f32.mrf.mxu0
        %3600 = vmatprep.mubr.f32.mxu0 %v3526
        %3601 = vmatmul.mubr.f32.gmra.mxu0 %v3525
        %v3602 = vpop.f32.mrf.mxu0
        %v3603 = vadd.f32 0.0, %v3602
        %v3604 = vpop.f32.mrf.mxu0
        %3605 = vdwg.mxu0
        %v3606 = vadd.f32 %v3448, %v3598
        %v3607 = vadd.f32 %v3449, %v3603
        %v3608 = vld [vmem:[%s1753] sm:$0x3c]
        %v3609 = vld [vmem:[%s1753 + $0x8] sm:$0x3c]
        %v3610 = vld [vmem:[%s1753 + $0x10] sm:$0x3c]
        %v3611 = vld [vmem:[%s1753 + $0x18] sm:$0x3c]
        %v3612 = vld [vmem:[%s1753 + $0x20] sm:$0x3c]
        %v3613 = vld [vmem:[%s1753 + $0x28] sm:$0x3c]
        %v3614 = vld [vmem:[%s1753 + $0x30] sm:$0x3c]
        %v3615 = vld [vmem:[%s1753 + $0x38] sm:$0x3c]
        %v3624 = vcombine.low %v3608, %v3609
        %v3625 = vcombine.high %v3608, %v3609
        %v3626 = vcombine.low %v3610, %v3611
        %v3627 = vcombine.high %v3610, %v3611
        %v3628 = vcombine.low %v3612, %v3613
        %v3629 = vcombine.high %v3612, %v3613
        %v3630 = vcombine.low %v3614, %v3615
        %v3631 = vcombine.high %v3614, %v3615
        %v3632 = vrot.slane %v3624, 6
        %v3633 = vrot.slane %v3632, 4
        %v3634 = vrot.slane %v3625, 6
        %v3635 = vsel %vm1020, %v3633, %v3634
        %v3636 = vrot.slane %v3626, 6
        %v3637 = vrot.slane %v3636, 4
        %v3638 = vrot.slane %v3627, 6
        %v3639 = vsel %vm1020, %v3637, %v3638
        %v3640 = vrot.slane %v3628, 6
        %v3641 = vrot.slane %v3640, 4
        %v3642 = vrot.slane %v3629, 6
        %v3643 = vsel %vm1020, %v3641, %v3642
        %v3644 = vrot.slane %v3630, 6
        %v3645 = vrot.slane %v3644, 4
        %v3646 = vrot.slane %v3631, 6
        %v3647 = vsel %vm1020, %v3645, %v3646
        %s3648 = scalar_lea.vmem [#allocation15], 2048
        %v3649 = vld [vmem:[%s3648] sm:$0xff]
        %v3650 = vld [vmem:[%s3648 + $0x8] sm:$0xff]
        %v3651 = vld [vmem:[%s3648 + $0x10] sm:$0xff]
        %v3652 = vld [vmem:[%s3648 + $0x18] sm:$0xff]
        %v3653 = vld [vmem:[%s3648 + $0x20] sm:$0xff]
        %v3654 = vld [vmem:[%s3648 + $0x28] sm:$0xff]
        %v3655 = vld [vmem:[%s3648 + $0x30] sm:$0xff]
        %v3656 = vld [vmem:[%s3648 + $0x38] sm:$0xff]
        %v3657 = vld [vmem:[%s3648 + $0x40] sm:$0xff]
        %v3658 = vld [vmem:[%s3648 + $0x48] sm:$0xff]
        %v3659 = vld [vmem:[%s3648 + $0x50] sm:$0xff]
        %v3660 = vld [vmem:[%s3648 + $0x58] sm:$0xff]
        %v3661 = vld [vmem:[%s3648 + $0x60] sm:$0xff]
        %v3662 = vld [vmem:[%s3648 + $0x68] sm:$0xff]
        %v3663 = vld [vmem:[%s3648 + $0x70] sm:$0xff]
        %v3664 = vld [vmem:[%s3648 + $0x78] sm:$0xff]
        %v3665 = vld [vmem:[%s3648 + $0x80] sm:$0xff]
        %v3666 = vld [vmem:[%s3648 + $0x88] sm:$0xff]
        %v3667 = vld [vmem:[%s3648 + $0x90] sm:$0xff]
        %v3668 = vld [vmem:[%s3648 + $0x98] sm:$0xff]
        %v3669 = vld [vmem:[%s3648 + $0xa0] sm:$0xff]
        %v3670 = vld [vmem:[%s3648 + $0xa8] sm:$0xff]
        %v3671 = vld [vmem:[%s3648 + $0xb0] sm:$0xff]
        %v3672 = vld [vmem:[%s3648 + $0xb8] sm:$0xff]
        %v3673 = vld [vmem:[%s3648 + $0xc0] sm:$0xff]
        %v3674 = vld [vmem:[%s3648 + $0xc8] sm:$0xff]
        %v3675 = vld [vmem:[%s3648 + $0xd0] sm:$0xff]
        %v3676 = vld [vmem:[%s3648 + $0xd8] sm:$0xff]
        %v3677 = vld [vmem:[%s3648 + $0xe0] sm:$0xff]
        %v3678 = vld [vmem:[%s3648 + $0xe8] sm:$0xff]
        %v3679 = vld [vmem:[%s3648 + $0xf0] sm:$0xff]
        %v3680 = vld [vmem:[%s3648 + $0xf8] sm:$0xff]
        %v3681 = vcombine.low %v3635, %v3639
        %v3682 = vcombine.high %v3635, %v3639
        %v3683 = vcombine.low %v3643, %v3647
        %v3684 = vcombine.high %v3643, %v3647
        %3689 = vmatprep.subr.mxu0 0.0
        %3690 = vmatpush1.msra.mxu0 %v3664
        %3691 = vmatprep.subr.mxu0 0.0
        %3692 = vmatpush1.msra.mxu0 %v3663
        %3693 = vmatprep.subr.mxu0 0.0
        %3694 = vmatpush1.msra.mxu0 %v3662
        %3695 = vmatprep.subr.mxu0 0.0
        %3696 = vmatpush1.msra.mxu0 %v3661
        %3697 = vmatprep.subr.mxu0 0.0
        %3698 = vmatpush1.msra.mxu0 %v3660
        %3699 = vmatprep.subr.mxu0 0.0
        %3700 = vmatpush1.msra.mxu0 %v3659
        %3701 = vmatprep.subr.mxu0 0.0
        %3702 = vmatpush1.msra.mxu0 %v3658
        %3703 = vmatprep.subr.mxu0 0.0
        %3704 = vmatpush1.msra.mxu0 %v3657
        %3705 = vmatprep.subr.mxu0 0.0
        %3706 = vmatpush1.msra.mxu0 %v3656
        %3707 = vmatprep.subr.mxu0 0.0
        %3708 = vmatpush1.msra.mxu0 %v3655
        %3709 = vmatprep.subr.mxu0 0.0
        %3710 = vmatpush1.msra.mxu0 %v3654
        %3711 = vmatprep.subr.mxu0 0.0
        %3712 = vmatpush1.msra.mxu0 %v3653
        %3713 = vmatprep.subr.mxu0 0.0
        %3714 = vmatpush1.msra.mxu0 %v3652
        %3715 = vmatprep.subr.mxu0 0.0
        %3716 = vmatpush1.msra.mxu0 %v3651
        %3717 = vmatprep.subr.mxu0 0.0
        %3718 = vmatpush1.msra.mxu0 %v3650
        %3719 = vmatprep.subr.mxu0 0.0
        %3720 = vmatpush1.msra.mxu0 %v3649
        %3721 = vmatprep.subr.mxu0 0.0
        %3722 = vmatpush2.msra.mxu0 %v3680
        %3723 = vmatprep.subr.mxu0 0.0
        %3724 = vmatpush2.msra.mxu0 %v3679
        %3725 = vmatprep.subr.mxu0 0.0
        %3726 = vmatpush2.msra.mxu0 %v3678
        %3727 = vmatprep.subr.mxu0 0.0
        %3728 = vmatpush2.msra.mxu0 %v3677
        %3729 = vmatprep.subr.mxu0 0.0
        %3730 = vmatpush2.msra.mxu0 %v3676
        %3731 = vmatprep.subr.mxu0 0.0
        %3732 = vmatpush2.msra.mxu0 %v3675
        %3733 = vmatprep.subr.mxu0 0.0
        %3734 = vmatpush2.msra.mxu0 %v3674
        %3735 = vmatprep.subr.mxu0 0.0
        %3736 = vmatpush2.msra.mxu0 %v3673
        %3737 = vmatprep.subr.mxu0 0.0
        %3738 = vmatpush2.msra.mxu0 %v3672
        %3739 = vmatprep.subr.mxu0 0.0
        %3740 = vmatpush2.msra.mxu0 %v3671
        %3741 = vmatprep.subr.mxu0 0.0
        %3742 = vmatpush2.msra.mxu0 %v3670
        %3743 = vmatprep.subr.mxu0 0.0
        %3744 = vmatpush2.msra.mxu0 %v3669
        %3745 = vmatprep.subr.mxu0 0.0
        %3746 = vmatpush2.msra.mxu0 %v3668
        %3747 = vmatprep.subr.mxu0 0.0
        %3748 = vmatpush2.msra.mxu0 %v3667
        %3749 = vmatprep.subr.mxu0 0.0
        %3750 = vmatpush2.msra.mxu0 %v3666
        %3751 = vmatprep.subr.mxu0 0.0
        %3752 = vmatpush2.msra.mxu0 %v3665
        %3753 = vmatprep.mubr.f32.mxu0 %v3682
        %3754 = vmatmul.mubr.f32.gmra.mxu0 %v3681
        %v3755 = vpop.f32.mrf.mxu0
        %v3756 = vadd.f32 0.0, %v3755
        %v3757 = vpop.f32.mrf.mxu0
        %3758 = vmatprep.mubr.f32.mxu0 %v3684
        %3759 = vmatmul.mubr.f32.gmra.mxu0 %v3683
        %v3760 = vpop.f32.mrf.mxu0
        %v3761 = vadd.f32 0.0, %v3760
        %v3762 = vpop.f32.mrf.mxu0
        %3763 = vdwg.mxu0
        %v3764 = vadd.f32 %v3606, %v3756
        %v3765 = vadd.f32 %v3607, %v3761
        %v3766 = vld [vmem:[%s488] sm:$0xf]
        %v3767 = vld [vmem:[%s488 + $0x4] sm:$0xf]
        %v3768 = vld [vmem:[%s488 + $0x8] sm:$0xf]
        %v3769 = vld [vmem:[%s488 + $0xc] sm:$0xf]
        %v3774 = vcombine.low %v3766, %v3767
        %v3775 = vcombine.low %v3768, %v3769
        %v3778 = vadd.f32 %v3764, %v3774
        %v3779 = vadd.f32 %v3765, %v3775
        %v3780 = vtanh.pop %v3778
        %v3781 = vtanh.pop %v3779
        %v3782 = vsub.f32 1.0, %v2343
        %v3783 = vsub.f32 1.0, %v2345
        %v3784 = vmul.f32 %v3782, %v2376
        %v3785 = vmul.f32 %v3783, %v2377
        %v3786 = vmul.f32 %v2343, %v3780
        %v3787 = vmul.f32 %v2345, %v3781
        %v3788 = vadd.f32 %v3784, %v3786
        %v3789 = vadd.f32 %v3785, %v3787
        %v3792 = vcombine.high %v3788, %v3788
        %v3793 = vcombine.high %v3789, %v3789
        %3796 = vst [vmem:[%s558] sm:$0xf] %v3788
        %3797 = vst [vmem:[%s558 + $0x4] sm:$0xf] %v3792
        %3798 = vst [vmem:[%s558 + $0x8] sm:$0xf] %v3789
        %3799 = vst [vmem:[%s558 + $0xc] sm:$0xf] %v3793
        %s3800 = sand.u32 %s256, 1
        %s3801 = scalar_lea.sflag [#allocation5], %s3800
        %s3802 = sand.u32 %s256, 1
        %s3803 = smul.addr %s3802, 16
        %s3804 = scalar_lea.vmem [#allocation18], %s3803
        // Predicated region
        $region93: #{tpu_custom_call.1} parent=55 // pred_check
          %p3805 = pneg %p266
        $region94: #{tpu_custom_call.1} parent=55 // pred_check_branch
          %3807 = sbr.rel (%p3805) target = $region96
        $region95: #{tpu_custom_call.1} parent=55 // pred_region
          %s3809 = ssub.s32 256, 256
          %3810 = vsyncadd %s3801, %s3809
          %s3811 = smul.addr %s34, 4
          %s3812 = smul.addr %s3811, 64
          %s3813 = scalar_lea.hbm %s9, %s3812
          %s3814 = sshll.u32 %s3804, 4
          %s3815 = int_to_ptr.vmem [resolvable:$true] %s3814
          %3820 = dma.vmem_to_hbm [thread:$0]  %s3815, 256, %s3813, %s3801, 64, 64, 4
        $region96: #{tpu_custom_call.1} parent=55 // pred_fallthru
          _
      $region56: #{tpu_custom_call.1} parent=5 // pred_fallthru
        _
      %p3821 = scmp.le.s32.totalorder 2, %s29
      // Predicated region
      $region97: #{tpu_custom_call.1} parent=5 // pred_check
        %p3822 = pneg %p3821
      $region98: #{tpu_custom_call.1} parent=5 // pred_check_branch
        %3824 = sbr.rel (%p3822) target = $region100
      $region99: #{tpu_custom_call.1} parent=5 // pred_region
        %s3825 = ssub.s32 %s29, 2
        // Predicated region
        $region101: #{tpu_custom_call.1} parent=99 // pred_check
          %p3826 = pneg %p272
        $region102: #{tpu_custom_call.1} parent=99 // pred_check_branch
          %3828 = sbr.rel (%p3826) target = $region104
        $region103: #{tpu_custom_call.1} parent=99 // pred_region
          %s3829 = sand.u32 %s257, 1
          %s3830 = scalar_lea.sflag [#allocation5], %s3829
          %s3831 = sand.u32 %s257, 1
          %s3832 = smul.addr %s3831, 16
          %s3833 = scalar_lea.vmem [#allocation18], %s3832
          %3834 = dma.done %s3830, 256
        $region104: #{tpu_custom_call.1} parent=99 // pred_fallthru
          _
      $region100: #{tpu_custom_call.1} parent=5 // pred_fallthru
        _
    $region6: #{tpu_custom_call.1} parent=1 // loop_footer
      %s33 = sadd.s32 1, %s29
    $region7: #{tpu_custom_call.1} parent=1 // loop_footer_branch
      %28 = sbr.rel target = $region3
    $region8: #{tpu_custom_call.1} parent=1 // loop_exit
      _
    %3835 = vsyncpa [#allocation4], 1
    %s3836 = scalar_lea.sflag [#allocation4], 1
    %3837 = vsyncpa %s3836, 1
    %3838 = vsyncpa [#allocation7], 1
    %s3839 = scalar_lea.sflag [#allocation7], 1
    %3840 = vsyncpa %s3839, 1
    %3841 = vsyncpa [#allocation10], 1
    %s3842 = scalar_lea.sflag [#allocation10], 1
    %3843 = vsyncpa %s3842, 1
    %3844 = vsyncpa [#allocation13], 1
    %3845 = vsyncpa [#allocation16], 1
    %3846 = vsyncpa [#allocation5], 1
    %s3847 = scalar_lea.sflag [#allocation5], 1
    %3848 = vsyncpa %s3847, 1

</llo_original>
